<compile_context>
chip_gen: v7x
topology: tpu7x:2x2x1
jax: 0.10.0
libtpu: 0.0.40
codegen_flags: <defaults>
</compile_context>

<pallas_src>
import functools

import jax
import jax.numpy as jnp
from jax.experimental import pallas as pl
from jax.experimental.pallas import tpu as pltpu


# ----------------------------------------------------------------------------
# Fused kernel: conv_a+BN+ReLU -> conv_b+BN -> (+skip) -> ReLU, one image/step
# ----------------------------------------------------------------------------
def _res_basic_block_kernel(x_ref, wa_ref, sha_ref, wb_ref, shb_ref, *rest,
                            Ho, Wo, proj, rstarts, cstarts):
    if proj:
        wp_ref, o_ref, ya_ref = rest
    else:
        o_ref, ya_ref = rest

    cin = x_ref.shape[-1]
    cp = wa_ref.shape[-1]

    # ---- conv_a (3x3; stride folded into rstarts/cstarts) + BN_a + ReLU ----
    # 9 shifted (Ho*Wo, cin) @ (cin, cp) MXU dots; all reads are contiguous
    # static-offset windows of the padded / phase-regrouped input block.
    acc = jnp.zeros((Ho * Wo, cp), jnp.float32)
    for kh in range(3):
        for kw in range(3):
            lhs = x_ref[pl.ds(rstarts[kh], Ho), pl.ds(cstarts[kw], Wo), :]
            lhs = lhs.reshape(Ho * Wo, cin)
            rhs = wa_ref[pl.ds((kh * 3 + kw) * cin, cin), :]
            acc += jnp.dot(lhs, rhs, preferred_element_type=jnp.float32)
    ya = jnp.maximum(acc + sha_ref[...], 0.0)

    # ---- stage ya in VMEM with a zero halo; zero only the 1-px border ----
    zrow = jnp.zeros((1, Wo + 2, cp), ya_ref.dtype)
    zcol = jnp.zeros((Ho + 2, 1, cp), ya_ref.dtype)
    ya_ref[pl.ds(0, 1), :, :] = zrow
    ya_ref[pl.ds(Ho + 1, 1), :, :] = zrow
    ya_ref[:, pl.ds(0, 1), :] = zcol
    ya_ref[:, pl.ds(Wo + 1, 1), :] = zcol
    ya_ref[pl.ds(1, Ho), pl.ds(1, Wo), :] = (
        ya.reshape(Ho, Wo, cp).astype(ya_ref.dtype))

    # ---- conv_b (3x3, stride 1) + BN_b, reading the VMEM-resident ya ----
    acc = jnp.zeros((Ho * Wo, cp), jnp.float32)
    for kh in range(3):
        for kw in range(3):
            lhs = ya_ref[pl.ds(kh, Ho), pl.ds(kw, Wo), :].reshape(Ho * Wo, cp)
            rhs = wb_ref[pl.ds((kh * 3 + kw) * cp, cp), :]
            acc += jnp.dot(lhs, rhs, preferred_element_type=jnp.float32)

    # ---- skip path, read straight from the input block already in VMEM ----
    # The (kh=1, kw=1) tap window of the padded input is exactly x[::s, ::s].
    sk = x_ref[pl.ds(rstarts[1], Ho), pl.ds(cstarts[1], Wo), :]
    sk = sk.reshape(Ho * Wo, cin)
    if proj:
        # 1x1 projection conv + BN (shift pre-added into shb_ref).
        acc += jnp.dot(sk, wp_ref[...], preferred_element_type=jnp.float32)
    else:
        # Identity skip: plain f32 add, no identity matmul.
        sk = sk.astype(jnp.float32)
        if cp > cin:
            sk = jnp.concatenate(
                [sk, jnp.zeros((Ho * Wo, cp - cin), jnp.float32)], axis=-1)
        acc += sk

    out = jnp.maximum(acc + shb_ref[...], 0.0)
    o_ref[...] = out.reshape(Ho, Wo, cp).astype(o_ref.dtype)


# ----------------------------------------------------------------------------
# Wrapper helpers: BN folding, channel padding, stride phase-regrouping
# ----------------------------------------------------------------------------
def _round_up(x, m):
    return ((x + m - 1) // m) * m


def fold_bn(gamma, beta, mean, var, eps):
    scale = gamma / jnp.sqrt(var + eps)
    shift = beta - mean * scale
    return scale, shift


def _phase_regroup(a, axis, stride):
    """Reorder `axis` into stride-phase-major order: [p=0 elems, p=1 elems, ...].

    After this, any stride-`s` gather starting at offset k becomes a contiguous
    run in the regrouped layout (so the kernel never needs strided indexing)."""
    if stride == 1:
        return a
    parts = [jax.lax.slice_in_dim(a, p, a.shape[axis], stride=stride, axis=axis)
             for p in range(stride)]
    return jnp.concatenate(parts, axis=axis)


def _phase_starts(dim, stride):
    """Regrouped start index of a stride-`stride` run beginning at offset k=0,1,2."""
    sizes = [-(-(dim - p) // stride) for p in range(stride)]
    offs = [0]
    for p in range(stride - 1):
        offs.append(offs[-1] + sizes[p])
    return tuple(offs[k % stride] + k // stride for k in range(3))


# ----------------------------------------------------------------------------
# Wrapper: BN folding, channel padding (lane-dense), pallas_call plumbing
# ----------------------------------------------------------------------------
def res_basic_block(x_nchw, params, w_in, w_out, stride, eps=1e-5,
                    out_dtype=jnp.float32):
    proj = (w_in != w_out) or (stride != 1)
    N, _, H, W = x_nchw.shape
    Ho = (H + 2 - 3) // stride + 1
    Wo = (W + 2 - 3) // stride + 1
    cp = _round_up(w_out, 128)                 # lane-dense output channels
    pad_c = cp - w_out
    Hp, Wp = H + 2, W + 2

    # Input prep as ONE fused producer chain: NCHW->NHWC transpose + bf16 cast
    # + spatial zero-pad (+ phase regroup for stride>1).  XLA fuses this into a
    # single HBM pass (the transpose is required anyway at the NCHW boundary).
    x = jnp.transpose(x_nchw, (0, 2, 3, 1)).astype(jnp.bfloat16)
    x = jnp.pad(x, ((0, 0), (1, 1), (1, 1), (0, 0)))
    x = _phase_regroup(_phase_regroup(x, 1, stride), 2, stride)
    rstarts = _phase_starts(Hp, stride)
    cstarts = _phase_starts(Wp, stride)

    # ---- fold BN scale into the weight columns (shifts stay separate, f32) ----
    sa, ba = fold_bn(**params["a_bn"], eps=eps)
    sb, bb = fold_bn(**params["b_bn"], eps=eps)

    wa = params["wa"] * sa                                        # (3,3,w_in,w_out)
    wa = jnp.pad(wa, ((0, 0), (0, 0), (0, 0), (0, pad_c)))
    wa = wa.reshape(9 * w_in, cp).astype(jnp.bfloat16)
    sha = jnp.pad(ba, (0, pad_c)).reshape(1, cp).astype(jnp.float32)

    wb = params["wb"] * sb                                        # (3,3,w_out,w_out)
    wb = jnp.pad(wb, ((0, 0), (0, 0), (0, pad_c), (0, pad_c)))
    wb = wb.reshape(9 * cp, cp).astype(jnp.bfloat16)

    shift_b = bb
    if proj:
        sp, bp = fold_bn(**params["p_bn"], eps=eps)
        shift_b = shift_b + bp                   # pre-add proj-BN shift
        wp = jnp.pad(params["wp"] * sp, ((0, 0), (0, pad_c))).astype(jnp.bfloat16)
    shb = jnp.pad(shift_b, (0, pad_c)).reshape(1, cp).astype(jnp.float32)

    inputs = [x, wa, sha, wb, shb]
    in_specs = [
        pl.BlockSpec((None, Hp, Wp, w_in), lambda n: (n, 0, 0, 0)),
        pl.BlockSpec((9 * w_in, cp), lambda n: (0, 0)),
        pl.BlockSpec((1, cp), lambda n: (0, 0)),
        pl.BlockSpec((9 * cp, cp), lambda n: (0, 0)),
        pl.BlockSpec((1, cp), lambda n: (0, 0)),
    ]
    if proj:
        inputs.append(wp)
        in_specs.append(pl.BlockSpec((w_in, cp), lambda n: (0, 0)))

    kernel = functools.partial(_res_basic_block_kernel, Ho=Ho, Wo=Wo, proj=proj,
                               rstarts=rstarts, cstarts=cstarts)

    out = pl.pallas_call(
        kernel,
        out_shape=jax.ShapeDtypeStruct((N, Ho, Wo, cp), out_dtype),
        grid=(N,),
        in_specs=in_specs,
        out_specs=pl.BlockSpec((None, Ho, Wo, cp), lambda n: (n, 0, 0, 0)),
        scratch_shapes=[pltpu.VMEM((Ho + 2, Wo + 2, cp), jnp.bfloat16)],
        compiler_params=pltpu.CompilerParams(
            dimension_semantics=("parallel",),      # batch steps split across TCs
            vmem_limit_bytes=40 * 1024 * 1024),     # safe on 64 MiB v7x as well
    )(*inputs)

    # NOTE: when chaining blocks, keep the NHWC channel-padded (bf16) output and
    # skip the slice + transpose below; kept here to preserve PyTorch semantics.
    out = out[..., :w_out]                           # drop channel lane padding
    return jnp.transpose(out, (0, 3, 1, 2)).astype(jnp.float32)   # NHWC -> NCHW


# ----------------------------------------------------------------------------
# Parameter init (deterministic) and pure-JAX f32 reference
# ----------------------------------------------------------------------------
def init_params(key, w_in, w_out, proj_block, dtype=jnp.float32):
    ks = jax.random.split(key, 8)
    p = {}
    p["wa"] = 0.1 * jax.random.normal(ks[0], (3, 3, w_in, w_out), dtype)
    p["a_bn"] = dict(
        gamma=1.0 + 0.1 * jax.random.normal(ks[1], (w_out,), dtype),
        beta=0.1 * jax.random.normal(ks[2], (w_out,), dtype),
        mean=0.05 * jax.random.normal(ks[3], (w_out,), dtype),
        var=jnp.abs(jax.random.normal(ks[4], (w_out,), dtype)) + 0.5,
    )
    p["wb"] = 0.1 * jax.random.normal(ks[5], (3, 3, w_out, w_out), dtype)
    p["b_bn"] = dict(
        gamma=1.0 + 0.05 * jax.random.normal(ks[6], (w_out,), dtype),
        beta=0.05 * jax.random.normal(ks[7], (w_out,), dtype),
        mean=jnp.zeros((w_out,), dtype),
        var=jnp.ones((w_out,), dtype),
    )
    if proj_block:
        kp = jax.random.split(ks[0], 3)
        p["wp"] = 0.1 * jax.random.normal(kp[0], (w_in, w_out), dtype)  # 1x1 conv
        p["p_bn"] = dict(
            gamma=1.0 + 0.05 * jax.random.normal(kp[1], (w_out,), dtype),
            beta=0.05 * jax.random.normal(kp[2], (w_out,), dtype),
            mean=jnp.zeros((w_out,), dtype),
            var=jnp.ones((w_out,), dtype),
        )
    return p


def _conv_ref(x_nhwc, w_hwio, stride):
    return jax.lax.conv_general_dilated(
        x_nhwc, w_hwio, window_strides=(stride, stride),
        padding=((1, 1), (1, 1)),
        dimension_numbers=("NHWC", "HWIO", "NHWC"))


def res_basic_block_ref(x_nchw, params, w_in, w_out, stride, eps=1e-5):
    proj_block = (w_in != w_out) or (stride != 1)
    x = jnp.transpose(x_nchw, (0, 2, 3, 1))
    sa, ba = fold_bn(**params["a_bn"], eps=eps)
    sb, bb = fold_bn(**params["b_bn"], eps=eps)
    ya = jnp.maximum(_conv_ref(x, params["wa"], stride) * sa + ba, 0.0)
    yb = _conv_ref(ya, params["wb"], 1) * sb + bb
    if proj_block:
        sp, bp = fold_bn(**params["p_bn"], eps=eps)
        skip = jnp.einsum("nhwc,co->nhwo", x[:, ::stride, ::stride, :],
                          params["wp"]) * sp + bp
    else:
        skip = x
    out = jnp.maximum(yb + skip, 0.0)
    return jnp.transpose(out, (0, 3, 1, 2))


# ----------------------------------------------------------------------------
if __name__ == "__main__":
    key = jax.random.PRNGKey(0)
    k_x, k_p, k_x2, k_p2 = jax.random.split(key, 4)

    # Case 1: projection block (w_in != w_out, stride 2) -> fused 1x1 proj skip
    N, w_in, H, W = 2, 4, 16, 16
    w_out, stride = 8, 2
    x = jax.random.normal(k_x, (N, w_in, H, W), jnp.float32)       # NCHW
    params = init_params(k_p, w_in, w_out, proj_block=True)
    out = jax.block_until_ready(res_basic_block(x, params, w_in, w_out, stride))
    ref = res_basic_block_ref(x, params, w_in, w_out, stride)
    assert out.shape == (N, w_out, H // stride, W // stride)
    assert jnp.allclose(out, ref, atol=3e-2, rtol=3e-2), "proj block mismatch"

    # Case 2: identity-skip block (w_in == w_out, stride 1)
    w_in2 = w_out2 = 8
    x2 = jax.random.normal(k_x2, (N, w_in2, H, W), jnp.float32)
    params2 = init_params(k_p2, w_in2, w_out2, proj_block=False)
    out2 = jax.block_until_ready(res_basic_block(x2, params2, w_in2, w_out2, 1))
    ref2 = res_basic_block_ref(x2, params2, w_in2, w_out2, 1)
    assert out2.shape == (N, w_out2, H, W)
    assert jnp.allclose(out2, ref2, atol=3e-2, rtol=3e-2), "identity block mismatch"

    print("KERNEL_OK")
</pallas_src>

<mosaic_0001>
module attributes {stable_mosaic.version = 11 : i64} {
  func.func @_res_basic_block_kernel(%arg0: i32, %arg1: memref<1x18x18x4xbf16, #tpu.memory_space<vmem>>, %arg2: memref<36x128xbf16, #tpu.memory_space<vmem>>, %arg3: memref<1x128xf32, #tpu.memory_space<vmem>>, %arg4: memref<1152x128xbf16, #tpu.memory_space<vmem>>, %arg5: memref<1x128xf32, #tpu.memory_space<vmem>>, %arg6: memref<4x128xbf16, #tpu.memory_space<vmem>>, %arg7: memref<1x8x8x128xf32, #tpu.memory_space<vmem>>, %arg8: memref<10x10x128xbf16, #tpu.memory_space<vmem>>) attributes {dimension_semantics = [#tpu.dimension_semantics<parallel>], iteration_bounds = array<i64: 2>, scalar_prefetch = 0 : i64, scratch_operands = 1 : i64, tpu.core_type = #tpu.core_type<tc>, window_params = [{transform_indices = @transform_0, window_bounds = array<i64: 1, 18, 18, 4>}, {pipeline_mode = #tpu.pipeline_mode<synchronous>, transform_indices = @transform_1, window_bounds = array<i64: 36, 128>}, {pipeline_mode = #tpu.pipeline_mode<synchronous>, transform_indices = @transform_2, window_bounds = array<i64: 1, 128>}, {pipeline_mode = #tpu.pipeline_mode<synchronous>, transform_indices = @transform_3, window_bounds = array<i64: 1152, 128>}, {pipeline_mode = #tpu.pipeline_mode<synchronous>, transform_indices = @transform_4, window_bounds = array<i64: 1, 128>}, {pipeline_mode = #tpu.pipeline_mode<synchronous>, transform_indices = @transform_5, window_bounds = array<i64: 4, 128>}, {transform_indices = @transform_6, window_bounds = array<i64: 1, 8, 8, 128>}]} {
    %cst = arith.constant 0.000000e+00 : f32
    %0 = vector.broadcast %cst : f32 to vector<64x128xf32>
    %c0 = arith.constant 0 : index
    %c0_0 = arith.constant 0 : index
    %c0_1 = arith.constant 0 : index
    %c0_2 = arith.constant 0 : index
    %1 = vector.load %arg1[%c0, %c0_0, %c0_1, %c0_2] : memref<1x18x18x4xbf16, #tpu.memory_space<vmem>>, vector<1x8x8x4xbf16>
    %2 = vector.shape_cast %1 : vector<1x8x8x4xbf16> to vector<8x8x4xbf16>
    %3 = vector.shape_cast %2 : vector<8x8x4xbf16> to vector<64x4xbf16>
    %c0_3 = arith.constant 0 : index
    %c0_4 = arith.constant 0 : index
    %4 = vector.load %arg2[%c0_3, %c0_4] : memref<36x128xbf16, #tpu.memory_space<vmem>>, vector<4x128xbf16>
    %cst_5 = arith.constant dense<0.000000e+00> : vector<64x128xf32>
    %5 = tpu.matmul %3, %4, %cst_5 {dimension_numbers = #tpu.dot_dimension_numbers<[1], [0], [0], [1], [0, 0, 1, 1], [], []>} : vector<64x4xbf16>, vector<4x128xbf16>, vector<64x128xf32> -> vector<64x128xf32>
    %6 = arith.addf %0, %5 : vector<64x128xf32>
    %c0_6 = arith.constant 0 : index
    %c0_7 = arith.constant 0 : index
    %c9 = arith.constant 9 : index
    %c0_8 = arith.constant 0 : index
    %7 = vector.load %arg1[%c0_6, %c0_7, %c9, %c0_8] : memref<1x18x18x4xbf16, #tpu.memory_space<vmem>>, vector<1x8x8x4xbf16>
    %8 = vector.shape_cast %7 : vector<1x8x8x4xbf16> to vector<8x8x4xbf16>
    %9 = vector.shape_cast %8 : vector<8x8x4xbf16> to vector<64x4xbf16>
    %c4 = arith.constant 4 : index
    %c0_9 = arith.constant 0 : index
    %10 = vector.load %arg2[%c4, %c0_9] : memref<36x128xbf16, #tpu.memory_space<vmem>>, vector<4x128xbf16>
    %cst_10 = arith.constant dense<0.000000e+00> : vector<64x128xf32>
    %11 = tpu.matmul %9, %10, %cst_10 {dimension_numbers = #tpu.dot_dimension_numbers<[1], [0], [0], [1], [0, 0, 1, 1], [], []>} : vector<64x4xbf16>, vector<4x128xbf16>, vector<64x128xf32> -> vector<64x128xf32>
    %12 = arith.addf %6, %11 : vector<64x128xf32>
    %c0_11 = arith.constant 0 : index
    %c0_12 = arith.constant 0 : index
    %c1 = arith.constant 1 : index
    %c0_13 = arith.constant 0 : index
    %13 = vector.load %arg1[%c0_11, %c0_12, %c1, %c0_13] : memref<1x18x18x4xbf16, #tpu.memory_space<vmem>>, vector<1x8x8x4xbf16>
    %14 = vector.shape_cast %13 : vector<1x8x8x4xbf16> to vector<8x8x4xbf16>
    %15 = vector.shape_cast %14 : vector<8x8x4xbf16> to vector<64x4xbf16>
    %c8 = arith.constant 8 : index
    %c0_14 = arith.constant 0 : index
    %16 = vector.load %arg2[%c8, %c0_14] : memref<36x128xbf16, #tpu.memory_space<vmem>>, vector<4x128xbf16>
    %cst_15 = arith.constant dense<0.000000e+00> : vector<64x128xf32>
    %17 = tpu.matmul %15, %16, %cst_15 {dimension_numbers = #tpu.dot_dimension_numbers<[1], [0], [0], [1], [0, 0, 1, 1], [], []>} : vector<64x4xbf16>, vector<4x128xbf16>, vector<64x128xf32> -> vector<64x128xf32>
    %18 = arith.addf %12, %17 : vector<64x128xf32>
    %c0_16 = arith.constant 0 : index
    %c9_17 = arith.constant 9 : index
    %c0_18 = arith.constant 0 : index
    %c0_19 = arith.constant 0 : index
    %19 = vector.load %arg1[%c0_16, %c9_17, %c0_18, %c0_19] : memref<1x18x18x4xbf16, #tpu.memory_space<vmem>>, vector<1x8x8x4xbf16>
    %20 = vector.shape_cast %19 : vector<1x8x8x4xbf16> to vector<8x8x4xbf16>
    %21 = vector.shape_cast %20 : vector<8x8x4xbf16> to vector<64x4xbf16>
    %c12 = arith.constant 12 : index
    %c0_20 = arith.constant 0 : index
    %22 = vector.load %arg2[%c12, %c0_20] : memref<36x128xbf16, #tpu.memory_space<vmem>>, vector<4x128xbf16>
    %cst_21 = arith.constant dense<0.000000e+00> : vector<64x128xf32>
    %23 = tpu.matmul %21, %22, %cst_21 {dimension_numbers = #tpu.dot_dimension_numbers<[1], [0], [0], [1], [0, 0, 1, 1], [], []>} : vector<64x4xbf16>, vector<4x128xbf16>, vector<64x128xf32> -> vector<64x128xf32>
    %24 = arith.addf %18, %23 : vector<64x128xf32>
    %c0_22 = arith.constant 0 : index
    %c9_23 = arith.constant 9 : index
    %c9_24 = arith.constant 9 : index
    %c0_25 = arith.constant 0 : index
    %25 = vector.load %arg1[%c0_22, %c9_23, %c9_24, %c0_25] : memref<1x18x18x4xbf16, #tpu.memory_space<vmem>>, vector<1x8x8x4xbf16>
    %26 = vector.shape_cast %25 : vector<1x8x8x4xbf16> to vector<8x8x4xbf16>
    %27 = vector.shape_cast %26 : vector<8x8x4xbf16> to vector<64x4xbf16>
    %c16 = arith.constant 16 : index
    %c0_26 = arith.constant 0 : index
    %28 = vector.load %arg2[%c16, %c0_26] : memref<36x128xbf16, #tpu.memory_space<vmem>>, vector<4x128xbf16>
    %cst_27 = arith.constant dense<0.000000e+00> : vector<64x128xf32>
    %29 = tpu.matmul %27, %28, %cst_27 {dimension_numbers = #tpu.dot_dimension_numbers<[1], [0], [0], [1], [0, 0, 1, 1], [], []>} : vector<64x4xbf16>, vector<4x128xbf16>, vector<64x128xf32> -> vector<64x128xf32>
    %30 = arith.addf %24, %29 : vector<64x128xf32>
    %c0_28 = arith.constant 0 : index
    %c9_29 = arith.constant 9 : index
    %c1_30 = arith.constant 1 : index
    %c0_31 = arith.constant 0 : index
    %31 = vector.load %arg1[%c0_28, %c9_29, %c1_30, %c0_31] : memref<1x18x18x4xbf16, #tpu.memory_space<vmem>>, vector<1x8x8x4xbf16>
    %32 = vector.shape_cast %31 : vector<1x8x8x4xbf16> to vector<8x8x4xbf16>
    %33 = vector.shape_cast %32 : vector<8x8x4xbf16> to vector<64x4xbf16>
    %c20 = arith.constant 20 : index
    %c0_32 = arith.constant 0 : index
    %34 = vector.load %arg2[%c20, %c0_32] : memref<36x128xbf16, #tpu.memory_space<vmem>>, vector<4x128xbf16>
    %cst_33 = arith.constant dense<0.000000e+00> : vector<64x128xf32>
    %35 = tpu.matmul %33, %34, %cst_33 {dimension_numbers = #tpu.dot_dimension_numbers<[1], [0], [0], [1], [0, 0, 1, 1], [], []>} : vector<64x4xbf16>, vector<4x128xbf16>, vector<64x128xf32> -> vector<64x128xf32>
    %36 = arith.addf %30, %35 : vector<64x128xf32>
    %c0_34 = arith.constant 0 : index
    %c1_35 = arith.constant 1 : index
    %c0_36 = arith.constant 0 : index
    %c0_37 = arith.constant 0 : index
    %37 = vector.load %arg1[%c0_34, %c1_35, %c0_36, %c0_37] : memref<1x18x18x4xbf16, #tpu.memory_space<vmem>>, vector<1x8x8x4xbf16>
    %38 = vector.shape_cast %37 : vector<1x8x8x4xbf16> to vector<8x8x4xbf16>
    %39 = vector.shape_cast %38 : vector<8x8x4xbf16> to vector<64x4xbf16>
    %c24 = arith.constant 24 : index
    %c0_38 = arith.constant 0 : index
    %40 = vector.load %arg2[%c24, %c0_38] : memref<36x128xbf16, #tpu.memory_space<vmem>>, vector<4x128xbf16>
    %cst_39 = arith.constant dense<0.000000e+00> : vector<64x128xf32>
    %41 = tpu.matmul %39, %40, %cst_39 {dimension_numbers = #tpu.dot_dimension_numbers<[1], [0], [0], [1], [0, 0, 1, 1], [], []>} : vector<64x4xbf16>, vector<4x128xbf16>, vector<64x128xf32> -> vector<64x128xf32>
    %42 = arith.addf %36, %41 : vector<64x128xf32>
    %c0_40 = arith.constant 0 : index
    %c1_41 = arith.constant 1 : index
    %c9_42 = arith.constant 9 : index
    %c0_43 = arith.constant 0 : index
    %43 = vector.load %arg1[%c0_40, %c1_41, %c9_42, %c0_43] : memref<1x18x18x4xbf16, #tpu.memory_space<vmem>>, vector<1x8x8x4xbf16>
    %44 = vector.shape_cast %43 : vector<1x8x8x4xbf16> to vector<8x8x4xbf16>
    %45 = vector.shape_cast %44 : vector<8x8x4xbf16> to vector<64x4xbf16>
    %c28 = arith.constant 28 : index
    %c0_44 = arith.constant 0 : index
    %46 = vector.load %arg2[%c28, %c0_44] : memref<36x128xbf16, #tpu.memory_space<vmem>>, vector<4x128xbf16>
    %cst_45 = arith.constant dense<0.000000e+00> : vector<64x128xf32>
    %47 = tpu.matmul %45, %46, %cst_45 {dimension_numbers = #tpu.dot_dimension_numbers<[1], [0], [0], [1], [0, 0, 1, 1], [], []>} : vector<64x4xbf16>, vector<4x128xbf16>, vector<64x128xf32> -> vector<64x128xf32>
    %48 = arith.addf %42, %47 : vector<64x128xf32>
    %c0_46 = arith.constant 0 : index
    %c1_47 = arith.constant 1 : index
    %c1_48 = arith.constant 1 : index
    %c0_49 = arith.constant 0 : index
    %49 = vector.load %arg1[%c0_46, %c1_47, %c1_48, %c0_49] : memref<1x18x18x4xbf16, #tpu.memory_space<vmem>>, vector<1x8x8x4xbf16>
    %50 = vector.shape_cast %49 : vector<1x8x8x4xbf16> to vector<8x8x4xbf16>
    %51 = vector.shape_cast %50 : vector<8x8x4xbf16> to vector<64x4xbf16>
    %c32 = arith.constant 32 : index
    %c0_50 = arith.constant 0 : index
    %52 = vector.load %arg2[%c32, %c0_50] : memref<36x128xbf16, #tpu.memory_space<vmem>>, vector<4x128xbf16>
    %cst_51 = arith.constant dense<0.000000e+00> : vector<64x128xf32>
    %53 = tpu.matmul %51, %52, %cst_51 {dimension_numbers = #tpu.dot_dimension_numbers<[1], [0], [0], [1], [0, 0, 1, 1], [], []>} : vector<64x4xbf16>, vector<4x128xbf16>, vector<64x128xf32> -> vector<64x128xf32>
    %54 = arith.addf %48, %53 : vector<64x128xf32>
    %c0_52 = arith.constant 0 : index
    %c0_53 = arith.constant 0 : index
    %55 = vector.load %arg3[%c0_52, %c0_53] : memref<1x128xf32, #tpu.memory_space<vmem>>, vector<1x128xf32>
    %56 = vector.broadcast %55 : vector<1x128xf32> to vector<64x128xf32>
    %57 = arith.addf %54, %56 : vector<64x128xf32>
    %cst_54 = arith.constant 0.000000e+00 : f32
    %58 = vector.broadcast %cst_54 : f32 to vector<64x128xf32>
    %59 = arith.maximumf %57, %58 : vector<64x128xf32>
    %cst_55 = arith.constant 0.000000e+00 : bf16
    %60 = vector.broadcast %cst_55 : bf16 to vector<1x10x128xbf16>
    %cst_56 = arith.constant 0.000000e+00 : bf16
    %61 = vector.broadcast %cst_56 : bf16 to vector<10x1x128xbf16>
    %c0_57 = arith.constant 0 : index
    %c0_58 = arith.constant 0 : index
    %c0_59 = arith.constant 0 : index
    %62 = vector.load %arg8[%c0_57, %c0_58, %c0_59] : memref<10x10x128xbf16, #tpu.memory_space<vmem>>, vector<1x10x128xbf16>
    tpu.vector_store %arg8[%c0_57, %c0_58, %c0_59], %60 {strides = array<i32>} : memref<10x10x128xbf16, #tpu.memory_space<vmem>>, vector<1x10x128xbf16>,
    %c9_60 = arith.constant 9 : index
    %c0_61 = arith.constant 0 : index
    %c0_62 = arith.constant 0 : index
    %63 = vector.load %arg8[%c9_60, %c0_61, %c0_62] : memref<10x10x128xbf16, #tpu.memory_space<vmem>>, vector<1x10x128xbf16>
    tpu.vector_store %arg8[%c9_60, %c0_61, %c0_62], %60 {strides = array<i32>} : memref<10x10x128xbf16, #tpu.memory_space<vmem>>, vector<1x10x128xbf16>,
    %c0_63 = arith.constant 0 : index
    %c0_64 = arith.constant 0 : index
    %c0_65 = arith.constant 0 : index
    %64 = vector.load %arg8[%c0_63, %c0_64, %c0_65] : memref<10x10x128xbf16, #tpu.memory_space<vmem>>, vector<10x1x128xbf16>
    tpu.vector_store %arg8[%c0_63, %c0_64, %c0_65], %61 {strides = array<i32>} : memref<10x10x128xbf16, #tpu.memory_space<vmem>>, vector<10x1x128xbf16>,
    %c0_66 = arith.constant 0 : index
    %c9_67 = arith.constant 9 : index
    %c0_68 = arith.constant 0 : index
    %65 = vector.load %arg8[%c0_66, %c9_67, %c0_68] : memref<10x10x128xbf16, #tpu.memory_space<vmem>>, vector<10x1x128xbf16>
    tpu.vector_store %arg8[%c0_66, %c9_67, %c0_68], %61 {strides = array<i32>} : memref<10x10x128xbf16, #tpu.memory_space<vmem>>, vector<10x1x128xbf16>,
    %66 = vector.shape_cast %59 : vector<64x128xf32> to vector<8x8x128xf32>
    %67 = arith.truncf %66 : vector<8x8x128xf32> to vector<8x8x128xbf16>
    %c1_69 = arith.constant 1 : index
    %c1_70 = arith.constant 1 : index
    %c0_71 = arith.constant 0 : index
    %68 = vector.load %arg8[%c1_69, %c1_70, %c0_71] : memref<10x10x128xbf16, #tpu.memory_space<vmem>>, vector<8x8x128xbf16>
    tpu.vector_store %arg8[%c1_69, %c1_70, %c0_71], %67 {strides = array<i32>} : memref<10x10x128xbf16, #tpu.memory_space<vmem>>, vector<8x8x128xbf16>,
    %cst_72 = arith.constant 0.000000e+00 : f32
    %69 = vector.broadcast %cst_72 : f32 to vector<64x128xf32>
    %c0_73 = arith.constant 0 : index
    %c0_74 = arith.constant 0 : index
    %c0_75 = arith.constant 0 : index
    %70 = vector.load %arg8[%c0_73, %c0_74, %c0_75] : memref<10x10x128xbf16, #tpu.memory_space<vmem>>, vector<8x8x128xbf16>
    %71 = vector.shape_cast %70 : vector<8x8x128xbf16> to vector<64x128xbf16>
    %c0_76 = arith.constant 0 : index
    %c0_77 = arith.constant 0 : index
    %72 = vector.load %arg4[%c0_76, %c0_77] : memref<1152x128xbf16, #tpu.memory_space<vmem>>, vector<128x128xbf16>
    %cst_78 = arith.constant dense<0.000000e+00> : vector<64x128xf32>
    %73 = tpu.matmul %71, %72, %cst_78 {dimension_numbers = #tpu.dot_dimension_numbers<[1], [0], [0], [1], [0, 0, 1, 1], [], []>} : vector<64x128xbf16>, vector<128x128xbf16>, vector<64x128xf32> -> vector<64x128xf32>
    %74 = arith.addf %69, %73 : vector<64x128xf32>
    %c0_79 = arith.constant 0 : index
    %c1_80 = arith.constant 1 : index
    %c0_81 = arith.constant 0 : index
    %75 = vector.load %arg8[%c0_79, %c1_80, %c0_81] : memref<10x10x128xbf16, #tpu.memory_space<vmem>>, vector<8x8x128xbf16>
    %76 = vector.shape_cast %75 : vector<8x8x128xbf16> to vector<64x128xbf16>
    %c128 = arith.constant 128 : index
    %c0_82 = arith.constant 0 : index
    %77 = vector.load %arg4[%c128, %c0_82] : memref<1152x128xbf16, #tpu.memory_space<vmem>>, vector<128x128xbf16>
    %cst_83 = arith.constant dense<0.000000e+00> : vector<64x128xf32>
    %78 = tpu.matmul %76, %77, %cst_83 {dimension_numbers = #tpu.dot_dimension_numbers<[1], [0], [0], [1], [0, 0, 1, 1], [], []>} : vector<64x128xbf16>, vector<128x128xbf16>, vector<64x128xf32> -> vector<64x128xf32>
    %79 = arith.addf %74, %78 : vector<64x128xf32>
    %c0_84 = arith.constant 0 : index
    %c2 = arith.constant 2 : index
    %c0_85 = arith.constant 0 : index
    %80 = vector.load %arg8[%c0_84, %c2, %c0_85] : memref<10x10x128xbf16, #tpu.memory_space<vmem>>, vector<8x8x128xbf16>
    %81 = vector.shape_cast %80 : vector<8x8x128xbf16> to vector<64x128xbf16>
    %c256 = arith.constant 256 : index
    %c0_86 = arith.constant 0 : index
    %82 = vector.load %arg4[%c256, %c0_86] : memref<1152x128xbf16, #tpu.memory_space<vmem>>, vector<128x128xbf16>
    %cst_87 = arith.constant dense<0.000000e+00> : vector<64x128xf32>
    %83 = tpu.matmul %81, %82, %cst_87 {dimension_numbers = #tpu.dot_dimension_numbers<[1], [0], [0], [1], [0, 0, 1, 1], [], []>} : vector<64x128xbf16>, vector<128x128xbf16>, vector<64x128xf32> -> vector<64x128xf32>
    %84 = arith.addf %79, %83 : vector<64x128xf32>
    %c1_88 = arith.constant 1 : index
    %c0_89 = arith.constant 0 : index
    %c0_90 = arith.constant 0 : index
    %85 = vector.load %arg8[%c1_88, %c0_89, %c0_90] : memref<10x10x128xbf16, #tpu.memory_space<vmem>>, vector<8x8x128xbf16>
    %86 = vector.shape_cast %85 : vector<8x8x128xbf16> to vector<64x128xbf16>
    %c384 = arith.constant 384 : index
    %c0_91 = arith.constant 0 : index
    %87 = vector.load %arg4[%c384, %c0_91] : memref<1152x128xbf16, #tpu.memory_space<vmem>>, vector<128x128xbf16>
    %cst_92 = arith.constant dense<0.000000e+00> : vector<64x128xf32>
    %88 = tpu.matmul %86, %87, %cst_92 {dimension_numbers = #tpu.dot_dimension_numbers<[1], [0], [0], [1], [0, 0, 1, 1], [], []>} : vector<64x128xbf16>, vector<128x128xbf16>, vector<64x128xf32> -> vector<64x128xf32>
    %89 = arith.addf %84, %88 : vector<64x128xf32>
    %c1_93 = arith.constant 1 : index
    %c1_94 = arith.constant 1 : index
    %c0_95 = arith.constant 0 : index
    %90 = vector.load %arg8[%c1_93, %c1_94, %c0_95] : memref<10x10x128xbf16, #tpu.memory_space<vmem>>, vector<8x8x128xbf16>
    %91 = vector.shape_cast %90 : vector<8x8x128xbf16> to vector<64x128xbf16>
    %c512 = arith.constant 512 : index
    %c0_96 = arith.constant 0 : index
    %92 = vector.load %arg4[%c512, %c0_96] : memref<1152x128xbf16, #tpu.memory_space<vmem>>, vector<128x128xbf16>
    %cst_97 = arith.constant dense<0.000000e+00> : vector<64x128xf32>
    %93 = tpu.matmul %91, %92, %cst_97 {dimension_numbers = #tpu.dot_dimension_numbers<[1], [0], [0], [1], [0, 0, 1, 1], [], []>} : vector<64x128xbf16>, vector<128x128xbf16>, vector<64x128xf32> -> vector<64x128xf32>
    %94 = arith.addf %89, %93 : vector<64x128xf32>
    %c1_98 = arith.constant 1 : index
    %c2_99 = arith.constant 2 : index
    %c0_100 = arith.constant 0 : index
    %95 = vector.load %arg8[%c1_98, %c2_99, %c0_100] : memref<10x10x128xbf16, #tpu.memory_space<vmem>>, vector<8x8x128xbf16>
    %96 = vector.shape_cast %95 : vector<8x8x128xbf16> to vector<64x128xbf16>
    %c640 = arith.constant 640 : index
    %c0_101 = arith.constant 0 : index
    %97 = vector.load %arg4[%c640, %c0_101] : memref<1152x128xbf16, #tpu.memory_space<vmem>>, vector<128x128xbf16>
    %cst_102 = arith.constant dense<0.000000e+00> : vector<64x128xf32>
    %98 = tpu.matmul %96, %97, %cst_102 {dimension_numbers = #tpu.dot_dimension_numbers<[1], [0], [0], [1], [0, 0, 1, 1], [], []>} : vector<64x128xbf16>, vector<128x128xbf16>, vector<64x128xf32> -> vector<64x128xf32>
    %99 = arith.addf %94, %98 : vector<64x128xf32>
    %c2_103 = arith.constant 2 : index
    %c0_104 = arith.constant 0 : index
    %c0_105 = arith.constant 0 : index
    %100 = vector.load %arg8[%c2_103, %c0_104, %c0_105] : memref<10x10x128xbf16, #tpu.memory_space<vmem>>, vector<8x8x128xbf16>
    %101 = vector.shape_cast %100 : vector<8x8x128xbf16> to vector<64x128xbf16>
    %c768 = arith.constant 768 : index
    %c0_106 = arith.constant 0 : index
    %102 = vector.load %arg4[%c768, %c0_106] : memref<1152x128xbf16, #tpu.memory_space<vmem>>, vector<128x128xbf16>
    %cst_107 = arith.constant dense<0.000000e+00> : vector<64x128xf32>
    %103 = tpu.matmul %101, %102, %cst_107 {dimension_numbers = #tpu.dot_dimension_numbers<[1], [0], [0], [1], [0, 0, 1, 1], [], []>} : vector<64x128xbf16>, vector<128x128xbf16>, vector<64x128xf32> -> vector<64x128xf32>
    %104 = arith.addf %99, %103 : vector<64x128xf32>
    %c2_108 = arith.constant 2 : index
    %c1_109 = arith.constant 1 : index
    %c0_110 = arith.constant 0 : index
    %105 = vector.load %arg8[%c2_108, %c1_109, %c0_110] : memref<10x10x128xbf16, #tpu.memory_space<vmem>>, vector<8x8x128xbf16>
    %106 = vector.shape_cast %105 : vector<8x8x128xbf16> to vector<64x128xbf16>
    %c896 = arith.constant 896 : index
    %c0_111 = arith.constant 0 : index
    %107 = vector.load %arg4[%c896, %c0_111] : memref<1152x128xbf16, #tpu.memory_space<vmem>>, vector<128x128xbf16>
    %cst_112 = arith.constant dense<0.000000e+00> : vector<64x128xf32>
    %108 = tpu.matmul %106, %107, %cst_112 {dimension_numbers = #tpu.dot_dimension_numbers<[1], [0], [0], [1], [0, 0, 1, 1], [], []>} : vector<64x128xbf16>, vector<128x128xbf16>, vector<64x128xf32> -> vector<64x128xf32>
    %109 = arith.addf %104, %108 : vector<64x128xf32>
    %c2_113 = arith.constant 2 : index
    %c2_114 = arith.constant 2 : index
    %c0_115 = arith.constant 0 : index
    %110 = vector.load %arg8[%c2_113, %c2_114, %c0_115] : memref<10x10x128xbf16, #tpu.memory_space<vmem>>, vector<8x8x128xbf16>
    %111 = vector.shape_cast %110 : vector<8x8x128xbf16> to vector<64x128xbf16>
    %c1024 = arith.constant 1024 : index
    %c0_116 = arith.constant 0 : index
    %112 = vector.load %arg4[%c1024, %c0_116] : memref<1152x128xbf16, #tpu.memory_space<vmem>>, vector<128x128xbf16>
    %cst_117 = arith.constant dense<0.000000e+00> : vector<64x128xf32>
    %113 = tpu.matmul %111, %112, %cst_117 {dimension_numbers = #tpu.dot_dimension_numbers<[1], [0], [0], [1], [0, 0, 1, 1], [], []>} : vector<64x128xbf16>, vector<128x128xbf16>, vector<64x128xf32> -> vector<64x128xf32>
    %114 = arith.addf %109, %113 : vector<64x128xf32>
    %c0_118 = arith.constant 0 : index
    %c9_119 = arith.constant 9 : index
    %c9_120 = arith.constant 9 : index
    %c0_121 = arith.constant 0 : index
    %115 = vector.load %arg1[%c0_118, %c9_119, %c9_120, %c0_121] : memref<1x18x18x4xbf16, #tpu.memory_space<vmem>>, vector<1x8x8x4xbf16>
    %116 = vector.shape_cast %115 : vector<1x8x8x4xbf16> to vector<8x8x4xbf16>
    %117 = vector.shape_cast %116 : vector<8x8x4xbf16> to vector<64x4xbf16>
    %c0_122 = arith.constant 0 : index
    %c0_123 = arith.constant 0 : index
    %118 = vector.load %arg6[%c0_122, %c0_123] : memref<4x128xbf16, #tpu.memory_space<vmem>>, vector<4x128xbf16>
    %cst_124 = arith.constant dense<0.000000e+00> : vector<64x128xf32>
    %119 = tpu.matmul %117, %118, %cst_124 {dimension_numbers = #tpu.dot_dimension_numbers<[1], [0], [0], [1], [0, 0, 1, 1], [], []>} : vector<64x4xbf16>, vector<4x128xbf16>, vector<64x128xf32> -> vector<64x128xf32>
    %120 = arith.addf %114, %119 : vector<64x128xf32>
    %c0_125 = arith.constant 0 : index
    %c0_126 = arith.constant 0 : index
    %121 = vector.load %arg5[%c0_125, %c0_126] : memref<1x128xf32, #tpu.memory_space<vmem>>, vector<1x128xf32>
    %122 = vector.broadcast %121 : vector<1x128xf32> to vector<64x128xf32>
    %123 = arith.addf %120, %122 : vector<64x128xf32>
    %cst_127 = arith.constant 0.000000e+00 : f32
    %124 = vector.broadcast %cst_127 : f32 to vector<64x128xf32>
    %125 = arith.maximumf %123, %124 : vector<64x128xf32>
    %126 = vector.shape_cast %125 : vector<64x128xf32> to vector<8x8x128xf32>
    %c0_128 = arith.constant 0 : index
    %c0_129 = arith.constant 0 : index
    %c0_130 = arith.constant 0 : index
    %c0_131 = arith.constant 0 : index
    %127 = vector.load %arg7[%c0_128, %c0_129, %c0_130, %c0_131] : memref<1x8x8x128xf32, #tpu.memory_space<vmem>>, vector<1x8x8x128xf32>
    %128 = vector.shape_cast %127 : vector<1x8x8x128xf32> to vector<8x8x128xf32>
    %129 = vector.shape_cast %126 : vector<8x8x128xf32> to vector<1x8x8x128xf32>
    tpu.vector_store %arg7[%c0_128, %c0_129, %c0_130, %c0_131], %129 {strides = array<i32>} : memref<1x8x8x128xf32, #tpu.memory_space<vmem>>, vector<1x8x8x128xf32>,
    return
  }
  func.func @transform_0(%arg0: i32) -> (i32, i32, i32, i32) {
    %c0_i32 = arith.constant 0 : i32
    %c0_i32_0 = arith.constant 0 : i32
    %c0_i32_1 = arith.constant 0 : i32
    %c0_i32_2 = arith.constant 0 : i32
    return %arg0, %c0_i32, %c0_i32_0, %c0_i32_1 : i32, i32, i32, i32
  }
  func.func @transform_1(%arg0: i32) -> (i32, i32) {
    %c0_i32 = arith.constant 0 : i32
    %c0_i32_0 = arith.constant 0 : i32
    %c0_i32_1 = arith.constant 0 : i32
    return %c0_i32, %c0_i32_0 : i32, i32
  }
  func.func @transform_2(%arg0: i32) -> (i32, i32) {
    %c0_i32 = arith.constant 0 : i32
    %c0_i32_0 = arith.constant 0 : i32
    %c0_i32_1 = arith.constant 0 : i32
    return %c0_i32, %c0_i32_0 : i32, i32
  }
  func.func @transform_3(%arg0: i32) -> (i32, i32) {
    %c0_i32 = arith.constant 0 : i32
    %c0_i32_0 = arith.constant 0 : i32
    %c0_i32_1 = arith.constant 0 : i32
    return %c0_i32, %c0_i32_0 : i32, i32
  }
  func.func @transform_4(%arg0: i32) -> (i32, i32) {
    %c0_i32 = arith.constant 0 : i32
    %c0_i32_0 = arith.constant 0 : i32
    %c0_i32_1 = arith.constant 0 : i32
    return %c0_i32, %c0_i32_0 : i32, i32
  }
  func.func @transform_5(%arg0: i32) -> (i32, i32) {
    %c0_i32 = arith.constant 0 : i32
    %c0_i32_0 = arith.constant 0 : i32
    %c0_i32_1 = arith.constant 0 : i32
    return %c0_i32, %c0_i32_0 : i32, i32
  }
  func.func @transform_6(%arg0: i32) -> (i32, i32, i32, i32) {
    %c0_i32 = arith.constant 0 : i32
    %c0_i32_0 = arith.constant 0 : i32
    %c0_i32_1 = arith.constant 0 : i32
    %c0_i32_2 = arith.constant 0 : i32
    return %arg0, %c0_i32, %c0_i32_0, %c0_i32_1 : i32, i32, i32, i32
  }
}

</mosaic_0001>

<llo_original>
// kernel: tpu_custom_call.1
$region0: #{tpu_custom_call.1}
  #allocation0 [shape = 'u32[]', space=smem, size = 0x4, offset = 0x4, fixed_abs, tag = 'smem constant byte address 0x4 - core index']
  #allocation1 [shape = 'u32[144,128]{1,0:T(1,128)}', space=vmem, size = 0x12000, scoped, tag = 'internal scratch']
  #allocation2 [shape = 'bf16[10,10,128]{2,1,0:T(8,128)(2,1)}', space=vmem, size = 0xa000, scoped, tag = 'scratch operand']
  %s0 = inlined_call_operand.vmem [shape: bf16[2,18,18,4], index: 0, kind: input, shape index: {}]
  %s1 = inlined_call_operand.vmem [shape: bf16[36,128], index: 1, kind: input, shape index: {}]
  %s2 = inlined_call_operand.vmem [shape: f32[1,128], index: 2, kind: input, shape index: {}]
  %s3 = inlined_call_operand.hbm [shape: bf16[1152,128], index: 3, kind: input, shape index: {}]
  %s4 = inlined_call_operand.vmem [shape: f32[1,128], index: 4, kind: input, shape index: {}]
  %s5 = inlined_call_operand.vmem [shape: bf16[4,128], index: 5, kind: input, shape index: {}]
  %s6 = inlined_call_operand.hbm [shape: f32[2,8,8,128], index: 6, kind: output, shape index: {}]
  %s7 = sld [smem:[#allocation0]]
  $region61: #{tpu_custom_call.1} parent=0
    _
  %s9 = ssub.s32 1, %s7
  %s10 = scalar_select 0, %s9, %s7
  $region1: #{tpu_custom_call.1} parent=0
    #allocation3 [shape = 'u8[294912]{0}', space=vmem, size = 0x48000, scoped, tag = 'input window, operand 3, single buffered']
    #allocation4 [shape = 's32[2]{0}', space=sflag, size = 0x8, scoped, tag = 'scoped memory for tpu_custom_call.1']
    #allocation5 [shape = 's32[2]{0}', space=sflag, size = 0x8, scoped, tag = 'scoped memory for tpu_custom_call.1']
    #allocation6 [shape = 'u8[65536]{0}', space=vmem, size = 0x10000, scoped, tag = 'output window, operand 0']
    %11 = vsyncpa [#allocation4], 0
    %12 = vsyncpa [#allocation5], 0
    %s13 = scalar_lea.sflag [#allocation5], 1
    %14 = vsyncpa %s13, 0
    loop: start=0, step=1, limit=4
    $region2: #{tpu_custom_call.1} parent=1 // loop_pre_header
      _
    $region3: #{tpu_custom_call.1} parent=1 // loop_header
      %s16 = sphi 0, %s20
      %p17 = scmp.ge.s32.totalorder %s16, 4
      %s26 = sphi 0, %s28
      %s29 = sphi 0, %s26
      %s30 = sphi 0, %s29
      %s46 = sphi 0, %s30
      %s50 = sphi 0, %s50
      %s52 = sphi 0, %s50
      %s53 = sphi 0, %s52
      %s67 = sphi 0, %s53
      %s71 = sphi 0, %s71
      %s73 = sphi 0, %s71
      %s74 = sphi 0, %s73
      %s88 = sphi 0, %s74
      %s92 = sphi 0, %s92
      %s94 = sphi 0, %s92
      %s95 = sphi 0, %s94
      %s109 = sphi 0, %s95
      %s113 = sphi 0, %s113
      %s115 = sphi 0, %s113
      %s116 = sphi 0, %s115
      %s130 = sphi 0, %s116
      %s134 = sphi 0, %s134
      %s136 = sphi 0, %s134
      %s137 = sphi 0, %s136
      %s151 = sphi 0, %s137
      %s157 = sphi 0, %s159
      %s160 = sphi 0, %s157
      %s161 = sphi 0, %s160
      %s177 = sphi 0, %s161
    $region4: #{tpu_custom_call.1} parent=1 // loop_header_branch
      %19 = sbr.rel (%p17) target = $region8
    $region5: #{tpu_custom_call.1} parent=1 // loop_body
      %s21 = ssub.s32 %s16, 1
      %s22 = ssub.s32 %s16, 2
      %s23 = sadd.s32 %s16, 1
      %s24 = ssub.s32 %s16, %s23
      %p25 = scmp.eq.s32.totalorder %s24, 0
      %s27 = sadd.s32 %s26, 1
      %s28 = scalar_select %p25, %s26, %s27
      %p31 = pneg %p25
      %p32 = scmp.eq.s32.totalorder %s16, 1
      %p33 = por %p31, %p32
      %p34 = scmp.ne.s32.totalorder %s26, %s29
      %p35 = scmp.eq.s32.totalorder %s16, 0
      %p36 = por %p34, %p35
      %p37 = scmp.ne.s32.totalorder %s26, %s29
      %p38 = scmp.eq.s32.totalorder %s21, 1
      %p39 = por %p37, %p38
      %p40 = scmp.ne.s32.totalorder %s29, %s30
      %p41 = scmp.eq.s32.totalorder %s21, 0
      %p42 = por %p40, %p41
      %p43 = scmp.ne.s32.totalorder %s29, %s30
      %p44 = scmp.eq.s32.totalorder %s22, 1
      %p45 = por %p43, %p44
      %p47 = scmp.ne.s32.totalorder %s30, %s46
      %p48 = scmp.eq.s32.totalorder %s22, 0
      %p49 = por %p47, %p48
      %s51 = sadd.s32 %s50, 1
      %p54 = scmp.eq.s32.totalorder %s16, 1
      %p55 = scmp.ne.s32.totalorder %s50, %s52
      %p56 = scmp.eq.s32.totalorder %s16, 0
      %p57 = por %p55, %p56
      %p58 = scmp.ne.s32.totalorder %s50, %s52
      %p59 = scmp.eq.s32.totalorder %s21, 1
      %p60 = por %p58, %p59
      %p61 = scmp.ne.s32.totalorder %s52, %s53
      %p62 = scmp.eq.s32.totalorder %s21, 0
      %p63 = por %p61, %p62
      %p64 = scmp.ne.s32.totalorder %s52, %s53
      %p65 = scmp.eq.s32.totalorder %s22, 1
      %p66 = por %p64, %p65
      %p68 = scmp.ne.s32.totalorder %s53, %s67
      %p69 = scmp.eq.s32.totalorder %s22, 0
      %p70 = por %p68, %p69
      %s72 = sadd.s32 %s71, 1
      %p75 = scmp.eq.s32.totalorder %s16, 1
      %p76 = scmp.ne.s32.totalorder %s71, %s73
      %p77 = scmp.eq.s32.totalorder %s16, 0
      %p78 = por %p76, %p77
      %p79 = scmp.ne.s32.totalorder %s71, %s73
      %p80 = scmp.eq.s32.totalorder %s21, 1
      %p81 = por %p79, %p80
      %p82 = scmp.ne.s32.totalorder %s73, %s74
      %p83 = scmp.eq.s32.totalorder %s21, 0
      %p84 = por %p82, %p83
      %p85 = scmp.ne.s32.totalorder %s73, %s74
      %p86 = scmp.eq.s32.totalorder %s22, 1
      %p87 = por %p85, %p86
      %p89 = scmp.ne.s32.totalorder %s74, %s88
      %p90 = scmp.eq.s32.totalorder %s22, 0
      %p91 = por %p89, %p90
      %s93 = sadd.s32 %s92, 1
      %p96 = scmp.eq.s32.totalorder %s16, 1
      %p97 = scmp.ne.s32.totalorder %s92, %s94
      %p98 = scmp.eq.s32.totalorder %s16, 0
      %p99 = por %p97, %p98
      %p100 = scmp.ne.s32.totalorder %s92, %s94
      %p101 = scmp.eq.s32.totalorder %s21, 1
      %p102 = por %p100, %p101
      %p103 = scmp.ne.s32.totalorder %s94, %s95
      %p104 = scmp.eq.s32.totalorder %s21, 0
      %p105 = por %p103, %p104
      %p106 = scmp.ne.s32.totalorder %s94, %s95
      %p107 = scmp.eq.s32.totalorder %s22, 1
      %p108 = por %p106, %p107
      %p110 = scmp.ne.s32.totalorder %s95, %s109
      %p111 = scmp.eq.s32.totalorder %s22, 0
      %p112 = por %p110, %p111
      %s114 = sadd.s32 %s113, 1
      %p117 = scmp.eq.s32.totalorder %s16, 1
      %p118 = scmp.ne.s32.totalorder %s113, %s115
      %p119 = scmp.eq.s32.totalorder %s16, 0
      %p120 = por %p118, %p119
      %p121 = scmp.ne.s32.totalorder %s113, %s115
      %p122 = scmp.eq.s32.totalorder %s21, 1
      %p123 = por %p121, %p122
      %p124 = scmp.ne.s32.totalorder %s115, %s116
      %p125 = scmp.eq.s32.totalorder %s21, 0
      %p126 = por %p124, %p125
      %p127 = scmp.ne.s32.totalorder %s115, %s116
      %p128 = scmp.eq.s32.totalorder %s22, 1
      %p129 = por %p127, %p128
      %p131 = scmp.ne.s32.totalorder %s116, %s130
      %p132 = scmp.eq.s32.totalorder %s22, 0
      %p133 = por %p131, %p132
      %s135 = sadd.s32 %s134, 1
      %p138 = scmp.eq.s32.totalorder %s16, 1
      %p139 = scmp.ne.s32.totalorder %s134, %s136
      %p140 = scmp.eq.s32.totalorder %s16, 0
      %p141 = por %p139, %p140
      %p142 = scmp.ne.s32.totalorder %s134, %s136
      %p143 = scmp.eq.s32.totalorder %s21, 1
      %p144 = por %p142, %p143
      %p145 = scmp.ne.s32.totalorder %s136, %s137
      %p146 = scmp.eq.s32.totalorder %s21, 0
      %p147 = por %p145, %p146
      %p148 = scmp.ne.s32.totalorder %s136, %s137
      %p149 = scmp.eq.s32.totalorder %s22, 1
      %p150 = por %p148, %p149
      %p152 = scmp.ne.s32.totalorder %s137, %s151
      %p153 = scmp.eq.s32.totalorder %s22, 0
      %p154 = por %p152, %p153
      %s155 = ssub.s32 %s16, %s23
      %p156 = scmp.eq.s32.totalorder %s155, 0
      %s158 = sadd.s32 %s157, 1
      %s159 = scalar_select %p156, %s157, %s158
      %p162 = pneg %p156
      %p163 = scmp.eq.s32.totalorder %s16, 1
      %p164 = por %p162, %p163
      %p165 = scmp.ne.s32.totalorder %s157, %s160
      %p166 = scmp.eq.s32.totalorder %s16, 0
      %p167 = por %p165, %p166
      %p168 = scmp.ne.s32.totalorder %s157, %s160
      %p169 = scmp.eq.s32.totalorder %s21, 1
      %p170 = por %p168, %p169
      %p171 = scmp.ne.s32.totalorder %s160, %s161
      %p172 = scmp.eq.s32.totalorder %s21, 0
      %p173 = por %p171, %p172
      %p174 = scmp.ne.s32.totalorder %s160, %s161
      %p175 = scmp.eq.s32.totalorder %s22, 1
      %p176 = por %p174, %p175
      %p178 = scmp.ne.s32.totalorder %s161, %s177
      %p179 = scmp.eq.s32.totalorder %s22, 0
      %p180 = por %p178, %p179
      %p181 = scmp.le.s32.totalorder 1, %s16
      %p182 = scmp.lt.s32.totalorder %s16, 3
      %p183 = pnand %p181, %p182
      %p184 = pneg %p183
      // Predicated region
      $region9: #{tpu_custom_call.1} parent=5 // pred_check
        _
      $region10: #{tpu_custom_call.1} parent=5 // pred_check_branch
        %186 = sbr.rel (%p183) target = $region12
      $region11: #{tpu_custom_call.1} parent=5 // pred_region
        %s187 = ssub.s32 %s16, 1
        // Predicated region
        $region13: #{tpu_custom_call.1} parent=11 // pred_check
          %p188 = pneg %p63
        $region14: #{tpu_custom_call.1} parent=11 // pred_check_branch
          %190 = sbr.rel (%p188) target = $region16
        $region15: #{tpu_custom_call.1} parent=11 // pred_region
          _
        $region16: #{tpu_custom_call.1} parent=11 // pred_fallthru
          _
        // Predicated region
        $region17: #{tpu_custom_call.1} parent=11 // pred_check
          %p191 = pneg %p84
        $region18: #{tpu_custom_call.1} parent=11 // pred_check_branch
          %193 = sbr.rel (%p191) target = $region20
        $region19: #{tpu_custom_call.1} parent=11 // pred_region
          _
        $region20: #{tpu_custom_call.1} parent=11 // pred_fallthru
          _
        // Predicated region
        $region21: #{tpu_custom_call.1} parent=11 // pred_check
          %p194 = pneg %p105
        $region22: #{tpu_custom_call.1} parent=11 // pred_check_branch
          %196 = sbr.rel (%p194) target = $region24
        $region23: #{tpu_custom_call.1} parent=11 // pred_region
          %s198 = ssub.s32 9216, 9216
          %199 = vsyncadd [#allocation4], %s198
          %s200 = sshll.u32 [#allocation3], 4
          %s201 = int_to_ptr.vmem [resolvable:$true] %s200
          %206 = dma.hbm_to_vmem [thread:$0]  %s3, 9216, %s201, [#allocation4], 64, 64, 4
        $region24: #{tpu_custom_call.1} parent=11 // pred_fallthru
          _
        // Predicated region
        $region25: #{tpu_custom_call.1} parent=11 // pred_check
          %p207 = pneg %p126
        $region26: #{tpu_custom_call.1} parent=11 // pred_check_branch
          %209 = sbr.rel (%p207) target = $region28
        $region27: #{tpu_custom_call.1} parent=11 // pred_region
          _
        $region28: #{tpu_custom_call.1} parent=11 // pred_fallthru
          _
        // Predicated region
        $region29: #{tpu_custom_call.1} parent=11 // pred_check
          %p210 = pneg %p147
        $region30: #{tpu_custom_call.1} parent=11 // pred_check_branch
          %212 = sbr.rel (%p210) target = $region32
        $region31: #{tpu_custom_call.1} parent=11 // pred_region
          _
        $region32: #{tpu_custom_call.1} parent=11 // pred_fallthru
          _
      $region12: #{tpu_custom_call.1} parent=5 // pred_fallthru
        _
      %p213 = scmp.lt.s32.totalorder %s16, 2
      // Predicated region
      $region33: #{tpu_custom_call.1} parent=5 // pred_check
        %p214 = pneg %p213
      $region34: #{tpu_custom_call.1} parent=5 // pred_check_branch
        %216 = sbr.rel (%p214) target = $region36
      $region35: #{tpu_custom_call.1} parent=5 // pred_region
        // Predicated region
        $region37: #{tpu_custom_call.1} parent=35 // pred_check
          %p217 = pneg %p36
        $region38: #{tpu_custom_call.1} parent=35 // pred_check_branch
          %219 = sbr.rel (%p217) target = $region40
        $region39: #{tpu_custom_call.1} parent=35 // pred_region
          %p220 = scmp.lt.s32.totalorder %s16, 1
          %s221 = scalar_select %p220, %s16, 1
          %s222 = smul.addr %s221, 54
          %s223 = smul.addr %s222, 4
          %s224 = scalar_lea.vmem %s0, %s223
        $region40: #{tpu_custom_call.1} parent=35 // pred_fallthru
          _
      $region36: #{tpu_custom_call.1} parent=5 // pred_fallthru
        _
      %p225 = scmp.le.s32.totalorder 1, %s16
      %p226 = scmp.lt.s32.totalorder %s16, 3
      %p227 = pnand %p225, %p226
      %p228 = pneg %p227
      // Predicated region
      $region41: #{tpu_custom_call.1} parent=5 // pred_check
        _
      $region42: #{tpu_custom_call.1} parent=5 // pred_check_branch
        %230 = sbr.rel (%p227) target = $region44
      $region43: #{tpu_custom_call.1} parent=5 // pred_region
        %s231 = ssub.s32 %s16, 1
        // Predicated region
        $region45: #{tpu_custom_call.1} parent=43 // pred_check
          %p232 = pneg %p105
        $region46: #{tpu_custom_call.1} parent=43 // pred_check_branch
          %234 = sbr.rel (%p232) target = $region48
        $region47: #{tpu_custom_call.1} parent=43 // pred_region
          %235 = dma.done [#allocation4], 9216
        $region48: #{tpu_custom_call.1} parent=43 // pred_fallthru
          _
        %p236 = scmp.lt.s32.totalorder %s21, 1
        %s237 = scalar_select %p236, %s21, 1
        %s238 = smul.addr %s237, 54
        %s239 = smul.addr %s238, 4
        %s240 = scalar_lea.vmem %s0, %s239
        %p241 = pneg %p42
        %p242 = pneg %p39
        %p243 = pneg %p63
        %p244 = pneg %p60
        %p245 = pneg %p84
        %p246 = pneg %p81
        %p247 = pneg %p105
        %p248 = pneg %p102
        %p249 = pneg %p126
        %p250 = pneg %p123
        %p251 = pneg %p147
        %p252 = pneg %p144
        %p253 = pneg %p173
        %p254 = pneg %p170
        %s255 = sand.u32 %s160, 1
        %s256 = scalar_lea.sflag [#allocation5], %s255
        %s257 = sand.u32 %s160, 1
        %s258 = smul.addr %s257, 64
        %s259 = scalar_lea.vmem [#allocation6], %s258
        %p260 = scmp.lt.s32.totalorder %s21, 1
        %s261 = scalar_select %p260, %s21, 1
        %s262 = smul.addr %s261, 54
        %s263 = smul.addr %s262, 4
        %s264 = scalar_lea.vmem %s0, %s263
        %v266 = vld [vmem:[%s264] sm:$0xf]
        %v267 = vld [vmem:[%s264 + $0xc] sm:$0xf]
        %v268 = vld [vmem:[%s264 + $0x18] sm:$0xf]
        %v269 = vld [vmem:[%s264 + $0x24] sm:$0xf]
        %v270 = vld [vmem:[%s264 + $0x30] sm:$0xf]
        %v271 = vld [vmem:[%s264 + $0x3c] sm:$0xf]
        %v272 = vld [vmem:[%s264 + $0x48] sm:$0xf]
        %v273 = vld [vmem:[%s264 + $0x54] sm:$0xf]
        %v274 = vld [vmem:[%s1] sm:$0x3]
        %v275 = vld [vmem:[%s264 + $0x4] sm:$0xf]
        %v276 = vld [vmem:[%s264 + $0x8] sm:$0x1]
        %v277 = vld [vmem:[%s264 + $0x10] sm:$0xf]
        %v278 = vld [vmem:[%s264 + $0x14] sm:$0x1]
        %v279 = vld [vmem:[%s264 + $0x1c] sm:$0xf]
        %v280 = vld [vmem:[%s264 + $0x20] sm:$0x1]
        %v281 = vld [vmem:[%s264 + $0x28] sm:$0xf]
        %v282 = vld [vmem:[%s264 + $0x2c] sm:$0x1]
        %v283 = vld [vmem:[%s264 + $0x34] sm:$0xf]
        %v284 = vld [vmem:[%s264 + $0x38] sm:$0x1]
        %v285 = vld [vmem:[%s264 + $0x40] sm:$0xf]
        %v286 = vld [vmem:[%s264 + $0x44] sm:$0x1]
        %v287 = vld [vmem:[%s264 + $0x4c] sm:$0xf]
        %v288 = vld [vmem:[%s264 + $0x50] sm:$0x1]
        %v289 = vld [vmem:[%s264 + $0x58] sm:$0xf]
        %v290 = vld [vmem:[%s264 + $0x5c] sm:$0x1]
        %vm291 = vsmask.f32 3328
        %vm292 = vsmask.f32 7440
        %vm293 = vmor %vm291, %vm292
        %v295 = vshrl.u32 %v275, 16
        %v297 = vrot.slane %v295, 4
        %v298 = vshll.u32 %v275, 16
        %v300 = vrot.slane %v298, 5
        %v301 = vor.u32 %v297, %v300
        %v302 = vrot.slane %v301, 4
        %v304 = vshll.u32 %v276, 16
        %v306 = vrot.slane %v304, 5
        %v307 = vsel %vm293, %v302, %v306
        %v309 = vshrl.u32 %v277, 16
        %v311 = vrot.slane %v309, 4
        %v312 = vshll.u32 %v277, 16
        %v314 = vrot.slane %v312, 5
        %v315 = vor.u32 %v311, %v314
        %v316 = vrot.slane %v315, 4
        %v318 = vshll.u32 %v278, 16
        %v320 = vrot.slane %v318, 5
        %v321 = vsel %vm293, %v316, %v320
        %v323 = vshrl.u32 %v279, 16
        %v325 = vrot.slane %v323, 4
        %v326 = vshll.u32 %v279, 16
        %v328 = vrot.slane %v326, 5
        %v329 = vor.u32 %v325, %v328
        %v330 = vrot.slane %v329, 4
        %v332 = vshll.u32 %v280, 16
        %v334 = vrot.slane %v332, 5
        %v335 = vsel %vm293, %v330, %v334
        %v337 = vshrl.u32 %v281, 16
        %v339 = vrot.slane %v337, 4
        %v340 = vshll.u32 %v281, 16
        %v342 = vrot.slane %v340, 5
        %v343 = vor.u32 %v339, %v342
        %v344 = vrot.slane %v343, 4
        %v346 = vshll.u32 %v282, 16
        %v348 = vrot.slane %v346, 5
        %v349 = vsel %vm293, %v344, %v348
        %v351 = vshrl.u32 %v283, 16
        %v353 = vrot.slane %v351, 4
        %v354 = vshll.u32 %v283, 16
        %v356 = vrot.slane %v354, 5
        %v357 = vor.u32 %v353, %v356
        %v358 = vrot.slane %v357, 4
        %v360 = vshll.u32 %v284, 16
        %v362 = vrot.slane %v360, 5
        %v363 = vsel %vm293, %v358, %v362
        %v365 = vshrl.u32 %v285, 16
        %v367 = vrot.slane %v365, 4
        %v368 = vshll.u32 %v285, 16
        %v370 = vrot.slane %v368, 5
        %v371 = vor.u32 %v367, %v370
        %v372 = vrot.slane %v371, 4
        %v374 = vshll.u32 %v286, 16
        %v376 = vrot.slane %v374, 5
        %v377 = vsel %vm293, %v372, %v376
        %v379 = vshrl.u32 %v287, 16
        %v381 = vrot.slane %v379, 4
        %v382 = vshll.u32 %v287, 16
        %v384 = vrot.slane %v382, 5
        %v385 = vor.u32 %v381, %v384
        %v386 = vrot.slane %v385, 4
        %v388 = vshll.u32 %v288, 16
        %v390 = vrot.slane %v388, 5
        %v391 = vsel %vm293, %v386, %v390
        %v393 = vshrl.u32 %v289, 16
        %v395 = vrot.slane %v393, 4
        %v396 = vshll.u32 %v289, 16
        %v398 = vrot.slane %v396, 5
        %v399 = vor.u32 %v395, %v398
        %v400 = vrot.slane %v399, 4
        %v402 = vshll.u32 %v290, 16
        %v404 = vrot.slane %v402, 5
        %v405 = vsel %vm293, %v400, %v404
        %v406 = vld [vmem:[%s1] sm:$0xc]
        %v407 = vunpack.c.l.b16 %v307
        %v408 = vunpack.c.l.b16 %v321
        %v409 = vunpack.c.l.b16 %v335
        %v410 = vunpack.c.l.b16 %v349
        %v411 = vunpack.c.l.b16 %v363
        %v412 = vunpack.c.l.b16 %v377
        %v413 = vunpack.c.l.b16 %v391
        %v414 = vunpack.c.l.b16 %v405
        %v415 = vpack.c.b16 %v408, %v407
        %v416 = vpack.c.b16 %v410, %v409
        %v417 = vpack.c.b16 %v412, %v411
        %v418 = vpack.c.b16 %v414, %v413
        %v420 = vunpack.c.l.b16 %v406
        %v421 = vpack.c.b16 %v420, %v420
        %v422 = vrot.slane %v421, 2
        %vm423 = vcmask 31744
        %v425 = vsel %vm423, %v415, 0
        %v428 = vsel %vm423, %v416, 0
        %v431 = vsel %vm423, %v417, 0
        %v434 = vsel %vm423, %v418, 0
        %vm436 = vcmask 1041408
        %v438 = vsel %vm436, %v422, 0
        %440 = vmatprep.subr.bf16.mxu0 0
        %441 = vmatpush1.bf16.msra.mxu0 %v438
        %442 = vmatprep.subr.bf16.mxu0 0
        %443 = vmatpush1.bf16.msra.mxu0 0
        %444 = vmatprep.subr.bf16.mxu0 0
        %445 = vmatpush1.bf16.msra.mxu0 0
        %446 = vmatprep.subr.bf16.mxu0 0
        %447 = vmatpush1.bf16.msra.mxu0 0
        %448 = vmatprep.subr.bf16.mxu0 0
        %449 = vmatpush1.bf16.msra.mxu0 0
        %450 = vmatprep.subr.bf16.mxu0 0
        %451 = vmatpush1.bf16.msra.mxu0 0
        %452 = vmatprep.subr.bf16.mxu0 0
        %453 = vmatpush1.bf16.msra.mxu0 0
        %454 = vmatprep.subr.bf16.mxu0 0
        %455 = vmatpush1.bf16.msra.mxu0 0
        %456 = vmatprep.subr.bf16.mxu0 0
        %457 = vmatpush1.bf16.msra.mxu0 0
        %458 = vmatprep.subr.bf16.mxu0 0
        %459 = vmatpush1.bf16.msra.mxu0 0
        %460 = vmatprep.subr.bf16.mxu0 0
        %461 = vmatpush1.bf16.msra.mxu0 0
        %462 = vmatprep.subr.bf16.mxu0 0
        %463 = vmatpush1.bf16.msra.mxu0 0
        %464 = vmatprep.subr.bf16.mxu0 0
        %465 = vmatpush1.bf16.msra.mxu0 0
        %466 = vmatprep.subr.bf16.mxu0 0
        %467 = vmatpush1.bf16.msra.mxu0 0
        %468 = vmatprep.subr.bf16.mxu0 0
        %469 = vmatpush1.bf16.msra.mxu0 0
        %470 = vmatprep.subr.bf16.mxu0 0
        %471 = vmatpush1.bf16.msra.mxu0 0
        %472 = vmatprep.mubr.bf16.mxu0 0
        %473 = vmatmul.mubr.bf16.gmra.mrb[0].mxu0 %v425
        %v474 = vpop.f32.mrb[0].mxu0
        %v475 = vadd.f32 0.0, %v474
        %v476 = vpop.f32.mrb[0].mxu0
        %v477 = vpop.f32.mrb[0].mxu0
        %v478 = vadd.f32 0.0, %v477
        %v479 = vpop.f32.mrb[0].mxu0
        %480 = vmatprep.mubr.bf16.mxu0 0
        %481 = vmatmul.mubr.bf16.gmra.mrb[0].mxu0 %v428
        %v482 = vpop.f32.mrb[0].mxu0
        %v483 = vadd.f32 0.0, %v482
        %v484 = vpop.f32.mrb[0].mxu0
        %v485 = vpop.f32.mrb[0].mxu0
        %v486 = vadd.f32 0.0, %v485
        %v487 = vpop.f32.mrb[0].mxu0
        %488 = vmatprep.mubr.bf16.mxu0 0
        %489 = vmatmul.mubr.bf16.gmra.mrb[0].mxu0 %v431
        %v490 = vpop.f32.mrb[0].mxu0
        %v491 = vadd.f32 0.0, %v490
        %v492 = vpop.f32.mrb[0].mxu0
        %v493 = vpop.f32.mrb[0].mxu0
        %v494 = vadd.f32 0.0, %v493
        %v495 = vpop.f32.mrb[0].mxu0
        %496 = vmatprep.mubr.bf16.mxu0 0
        %497 = vmatmul.mubr.bf16.gmra.mrb[0].mxu0 %v434
        %v498 = vpop.f32.mrb[0].mxu0
        %v499 = vadd.f32 0.0, %v498
        %v500 = vpop.f32.mrb[0].mxu0
        %v501 = vpop.f32.mrb[0].mxu0
        %v502 = vadd.f32 0.0, %v501
        %v503 = vpop.f32.mrb[0].mxu0
        %504 = vdwg.mxu0
        %v513 = vunpack.c.l.b16 %v266
        %v514 = vunpack.c.l.b16 %v267
        %v515 = vunpack.c.l.b16 %v268
        %v516 = vunpack.c.l.b16 %v269
        %v517 = vunpack.c.l.b16 %v270
        %v518 = vunpack.c.l.b16 %v271
        %v519 = vunpack.c.l.b16 %v272
        %v520 = vunpack.c.l.b16 %v273
        %v521 = vpack.c.b16 %v514, %v513
        %v522 = vpack.c.b16 %v516, %v515
        %v523 = vpack.c.b16 %v518, %v517
        %v524 = vpack.c.b16 %v520, %v519
        %v526 = vsel %vm423, %v521, 0
        %v529 = vsel %vm423, %v522, 0
        %v532 = vsel %vm423, %v523, 0
        %v535 = vsel %vm423, %v524, 0
        %v538 = vsel %vm436, %v274, 0
        %540 = vmatprep.subr.bf16.mxu0 0
        %541 = vmatpush1.bf16.msra.mxu0 %v538
        %542 = vmatprep.subr.bf16.mxu0 0
        %543 = vmatpush1.bf16.msra.mxu0 0
        %544 = vmatprep.subr.bf16.mxu0 0
        %545 = vmatpush1.bf16.msra.mxu0 0
        %546 = vmatprep.subr.bf16.mxu0 0
        %547 = vmatpush1.bf16.msra.mxu0 0
        %548 = vmatprep.subr.bf16.mxu0 0
        %549 = vmatpush1.bf16.msra.mxu0 0
        %550 = vmatprep.subr.bf16.mxu0 0
        %551 = vmatpush1.bf16.msra.mxu0 0
        %552 = vmatprep.subr.bf16.mxu0 0
        %553 = vmatpush1.bf16.msra.mxu0 0
        %554 = vmatprep.subr.bf16.mxu0 0
        %555 = vmatpush1.bf16.msra.mxu0 0
        %556 = vmatprep.subr.bf16.mxu0 0
        %557 = vmatpush1.bf16.msra.mxu0 0
        %558 = vmatprep.subr.bf16.mxu0 0
        %559 = vmatpush1.bf16.msra.mxu0 0
        %560 = vmatprep.subr.bf16.mxu0 0
        %561 = vmatpush1.bf16.msra.mxu0 0
        %562 = vmatprep.subr.bf16.mxu0 0
        %563 = vmatpush1.bf16.msra.mxu0 0
        %564 = vmatprep.subr.bf16.mxu0 0
        %565 = vmatpush1.bf16.msra.mxu0 0
        %566 = vmatprep.subr.bf16.mxu0 0
        %567 = vmatpush1.bf16.msra.mxu0 0
        %568 = vmatprep.subr.bf16.mxu0 0
        %569 = vmatpush1.bf16.msra.mxu0 0
        %570 = vmatprep.subr.bf16.mxu0 0
        %571 = vmatpush1.bf16.msra.mxu0 0
        %572 = vmatprep.mubr.bf16.mxu0 0
        %573 = vmatmul.mubr.bf16.gmra.mrb[0].mxu0 %v526
        %v574 = vpop.f32.mrb[0].mxu0
        %v575 = vadd.f32 %v475, %v574
        %v576 = vpop.f32.mrb[0].mxu0
        %v577 = vpop.f32.mrb[0].mxu0
        %v578 = vadd.f32 %v478, %v577
        %v579 = vpop.f32.mrb[0].mxu0
        %580 = vmatprep.mubr.bf16.mxu0 0
        %581 = vmatmul.mubr.bf16.gmra.mrb[0].mxu0 %v529
        %v582 = vpop.f32.mrb[0].mxu0
        %v583 = vadd.f32 %v483, %v582
        %v584 = vpop.f32.mrb[0].mxu0
        %v585 = vpop.f32.mrb[0].mxu0
        %v586 = vadd.f32 %v486, %v585
        %v587 = vpop.f32.mrb[0].mxu0
        %588 = vmatprep.mubr.bf16.mxu0 0
        %589 = vmatmul.mubr.bf16.gmra.mrb[0].mxu0 %v532
        %v590 = vpop.f32.mrb[0].mxu0
        %v591 = vadd.f32 %v491, %v590
        %v592 = vpop.f32.mrb[0].mxu0
        %v593 = vpop.f32.mrb[0].mxu0
        %v594 = vadd.f32 %v494, %v593
        %v595 = vpop.f32.mrb[0].mxu0
        %596 = vmatprep.mubr.bf16.mxu0 0
        %597 = vmatmul.mubr.bf16.gmra.mrb[0].mxu0 %v535
        %v598 = vpop.f32.mrb[0].mxu0
        %v599 = vadd.f32 %v499, %v598
        %v600 = vpop.f32.mrb[0].mxu0
        %v601 = vpop.f32.mrb[0].mxu0
        %v602 = vadd.f32 %v502, %v601
        %v603 = vpop.f32.mrb[0].mxu0
        %604 = vdwg.mxu0
        %v605 = vld [vmem:[%s264] sm:$0xf]
        %v606 = vld [vmem:[%s264 + $0x4] sm:$0x1]
        %v607 = vld [vmem:[%s264 + $0xc] sm:$0xf]
        %v608 = vld [vmem:[%s264 + $0x10] sm:$0x1]
        %v609 = vld [vmem:[%s264 + $0x18] sm:$0xf]
        %v610 = vld [vmem:[%s264 + $0x1c] sm:$0x1]
        %v611 = vld [vmem:[%s264 + $0x24] sm:$0xf]
        %v612 = vld [vmem:[%s264 + $0x28] sm:$0x1]
        %v613 = vld [vmem:[%s264 + $0x30] sm:$0xf]
        %v614 = vld [vmem:[%s264 + $0x34] sm:$0x1]
        %v615 = vld [vmem:[%s264 + $0x3c] sm:$0xf]
        %v616 = vld [vmem:[%s264 + $0x40] sm:$0x1]
        %v617 = vld [vmem:[%s264 + $0x48] sm:$0xf]
        %v618 = vld [vmem:[%s264 + $0x4c] sm:$0x1]
        %v619 = vld [vmem:[%s264 + $0x54] sm:$0xf]
        %v620 = vld [vmem:[%s264 + $0x58] sm:$0x1]
        %v622 = vshrl.u32 %v605, 16
        %v624 = vrot.slane %v622, 4
        %v625 = vshll.u32 %v605, 16
        %v627 = vrot.slane %v625, 5
        %v628 = vor.u32 %v624, %v627
        %v629 = vrot.slane %v628, 4
        %v631 = vshll.u32 %v606, 16
        %v633 = vrot.slane %v631, 5
        %v634 = vsel %vm293, %v629, %v633
        %v636 = vshrl.u32 %v607, 16
        %v638 = vrot.slane %v636, 4
        %v639 = vshll.u32 %v607, 16
        %v641 = vrot.slane %v639, 5
        %v642 = vor.u32 %v638, %v641
        %v643 = vrot.slane %v642, 4
        %v645 = vshll.u32 %v608, 16
        %v647 = vrot.slane %v645, 5
        %v648 = vsel %vm293, %v643, %v647
        %v650 = vshrl.u32 %v609, 16
        %v652 = vrot.slane %v650, 4
        %v653 = vshll.u32 %v609, 16
        %v655 = vrot.slane %v653, 5
        %v656 = vor.u32 %v652, %v655
        %v657 = vrot.slane %v656, 4
        %v659 = vshll.u32 %v610, 16
        %v661 = vrot.slane %v659, 5
        %v662 = vsel %vm293, %v657, %v661
        %v664 = vshrl.u32 %v611, 16
        %v666 = vrot.slane %v664, 4
        %v667 = vshll.u32 %v611, 16
        %v669 = vrot.slane %v667, 5
        %v670 = vor.u32 %v666, %v669
        %v671 = vrot.slane %v670, 4
        %v673 = vshll.u32 %v612, 16
        %v675 = vrot.slane %v673, 5
        %v676 = vsel %vm293, %v671, %v675
        %v678 = vshrl.u32 %v613, 16
        %v680 = vrot.slane %v678, 4
        %v681 = vshll.u32 %v613, 16
        %v683 = vrot.slane %v681, 5
        %v684 = vor.u32 %v680, %v683
        %v685 = vrot.slane %v684, 4
        %v687 = vshll.u32 %v614, 16
        %v689 = vrot.slane %v687, 5
        %v690 = vsel %vm293, %v685, %v689
        %v692 = vshrl.u32 %v615, 16
        %v694 = vrot.slane %v692, 4
        %v695 = vshll.u32 %v615, 16
        %v697 = vrot.slane %v695, 5
        %v698 = vor.u32 %v694, %v697
        %v699 = vrot.slane %v698, 4
        %v701 = vshll.u32 %v616, 16
        %v703 = vrot.slane %v701, 5
        %v704 = vsel %vm293, %v699, %v703
        %v706 = vshrl.u32 %v617, 16
        %v708 = vrot.slane %v706, 4
        %v709 = vshll.u32 %v617, 16
        %v711 = vrot.slane %v709, 5
        %v712 = vor.u32 %v708, %v711
        %v713 = vrot.slane %v712, 4
        %v715 = vshll.u32 %v618, 16
        %v717 = vrot.slane %v715, 5
        %v718 = vsel %vm293, %v713, %v717
        %v720 = vshrl.u32 %v619, 16
        %v722 = vrot.slane %v720, 4
        %v723 = vshll.u32 %v619, 16
        %v725 = vrot.slane %v723, 5
        %v726 = vor.u32 %v722, %v725
        %v727 = vrot.slane %v726, 4
        %v729 = vshll.u32 %v620, 16
        %v731 = vrot.slane %v729, 5
        %v732 = vsel %vm293, %v727, %v731
        %v733 = vld [vmem:[%s1 + $0x4] sm:$0x3]
        %v734 = vunpack.c.l.b16 %v634
        %v735 = vunpack.c.l.b16 %v648
        %v736 = vunpack.c.l.b16 %v662
        %v737 = vunpack.c.l.b16 %v676
        %v738 = vunpack.c.l.b16 %v690
        %v739 = vunpack.c.l.b16 %v704
        %v740 = vunpack.c.l.b16 %v718
        %v741 = vunpack.c.l.b16 %v732
        %v742 = vpack.c.b16 %v735, %v734
        %v743 = vpack.c.b16 %v737, %v736
        %v744 = vpack.c.b16 %v739, %v738
        %v745 = vpack.c.b16 %v741, %v740
        %v747 = vsel %vm423, %v742, 0
        %v750 = vsel %vm423, %v743, 0
        %v753 = vsel %vm423, %v744, 0
        %v756 = vsel %vm423, %v745, 0
        %v759 = vsel %vm436, %v733, 0
        %761 = vmatprep.subr.bf16.mxu0 0
        %762 = vmatpush1.bf16.msra.mxu0 %v759
        %763 = vmatprep.subr.bf16.mxu0 0
        %764 = vmatpush1.bf16.msra.mxu0 0
        %765 = vmatprep.subr.bf16.mxu0 0
        %766 = vmatpush1.bf16.msra.mxu0 0
        %767 = vmatprep.subr.bf16.mxu0 0
        %768 = vmatpush1.bf16.msra.mxu0 0
        %769 = vmatprep.subr.bf16.mxu0 0
        %770 = vmatpush1.bf16.msra.mxu0 0
        %771 = vmatprep.subr.bf16.mxu0 0
        %772 = vmatpush1.bf16.msra.mxu0 0
        %773 = vmatprep.subr.bf16.mxu0 0
        %774 = vmatpush1.bf16.msra.mxu0 0
        %775 = vmatprep.subr.bf16.mxu0 0
        %776 = vmatpush1.bf16.msra.mxu0 0
        %777 = vmatprep.subr.bf16.mxu0 0
        %778 = vmatpush1.bf16.msra.mxu0 0
        %779 = vmatprep.subr.bf16.mxu0 0
        %780 = vmatpush1.bf16.msra.mxu0 0
        %781 = vmatprep.subr.bf16.mxu0 0
        %782 = vmatpush1.bf16.msra.mxu0 0
        %783 = vmatprep.subr.bf16.mxu0 0
        %784 = vmatpush1.bf16.msra.mxu0 0
        %785 = vmatprep.subr.bf16.mxu0 0
        %786 = vmatpush1.bf16.msra.mxu0 0
        %787 = vmatprep.subr.bf16.mxu0 0
        %788 = vmatpush1.bf16.msra.mxu0 0
        %789 = vmatprep.subr.bf16.mxu0 0
        %790 = vmatpush1.bf16.msra.mxu0 0
        %791 = vmatprep.subr.bf16.mxu0 0
        %792 = vmatpush1.bf16.msra.mxu0 0
        %793 = vmatprep.mubr.bf16.mxu0 0
        %794 = vmatmul.mubr.bf16.gmra.mrb[0].mxu0 %v747
        %v795 = vpop.f32.mrb[0].mxu0
        %v796 = vadd.f32 0.0, %v795
        %v797 = vpop.f32.mrb[0].mxu0
        %v798 = vpop.f32.mrb[0].mxu0
        %v799 = vadd.f32 0.0, %v798
        %v800 = vpop.f32.mrb[0].mxu0
        %801 = vmatprep.mubr.bf16.mxu0 0
        %802 = vmatmul.mubr.bf16.gmra.mrb[0].mxu0 %v750
        %v803 = vpop.f32.mrb[0].mxu0
        %v804 = vadd.f32 0.0, %v803
        %v805 = vpop.f32.mrb[0].mxu0
        %v806 = vpop.f32.mrb[0].mxu0
        %v807 = vadd.f32 0.0, %v806
        %v808 = vpop.f32.mrb[0].mxu0
        %809 = vmatprep.mubr.bf16.mxu0 0
        %810 = vmatmul.mubr.bf16.gmra.mrb[0].mxu0 %v753
        %v811 = vpop.f32.mrb[0].mxu0
        %v812 = vadd.f32 0.0, %v811
        %v813 = vpop.f32.mrb[0].mxu0
        %v814 = vpop.f32.mrb[0].mxu0
        %v815 = vadd.f32 0.0, %v814
        %v816 = vpop.f32.mrb[0].mxu0
        %817 = vmatprep.mubr.bf16.mxu0 0
        %818 = vmatmul.mubr.bf16.gmra.mrb[0].mxu0 %v756
        %v819 = vpop.f32.mrb[0].mxu0
        %v820 = vadd.f32 0.0, %v819
        %v821 = vpop.f32.mrb[0].mxu0
        %v822 = vpop.f32.mrb[0].mxu0
        %v823 = vadd.f32 0.0, %v822
        %v824 = vpop.f32.mrb[0].mxu0
        %825 = vdwg.mxu0
        %v826 = vadd.f32 %v575, %v796
        %v827 = vadd.f32 %v578, %v799
        %v828 = vadd.f32 %v583, %v804
        %v829 = vadd.f32 %v586, %v807
        %v830 = vadd.f32 %v591, %v812
        %v831 = vadd.f32 %v594, %v815
        %v832 = vadd.f32 %v599, %v820
        %v833 = vadd.f32 %v602, %v823
        %s834 = scalar_lea.vmem %s264, 108
        %v835 = vld [vmem:[%s834] sm:$0xf]
        %v836 = vld [vmem:[%s834 + $0xc] sm:$0xf]
        %v837 = vld [vmem:[%s834 + $0x18] sm:$0xf]
        %v838 = vld [vmem:[%s834 + $0x24] sm:$0xf]
        %v839 = vld [vmem:[%s834 + $0x30] sm:$0xf]
        %v840 = vld [vmem:[%s834 + $0x3c] sm:$0xf]
        %v841 = vld [vmem:[%s834 + $0x48] sm:$0xf]
        %v842 = vld [vmem:[%s834 + $0x54] sm:$0xf]
        %v843 = vld [vmem:[%s1 + $0x4] sm:$0xc]
        %v852 = vunpack.c.l.b16 %v835
        %v853 = vunpack.c.l.b16 %v836
        %v854 = vunpack.c.l.b16 %v837
        %v855 = vunpack.c.l.b16 %v838
        %v856 = vunpack.c.l.b16 %v839
        %v857 = vunpack.c.l.b16 %v840
        %v858 = vunpack.c.l.b16 %v841
        %v859 = vunpack.c.l.b16 %v842
        %v860 = vpack.c.b16 %v853, %v852
        %v861 = vpack.c.b16 %v855, %v854
        %v862 = vpack.c.b16 %v857, %v856
        %v863 = vpack.c.b16 %v859, %v858
        %v865 = vunpack.c.l.b16 %v843
        %v866 = vpack.c.b16 %v865, %v865
        %v867 = vrot.slane %v866, 2
        %v869 = vsel %vm423, %v860, 0
        %v872 = vsel %vm423, %v861, 0
        %v875 = vsel %vm423, %v862, 0
        %v878 = vsel %vm423, %v863, 0
        %v881 = vsel %vm436, %v867, 0
        %883 = vmatprep.subr.bf16.mxu0 0
        %884 = vmatpush1.bf16.msra.mxu0 %v881
        %885 = vmatprep.subr.bf16.mxu0 0
        %886 = vmatpush1.bf16.msra.mxu0 0
        %887 = vmatprep.subr.bf16.mxu0 0
        %888 = vmatpush1.bf16.msra.mxu0 0
        %889 = vmatprep.subr.bf16.mxu0 0
        %890 = vmatpush1.bf16.msra.mxu0 0
        %891 = vmatprep.subr.bf16.mxu0 0
        %892 = vmatpush1.bf16.msra.mxu0 0
        %893 = vmatprep.subr.bf16.mxu0 0
        %894 = vmatpush1.bf16.msra.mxu0 0
        %895 = vmatprep.subr.bf16.mxu0 0
        %896 = vmatpush1.bf16.msra.mxu0 0
        %897 = vmatprep.subr.bf16.mxu0 0
        %898 = vmatpush1.bf16.msra.mxu0 0
        %899 = vmatprep.subr.bf16.mxu0 0
        %900 = vmatpush1.bf16.msra.mxu0 0
        %901 = vmatprep.subr.bf16.mxu0 0
        %902 = vmatpush1.bf16.msra.mxu0 0
        %903 = vmatprep.subr.bf16.mxu0 0
        %904 = vmatpush1.bf16.msra.mxu0 0
        %905 = vmatprep.subr.bf16.mxu0 0
        %906 = vmatpush1.bf16.msra.mxu0 0
        %907 = vmatprep.subr.bf16.mxu0 0
        %908 = vmatpush1.bf16.msra.mxu0 0
        %909 = vmatprep.subr.bf16.mxu0 0
        %910 = vmatpush1.bf16.msra.mxu0 0
        %911 = vmatprep.subr.bf16.mxu0 0
        %912 = vmatpush1.bf16.msra.mxu0 0
        %913 = vmatprep.subr.bf16.mxu0 0
        %914 = vmatpush1.bf16.msra.mxu0 0
        %915 = vmatprep.mubr.bf16.mxu0 0
        %916 = vmatmul.mubr.bf16.gmra.mrb[0].mxu0 %v869
        %v917 = vpop.f32.mrb[0].mxu0
        %v918 = vadd.f32 0.0, %v917
        %v919 = vpop.f32.mrb[0].mxu0
        %v920 = vpop.f32.mrb[0].mxu0
        %v921 = vadd.f32 0.0, %v920
        %v922 = vpop.f32.mrb[0].mxu0
        %923 = vmatprep.mubr.bf16.mxu0 0
        %924 = vmatmul.mubr.bf16.gmra.mrb[0].mxu0 %v872
        %v925 = vpop.f32.mrb[0].mxu0
        %v926 = vadd.f32 0.0, %v925
        %v927 = vpop.f32.mrb[0].mxu0
        %v928 = vpop.f32.mrb[0].mxu0
        %v929 = vadd.f32 0.0, %v928
        %v930 = vpop.f32.mrb[0].mxu0
        %931 = vmatprep.mubr.bf16.mxu0 0
        %932 = vmatmul.mubr.bf16.gmra.mrb[0].mxu0 %v875
        %v933 = vpop.f32.mrb[0].mxu0
        %v934 = vadd.f32 0.0, %v933
        %v935 = vpop.f32.mrb[0].mxu0
        %v936 = vpop.f32.mrb[0].mxu0
        %v937 = vadd.f32 0.0, %v936
        %v938 = vpop.f32.mrb[0].mxu0
        %939 = vmatprep.mubr.bf16.mxu0 0
        %940 = vmatmul.mubr.bf16.gmra.mrb[0].mxu0 %v878
        %v941 = vpop.f32.mrb[0].mxu0
        %v942 = vadd.f32 0.0, %v941
        %v943 = vpop.f32.mrb[0].mxu0
        %v944 = vpop.f32.mrb[0].mxu0
        %v945 = vadd.f32 0.0, %v944
        %v946 = vpop.f32.mrb[0].mxu0
        %947 = vdwg.mxu0
        %v948 = vadd.f32 %v826, %v918
        %v949 = vadd.f32 %v827, %v921
        %v950 = vadd.f32 %v828, %v926
        %v951 = vadd.f32 %v829, %v929
        %v952 = vadd.f32 %v830, %v934
        %v953 = vadd.f32 %v831, %v937
        %v954 = vadd.f32 %v832, %v942
        %v955 = vadd.f32 %v833, %v945
        %v956 = vld [vmem:[%s834 + $0x4] sm:$0xf]
        %v957 = vld [vmem:[%s834 + $0x8] sm:$0x1]
        %v958 = vld [vmem:[%s834 + $0x10] sm:$0xf]
        %v959 = vld [vmem:[%s834 + $0x14] sm:$0x1]
        %v960 = vld [vmem:[%s834 + $0x1c] sm:$0xf]
        %v961 = vld [vmem:[%s834 + $0x20] sm:$0x1]
        %v962 = vld [vmem:[%s834 + $0x28] sm:$0xf]
        %v963 = vld [vmem:[%s834 + $0x2c] sm:$0x1]
        %v964 = vld [vmem:[%s834 + $0x34] sm:$0xf]
        %v965 = vld [vmem:[%s834 + $0x38] sm:$0x1]
        %v966 = vld [vmem:[%s834 + $0x40] sm:$0xf]
        %v967 = vld [vmem:[%s834 + $0x44] sm:$0x1]
        %v968 = vld [vmem:[%s834 + $0x4c] sm:$0xf]
        %v969 = vld [vmem:[%s834 + $0x50] sm:$0x1]
        %v970 = vld [vmem:[%s834 + $0x58] sm:$0xf]
        %v971 = vld [vmem:[%s834 + $0x5c] sm:$0x1]
        %v973 = vshrl.u32 %v956, 16
        %v975 = vrot.slane %v973, 4
        %v976 = vshll.u32 %v956, 16
        %v978 = vrot.slane %v976, 5
        %v979 = vor.u32 %v975, %v978
        %v980 = vrot.slane %v979, 4
        %v982 = vshll.u32 %v957, 16
        %v984 = vrot.slane %v982, 5
        %v985 = vsel %vm293, %v980, %v984
        %v987 = vshrl.u32 %v958, 16
        %v989 = vrot.slane %v987, 4
        %v990 = vshll.u32 %v958, 16
        %v992 = vrot.slane %v990, 5
        %v993 = vor.u32 %v989, %v992
        %v994 = vrot.slane %v993, 4
        %v996 = vshll.u32 %v959, 16
        %v998 = vrot.slane %v996, 5
        %v999 = vsel %vm293, %v994, %v998
        %v1001 = vshrl.u32 %v960, 16
        %v1003 = vrot.slane %v1001, 4
        %v1004 = vshll.u32 %v960, 16
        %v1006 = vrot.slane %v1004, 5
        %v1007 = vor.u32 %v1003, %v1006
        %v1008 = vrot.slane %v1007, 4
        %v1010 = vshll.u32 %v961, 16
        %v1012 = vrot.slane %v1010, 5
        %v1013 = vsel %vm293, %v1008, %v1012
        %v1015 = vshrl.u32 %v962, 16
        %v1017 = vrot.slane %v1015, 4
        %v1018 = vshll.u32 %v962, 16
        %v1020 = vrot.slane %v1018, 5
        %v1021 = vor.u32 %v1017, %v1020
        %v1022 = vrot.slane %v1021, 4
        %v1024 = vshll.u32 %v963, 16
        %v1026 = vrot.slane %v1024, 5
        %v1027 = vsel %vm293, %v1022, %v1026
        %v1029 = vshrl.u32 %v964, 16
        %v1031 = vrot.slane %v1029, 4
        %v1032 = vshll.u32 %v964, 16
        %v1034 = vrot.slane %v1032, 5
        %v1035 = vor.u32 %v1031, %v1034
        %v1036 = vrot.slane %v1035, 4
        %v1038 = vshll.u32 %v965, 16
        %v1040 = vrot.slane %v1038, 5
        %v1041 = vsel %vm293, %v1036, %v1040
        %v1043 = vshrl.u32 %v966, 16
        %v1045 = vrot.slane %v1043, 4
        %v1046 = vshll.u32 %v966, 16
        %v1048 = vrot.slane %v1046, 5
        %v1049 = vor.u32 %v1045, %v1048
        %v1050 = vrot.slane %v1049, 4
        %v1052 = vshll.u32 %v967, 16
        %v1054 = vrot.slane %v1052, 5
        %v1055 = vsel %vm293, %v1050, %v1054
        %v1057 = vshrl.u32 %v968, 16
        %v1059 = vrot.slane %v1057, 4
        %v1060 = vshll.u32 %v968, 16
        %v1062 = vrot.slane %v1060, 5
        %v1063 = vor.u32 %v1059, %v1062
        %v1064 = vrot.slane %v1063, 4
        %v1066 = vshll.u32 %v969, 16
        %v1068 = vrot.slane %v1066, 5
        %v1069 = vsel %vm293, %v1064, %v1068
        %v1071 = vshrl.u32 %v970, 16
        %v1073 = vrot.slane %v1071, 4
        %v1074 = vshll.u32 %v970, 16
        %v1076 = vrot.slane %v1074, 5
        %v1077 = vor.u32 %v1073, %v1076
        %v1078 = vrot.slane %v1077, 4
        %v1080 = vshll.u32 %v971, 16
        %v1082 = vrot.slane %v1080, 5
        %v1083 = vsel %vm293, %v1078, %v1082
        %v1084 = vld [vmem:[%s1 + $0x8] sm:$0x3]
        %v1085 = vunpack.c.l.b16 %v985
        %v1086 = vunpack.c.l.b16 %v999
        %v1087 = vunpack.c.l.b16 %v1013
        %v1088 = vunpack.c.l.b16 %v1027
        %v1089 = vunpack.c.l.b16 %v1041
        %v1090 = vunpack.c.l.b16 %v1055
        %v1091 = vunpack.c.l.b16 %v1069
        %v1092 = vunpack.c.l.b16 %v1083
        %v1093 = vpack.c.b16 %v1086, %v1085
        %v1094 = vpack.c.b16 %v1088, %v1087
        %v1095 = vpack.c.b16 %v1090, %v1089
        %v1096 = vpack.c.b16 %v1092, %v1091
        %v1098 = vsel %vm423, %v1093, 0
        %v1101 = vsel %vm423, %v1094, 0
        %v1104 = vsel %vm423, %v1095, 0
        %v1107 = vsel %vm423, %v1096, 0
        %v1110 = vsel %vm436, %v1084, 0
        %1112 = vmatprep.subr.bf16.mxu0 0
        %1113 = vmatpush1.bf16.msra.mxu0 %v1110
        %1114 = vmatprep.subr.bf16.mxu0 0
        %1115 = vmatpush1.bf16.msra.mxu0 0
        %1116 = vmatprep.subr.bf16.mxu0 0
        %1117 = vmatpush1.bf16.msra.mxu0 0
        %1118 = vmatprep.subr.bf16.mxu0 0
        %1119 = vmatpush1.bf16.msra.mxu0 0
        %1120 = vmatprep.subr.bf16.mxu0 0
        %1121 = vmatpush1.bf16.msra.mxu0 0
        %1122 = vmatprep.subr.bf16.mxu0 0
        %1123 = vmatpush1.bf16.msra.mxu0 0
        %1124 = vmatprep.subr.bf16.mxu0 0
        %1125 = vmatpush1.bf16.msra.mxu0 0
        %1126 = vmatprep.subr.bf16.mxu0 0
        %1127 = vmatpush1.bf16.msra.mxu0 0
        %1128 = vmatprep.subr.bf16.mxu0 0
        %1129 = vmatpush1.bf16.msra.mxu0 0
        %1130 = vmatprep.subr.bf16.mxu0 0
        %1131 = vmatpush1.bf16.msra.mxu0 0
        %1132 = vmatprep.subr.bf16.mxu0 0
        %1133 = vmatpush1.bf16.msra.mxu0 0
        %1134 = vmatprep.subr.bf16.mxu0 0
        %1135 = vmatpush1.bf16.msra.mxu0 0
        %1136 = vmatprep.subr.bf16.mxu0 0
        %1137 = vmatpush1.bf16.msra.mxu0 0
        %1138 = vmatprep.subr.bf16.mxu0 0
        %1139 = vmatpush1.bf16.msra.mxu0 0
        %1140 = vmatprep.subr.bf16.mxu0 0
        %1141 = vmatpush1.bf16.msra.mxu0 0
        %1142 = vmatprep.subr.bf16.mxu0 0
        %1143 = vmatpush1.bf16.msra.mxu0 0
        %1144 = vmatprep.mubr.bf16.mxu0 0
        %1145 = vmatmul.mubr.bf16.gmra.mrb[0].mxu0 %v1098
        %v1146 = vpop.f32.mrb[0].mxu0
        %v1147 = vadd.f32 0.0, %v1146
        %v1148 = vpop.f32.mrb[0].mxu0
        %v1149 = vpop.f32.mrb[0].mxu0
        %v1150 = vadd.f32 0.0, %v1149
        %v1151 = vpop.f32.mrb[0].mxu0
        %1152 = vmatprep.mubr.bf16.mxu0 0
        %1153 = vmatmul.mubr.bf16.gmra.mrb[0].mxu0 %v1101
        %v1154 = vpop.f32.mrb[0].mxu0
        %v1155 = vadd.f32 0.0, %v1154
        %v1156 = vpop.f32.mrb[0].mxu0
        %v1157 = vpop.f32.mrb[0].mxu0
        %v1158 = vadd.f32 0.0, %v1157
        %v1159 = vpop.f32.mrb[0].mxu0
        %1160 = vmatprep.mubr.bf16.mxu0 0
        %1161 = vmatmul.mubr.bf16.gmra.mrb[0].mxu0 %v1104
        %v1162 = vpop.f32.mrb[0].mxu0
        %v1163 = vadd.f32 0.0, %v1162
        %v1164 = vpop.f32.mrb[0].mxu0
        %v1165 = vpop.f32.mrb[0].mxu0
        %v1166 = vadd.f32 0.0, %v1165
        %v1167 = vpop.f32.mrb[0].mxu0
        %1168 = vmatprep.mubr.bf16.mxu0 0
        %1169 = vmatmul.mubr.bf16.gmra.mrb[0].mxu0 %v1107
        %v1170 = vpop.f32.mrb[0].mxu0
        %v1171 = vadd.f32 0.0, %v1170
        %v1172 = vpop.f32.mrb[0].mxu0
        %v1173 = vpop.f32.mrb[0].mxu0
        %v1174 = vadd.f32 0.0, %v1173
        %v1175 = vpop.f32.mrb[0].mxu0
        %1176 = vdwg.mxu0
        %v1177 = vadd.f32 %v948, %v1147
        %v1178 = vadd.f32 %v949, %v1150
        %v1179 = vadd.f32 %v950, %v1155
        %v1180 = vadd.f32 %v951, %v1158
        %v1181 = vadd.f32 %v952, %v1163
        %v1182 = vadd.f32 %v953, %v1166
        %v1183 = vadd.f32 %v954, %v1171
        %v1184 = vadd.f32 %v955, %v1174
        %v1185 = vld [vmem:[%s834] sm:$0xf]
        %v1186 = vld [vmem:[%s834 + $0x4] sm:$0x1]
        %v1187 = vld [vmem:[%s834 + $0xc] sm:$0xf]
        %v1188 = vld [vmem:[%s834 + $0x10] sm:$0x1]
        %v1189 = vld [vmem:[%s834 + $0x18] sm:$0xf]
        %v1190 = vld [vmem:[%s834 + $0x1c] sm:$0x1]
        %v1191 = vld [vmem:[%s834 + $0x24] sm:$0xf]
        %v1192 = vld [vmem:[%s834 + $0x28] sm:$0x1]
        %v1193 = vld [vmem:[%s834 + $0x30] sm:$0xf]
        %v1194 = vld [vmem:[%s834 + $0x34] sm:$0x1]
        %v1195 = vld [vmem:[%s834 + $0x3c] sm:$0xf]
        %v1196 = vld [vmem:[%s834 + $0x40] sm:$0x1]
        %v1197 = vld [vmem:[%s834 + $0x48] sm:$0xf]
        %v1198 = vld [vmem:[%s834 + $0x4c] sm:$0x1]
        %v1199 = vld [vmem:[%s834 + $0x54] sm:$0xf]
        %v1200 = vld [vmem:[%s834 + $0x58] sm:$0x1]
        %v1202 = vshrl.u32 %v1185, 16
        %v1204 = vrot.slane %v1202, 4
        %v1205 = vshll.u32 %v1185, 16
        %v1207 = vrot.slane %v1205, 5
        %v1208 = vor.u32 %v1204, %v1207
        %v1209 = vrot.slane %v1208, 4
        %v1211 = vshll.u32 %v1186, 16
        %v1213 = vrot.slane %v1211, 5
        %v1214 = vsel %vm293, %v1209, %v1213
        %v1216 = vshrl.u32 %v1187, 16
        %v1218 = vrot.slane %v1216, 4
        %v1219 = vshll.u32 %v1187, 16
        %v1221 = vrot.slane %v1219, 5
        %v1222 = vor.u32 %v1218, %v1221
        %v1223 = vrot.slane %v1222, 4
        %v1225 = vshll.u32 %v1188, 16
        %v1227 = vrot.slane %v1225, 5
        %v1228 = vsel %vm293, %v1223, %v1227
        %v1230 = vshrl.u32 %v1189, 16
        %v1232 = vrot.slane %v1230, 4
        %v1233 = vshll.u32 %v1189, 16
        %v1235 = vrot.slane %v1233, 5
        %v1236 = vor.u32 %v1232, %v1235
        %v1237 = vrot.slane %v1236, 4
        %v1239 = vshll.u32 %v1190, 16
        %v1241 = vrot.slane %v1239, 5
        %v1242 = vsel %vm293, %v1237, %v1241
        %v1244 = vshrl.u32 %v1191, 16
        %v1246 = vrot.slane %v1244, 4
        %v1247 = vshll.u32 %v1191, 16
        %v1249 = vrot.slane %v1247, 5
        %v1250 = vor.u32 %v1246, %v1249
        %v1251 = vrot.slane %v1250, 4
        %v1253 = vshll.u32 %v1192, 16
        %v1255 = vrot.slane %v1253, 5
        %v1256 = vsel %vm293, %v1251, %v1255
        %v1258 = vshrl.u32 %v1193, 16
        %v1260 = vrot.slane %v1258, 4
        %v1261 = vshll.u32 %v1193, 16
        %v1263 = vrot.slane %v1261, 5
        %v1264 = vor.u32 %v1260, %v1263
        %v1265 = vrot.slane %v1264, 4
        %v1267 = vshll.u32 %v1194, 16
        %v1269 = vrot.slane %v1267, 5
        %v1270 = vsel %vm293, %v1265, %v1269
        %v1272 = vshrl.u32 %v1195, 16
        %v1274 = vrot.slane %v1272, 4
        %v1275 = vshll.u32 %v1195, 16
        %v1277 = vrot.slane %v1275, 5
        %v1278 = vor.u32 %v1274, %v1277
        %v1279 = vrot.slane %v1278, 4
        %v1281 = vshll.u32 %v1196, 16
        %v1283 = vrot.slane %v1281, 5
        %v1284 = vsel %vm293, %v1279, %v1283
        %v1286 = vshrl.u32 %v1197, 16
        %v1288 = vrot.slane %v1286, 4
        %v1289 = vshll.u32 %v1197, 16
        %v1291 = vrot.slane %v1289, 5
        %v1292 = vor.u32 %v1288, %v1291
        %v1293 = vrot.slane %v1292, 4
        %v1295 = vshll.u32 %v1198, 16
        %v1297 = vrot.slane %v1295, 5
        %v1298 = vsel %vm293, %v1293, %v1297
        %v1300 = vshrl.u32 %v1199, 16
        %v1302 = vrot.slane %v1300, 4
        %v1303 = vshll.u32 %v1199, 16
        %v1305 = vrot.slane %v1303, 5
        %v1306 = vor.u32 %v1302, %v1305
        %v1307 = vrot.slane %v1306, 4
        %v1309 = vshll.u32 %v1200, 16
        %v1311 = vrot.slane %v1309, 5
        %v1312 = vsel %vm293, %v1307, %v1311
        %v1313 = vld [vmem:[%s1 + $0x8] sm:$0xc]
        %v1314 = vunpack.c.l.b16 %v1214
        %v1315 = vunpack.c.l.b16 %v1228
        %v1316 = vunpack.c.l.b16 %v1242
        %v1317 = vunpack.c.l.b16 %v1256
        %v1318 = vunpack.c.l.b16 %v1270
        %v1319 = vunpack.c.l.b16 %v1284
        %v1320 = vunpack.c.l.b16 %v1298
        %v1321 = vunpack.c.l.b16 %v1312
        %v1322 = vpack.c.b16 %v1315, %v1314
        %v1323 = vpack.c.b16 %v1317, %v1316
        %v1324 = vpack.c.b16 %v1319, %v1318
        %v1325 = vpack.c.b16 %v1321, %v1320
        %v1327 = vunpack.c.l.b16 %v1313
        %v1328 = vpack.c.b16 %v1327, %v1327
        %v1329 = vrot.slane %v1328, 2
        %v1331 = vsel %vm423, %v1322, 0
        %v1334 = vsel %vm423, %v1323, 0
        %v1337 = vsel %vm423, %v1324, 0
        %v1340 = vsel %vm423, %v1325, 0
        %v1343 = vsel %vm436, %v1329, 0
        %1345 = vmatprep.subr.bf16.mxu0 0
        %1346 = vmatpush1.bf16.msra.mxu0 %v1343
        %1347 = vmatprep.subr.bf16.mxu0 0
        %1348 = vmatpush1.bf16.msra.mxu0 0
        %1349 = vmatprep.subr.bf16.mxu0 0
        %1350 = vmatpush1.bf16.msra.mxu0 0
        %1351 = vmatprep.subr.bf16.mxu0 0
        %1352 = vmatpush1.bf16.msra.mxu0 0
        %1353 = vmatprep.subr.bf16.mxu0 0
        %1354 = vmatpush1.bf16.msra.mxu0 0
        %1355 = vmatprep.subr.bf16.mxu0 0
        %1356 = vmatpush1.bf16.msra.mxu0 0
        %1357 = vmatprep.subr.bf16.mxu0 0
        %1358 = vmatpush1.bf16.msra.mxu0 0
        %1359 = vmatprep.subr.bf16.mxu0 0
        %1360 = vmatpush1.bf16.msra.mxu0 0
        %1361 = vmatprep.subr.bf16.mxu0 0
        %1362 = vmatpush1.bf16.msra.mxu0 0
        %1363 = vmatprep.subr.bf16.mxu0 0
        %1364 = vmatpush1.bf16.msra.mxu0 0
        %1365 = vmatprep.subr.bf16.mxu0 0
        %1366 = vmatpush1.bf16.msra.mxu0 0
        %1367 = vmatprep.subr.bf16.mxu0 0
        %1368 = vmatpush1.bf16.msra.mxu0 0
        %1369 = vmatprep.subr.bf16.mxu0 0
        %1370 = vmatpush1.bf16.msra.mxu0 0
        %1371 = vmatprep.subr.bf16.mxu0 0
        %1372 = vmatpush1.bf16.msra.mxu0 0
        %1373 = vmatprep.subr.bf16.mxu0 0
        %1374 = vmatpush1.bf16.msra.mxu0 0
        %1375 = vmatprep.subr.bf16.mxu0 0
        %1376 = vmatpush1.bf16.msra.mxu0 0
        %1377 = vmatprep.mubr.bf16.mxu0 0
        %1378 = vmatmul.mubr.bf16.gmra.mrb[0].mxu0 %v1331
        %v1379 = vpop.f32.mrb[0].mxu0
        %v1380 = vadd.f32 0.0, %v1379
        %v1381 = vpop.f32.mrb[0].mxu0
        %v1382 = vpop.f32.mrb[0].mxu0
        %v1383 = vadd.f32 0.0, %v1382
        %v1384 = vpop.f32.mrb[0].mxu0
        %1385 = vmatprep.mubr.bf16.mxu0 0
        %1386 = vmatmul.mubr.bf16.gmra.mrb[0].mxu0 %v1334
        %v1387 = vpop.f32.mrb[0].mxu0
        %v1388 = vadd.f32 0.0, %v1387
        %v1389 = vpop.f32.mrb[0].mxu0
        %v1390 = vpop.f32.mrb[0].mxu0
        %v1391 = vadd.f32 0.0, %v1390
        %v1392 = vpop.f32.mrb[0].mxu0
        %1393 = vmatprep.mubr.bf16.mxu0 0
        %1394 = vmatmul.mubr.bf16.gmra.mrb[0].mxu0 %v1337
        %v1395 = vpop.f32.mrb[0].mxu0
        %v1396 = vadd.f32 0.0, %v1395
        %v1397 = vpop.f32.mrb[0].mxu0
        %v1398 = vpop.f32.mrb[0].mxu0
        %v1399 = vadd.f32 0.0, %v1398
        %v1400 = vpop.f32.mrb[0].mxu0
        %1401 = vmatprep.mubr.bf16.mxu0 0
        %1402 = vmatmul.mubr.bf16.gmra.mrb[0].mxu0 %v1340
        %v1403 = vpop.f32.mrb[0].mxu0
        %v1404 = vadd.f32 0.0, %v1403
        %v1405 = vpop.f32.mrb[0].mxu0
        %v1406 = vpop.f32.mrb[0].mxu0
        %v1407 = vadd.f32 0.0, %v1406
        %v1408 = vpop.f32.mrb[0].mxu0
        %1409 = vdwg.mxu0
        %v1410 = vadd.f32 %v1177, %v1380
        %v1411 = vadd.f32 %v1178, %v1383
        %v1412 = vadd.f32 %v1179, %v1388
        %v1413 = vadd.f32 %v1180, %v1391
        %v1414 = vadd.f32 %v1181, %v1396
        %v1415 = vadd.f32 %v1182, %v1399
        %v1416 = vadd.f32 %v1183, %v1404
        %v1417 = vadd.f32 %v1184, %v1407
        %s1418 = scalar_lea.vmem %s264, 12
        %v1419 = vld [vmem:[%s1418] sm:$0xf]
        %v1420 = vld [vmem:[%s1418 + $0xc] sm:$0xf]
        %v1421 = vld [vmem:[%s1418 + $0x18] sm:$0xf]
        %v1422 = vld [vmem:[%s1418 + $0x24] sm:$0xf]
        %v1423 = vld [vmem:[%s1418 + $0x30] sm:$0xf]
        %v1424 = vld [vmem:[%s1418 + $0x3c] sm:$0xf]
        %v1425 = vld [vmem:[%s1418 + $0x48] sm:$0xf]
        %v1426 = vld [vmem:[%s1418 + $0x54] sm:$0xf]
        %v1427 = vld [vmem:[%s1 + $0xc] sm:$0x3]
        %v1436 = vunpack.c.l.b16 %v1419
        %v1437 = vunpack.c.l.b16 %v1420
        %v1438 = vunpack.c.l.b16 %v1421
        %v1439 = vunpack.c.l.b16 %v1422
        %v1440 = vunpack.c.l.b16 %v1423
        %v1441 = vunpack.c.l.b16 %v1424
        %v1442 = vunpack.c.l.b16 %v1425
        %v1443 = vunpack.c.l.b16 %v1426
        %v1444 = vpack.c.b16 %v1437, %v1436
        %v1445 = vpack.c.b16 %v1439, %v1438
        %v1446 = vpack.c.b16 %v1441, %v1440
        %v1447 = vpack.c.b16 %v1443, %v1442
        %v1449 = vsel %vm423, %v1444, 0
        %v1452 = vsel %vm423, %v1445, 0
        %v1455 = vsel %vm423, %v1446, 0
        %v1458 = vsel %vm423, %v1447, 0
        %v1461 = vsel %vm436, %v1427, 0
        %1463 = vmatprep.subr.bf16.mxu0 0
        %1464 = vmatpush1.bf16.msra.mxu0 %v1461
        %1465 = vmatprep.subr.bf16.mxu0 0
        %1466 = vmatpush1.bf16.msra.mxu0 0
        %1467 = vmatprep.subr.bf16.mxu0 0
        %1468 = vmatpush1.bf16.msra.mxu0 0
        %1469 = vmatprep.subr.bf16.mxu0 0
        %1470 = vmatpush1.bf16.msra.mxu0 0
        %1471 = vmatprep.subr.bf16.mxu0 0
        %1472 = vmatpush1.bf16.msra.mxu0 0
        %1473 = vmatprep.subr.bf16.mxu0 0
        %1474 = vmatpush1.bf16.msra.mxu0 0
        %1475 = vmatprep.subr.bf16.mxu0 0
        %1476 = vmatpush1.bf16.msra.mxu0 0
        %1477 = vmatprep.subr.bf16.mxu0 0
        %1478 = vmatpush1.bf16.msra.mxu0 0
        %1479 = vmatprep.subr.bf16.mxu0 0
        %1480 = vmatpush1.bf16.msra.mxu0 0
        %1481 = vmatprep.subr.bf16.mxu0 0
        %1482 = vmatpush1.bf16.msra.mxu0 0
        %1483 = vmatprep.subr.bf16.mxu0 0
        %1484 = vmatpush1.bf16.msra.mxu0 0
        %1485 = vmatprep.subr.bf16.mxu0 0
        %1486 = vmatpush1.bf16.msra.mxu0 0
        %1487 = vmatprep.subr.bf16.mxu0 0
        %1488 = vmatpush1.bf16.msra.mxu0 0
        %1489 = vmatprep.subr.bf16.mxu0 0
        %1490 = vmatpush1.bf16.msra.mxu0 0
        %1491 = vmatprep.subr.bf16.mxu0 0
        %1492 = vmatpush1.bf16.msra.mxu0 0
        %1493 = vmatprep.subr.bf16.mxu0 0
        %1494 = vmatpush1.bf16.msra.mxu0 0
        %1495 = vmatprep.mubr.bf16.mxu0 0
        %1496 = vmatmul.mubr.bf16.gmra.mrb[0].mxu0 %v1449
        %v1497 = vpop.f32.mrb[0].mxu0
        %v1498 = vadd.f32 0.0, %v1497
        %v1499 = vpop.f32.mrb[0].mxu0
        %v1500 = vpop.f32.mrb[0].mxu0
        %v1501 = vadd.f32 0.0, %v1500
        %v1502 = vpop.f32.mrb[0].mxu0
        %1503 = vmatprep.mubr.bf16.mxu0 0
        %1504 = vmatmul.mubr.bf16.gmra.mrb[0].mxu0 %v1452
        %v1505 = vpop.f32.mrb[0].mxu0
        %v1506 = vadd.f32 0.0, %v1505
        %v1507 = vpop.f32.mrb[0].mxu0
        %v1508 = vpop.f32.mrb[0].mxu0
        %v1509 = vadd.f32 0.0, %v1508
        %v1510 = vpop.f32.mrb[0].mxu0
        %1511 = vmatprep.mubr.bf16.mxu0 0
        %1512 = vmatmul.mubr.bf16.gmra.mrb[0].mxu0 %v1455
        %v1513 = vpop.f32.mrb[0].mxu0
        %v1514 = vadd.f32 0.0, %v1513
        %v1515 = vpop.f32.mrb[0].mxu0
        %v1516 = vpop.f32.mrb[0].mxu0
        %v1517 = vadd.f32 0.0, %v1516
        %v1518 = vpop.f32.mrb[0].mxu0
        %1519 = vmatprep.mubr.bf16.mxu0 0
        %1520 = vmatmul.mubr.bf16.gmra.mrb[0].mxu0 %v1458
        %v1521 = vpop.f32.mrb[0].mxu0
        %v1522 = vadd.f32 0.0, %v1521
        %v1523 = vpop.f32.mrb[0].mxu0
        %v1524 = vpop.f32.mrb[0].mxu0
        %v1525 = vadd.f32 0.0, %v1524
        %v1526 = vpop.f32.mrb[0].mxu0
        %1527 = vdwg.mxu0
        %v1528 = vadd.f32 %v1410, %v1498
        %v1529 = vadd.f32 %v1411, %v1501
        %v1530 = vadd.f32 %v1412, %v1506
        %v1531 = vadd.f32 %v1413, %v1509
        %v1532 = vadd.f32 %v1414, %v1514
        %v1533 = vadd.f32 %v1415, %v1517
        %v1534 = vadd.f32 %v1416, %v1522
        %v1535 = vadd.f32 %v1417, %v1525
        %v1536 = vld [vmem:[%s1418 + $0x4] sm:$0xf]
        %v1537 = vld [vmem:[%s1418 + $0x8] sm:$0x1]
        %v1538 = vld [vmem:[%s1418 + $0x10] sm:$0xf]
        %v1539 = vld [vmem:[%s1418 + $0x14] sm:$0x1]
        %v1540 = vld [vmem:[%s1418 + $0x1c] sm:$0xf]
        %v1541 = vld [vmem:[%s1418 + $0x20] sm:$0x1]
        %v1542 = vld [vmem:[%s1418 + $0x28] sm:$0xf]
        %v1543 = vld [vmem:[%s1418 + $0x2c] sm:$0x1]
        %v1544 = vld [vmem:[%s1418 + $0x34] sm:$0xf]
        %v1545 = vld [vmem:[%s1418 + $0x38] sm:$0x1]
        %v1546 = vld [vmem:[%s1418 + $0x40] sm:$0xf]
        %v1547 = vld [vmem:[%s1418 + $0x44] sm:$0x1]
        %v1548 = vld [vmem:[%s1418 + $0x4c] sm:$0xf]
        %v1549 = vld [vmem:[%s1418 + $0x50] sm:$0x1]
        %v1550 = vld [vmem:[%s1418 + $0x58] sm:$0xf]
        %v1551 = vld [vmem:[%s1418 + $0x5c] sm:$0x1]
        %v1553 = vshrl.u32 %v1536, 16
        %v1555 = vrot.slane %v1553, 4
        %v1556 = vshll.u32 %v1536, 16
        %v1558 = vrot.slane %v1556, 5
        %v1559 = vor.u32 %v1555, %v1558
        %v1560 = vrot.slane %v1559, 4
        %v1562 = vshll.u32 %v1537, 16
        %v1564 = vrot.slane %v1562, 5
        %v1565 = vsel %vm293, %v1560, %v1564
        %v1567 = vshrl.u32 %v1538, 16
        %v1569 = vrot.slane %v1567, 4
        %v1570 = vshll.u32 %v1538, 16
        %v1572 = vrot.slane %v1570, 5
        %v1573 = vor.u32 %v1569, %v1572
        %v1574 = vrot.slane %v1573, 4
        %v1576 = vshll.u32 %v1539, 16
        %v1578 = vrot.slane %v1576, 5
        %v1579 = vsel %vm293, %v1574, %v1578
        %v1581 = vshrl.u32 %v1540, 16
        %v1583 = vrot.slane %v1581, 4
        %v1584 = vshll.u32 %v1540, 16
        %v1586 = vrot.slane %v1584, 5
        %v1587 = vor.u32 %v1583, %v1586
        %v1588 = vrot.slane %v1587, 4
        %v1590 = vshll.u32 %v1541, 16
        %v1592 = vrot.slane %v1590, 5
        %v1593 = vsel %vm293, %v1588, %v1592
        %v1595 = vshrl.u32 %v1542, 16
        %v1597 = vrot.slane %v1595, 4
        %v1598 = vshll.u32 %v1542, 16
        %v1600 = vrot.slane %v1598, 5
        %v1601 = vor.u32 %v1597, %v1600
        %v1602 = vrot.slane %v1601, 4
        %v1604 = vshll.u32 %v1543, 16
        %v1606 = vrot.slane %v1604, 5
        %v1607 = vsel %vm293, %v1602, %v1606
        %v1609 = vshrl.u32 %v1544, 16
        %v1611 = vrot.slane %v1609, 4
        %v1612 = vshll.u32 %v1544, 16
        %v1614 = vrot.slane %v1612, 5
        %v1615 = vor.u32 %v1611, %v1614
        %v1616 = vrot.slane %v1615, 4
        %v1618 = vshll.u32 %v1545, 16
        %v1620 = vrot.slane %v1618, 5
        %v1621 = vsel %vm293, %v1616, %v1620
        %v1623 = vshrl.u32 %v1546, 16
        %v1625 = vrot.slane %v1623, 4
        %v1626 = vshll.u32 %v1546, 16
        %v1628 = vrot.slane %v1626, 5
        %v1629 = vor.u32 %v1625, %v1628
        %v1630 = vrot.slane %v1629, 4
        %v1632 = vshll.u32 %v1547, 16
        %v1634 = vrot.slane %v1632, 5
        %v1635 = vsel %vm293, %v1630, %v1634
        %v1637 = vshrl.u32 %v1548, 16
        %v1639 = vrot.slane %v1637, 4
        %v1640 = vshll.u32 %v1548, 16
        %v1642 = vrot.slane %v1640, 5
        %v1643 = vor.u32 %v1639, %v1642
        %v1644 = vrot.slane %v1643, 4
        %v1646 = vshll.u32 %v1549, 16
        %v1648 = vrot.slane %v1646, 5
        %v1649 = vsel %vm293, %v1644, %v1648
        %v1651 = vshrl.u32 %v1550, 16
        %v1653 = vrot.slane %v1651, 4
        %v1654 = vshll.u32 %v1550, 16
        %v1656 = vrot.slane %v1654, 5
        %v1657 = vor.u32 %v1653, %v1656
        %v1658 = vrot.slane %v1657, 4
        %v1660 = vshll.u32 %v1551, 16
        %v1662 = vrot.slane %v1660, 5
        %v1663 = vsel %vm293, %v1658, %v1662
        %v1664 = vld [vmem:[%s1 + $0xc] sm:$0xc]
        %v1665 = vunpack.c.l.b16 %v1565
        %v1666 = vunpack.c.l.b16 %v1579
        %v1667 = vunpack.c.l.b16 %v1593
        %v1668 = vunpack.c.l.b16 %v1607
        %v1669 = vunpack.c.l.b16 %v1621
        %v1670 = vunpack.c.l.b16 %v1635
        %v1671 = vunpack.c.l.b16 %v1649
        %v1672 = vunpack.c.l.b16 %v1663
        %v1673 = vpack.c.b16 %v1666, %v1665
        %v1674 = vpack.c.b16 %v1668, %v1667
        %v1675 = vpack.c.b16 %v1670, %v1669
        %v1676 = vpack.c.b16 %v1672, %v1671
        %v1678 = vunpack.c.l.b16 %v1664
        %v1679 = vpack.c.b16 %v1678, %v1678
        %v1680 = vrot.slane %v1679, 2
        %v1682 = vsel %vm423, %v1673, 0
        %v1685 = vsel %vm423, %v1674, 0
        %v1688 = vsel %vm423, %v1675, 0
        %v1691 = vsel %vm423, %v1676, 0
        %v1694 = vsel %vm436, %v1680, 0
        %1696 = vmatprep.subr.bf16.mxu0 0
        %1697 = vmatpush1.bf16.msra.mxu0 %v1694
        %1698 = vmatprep.subr.bf16.mxu0 0
        %1699 = vmatpush1.bf16.msra.mxu0 0
        %1700 = vmatprep.subr.bf16.mxu0 0
        %1701 = vmatpush1.bf16.msra.mxu0 0
        %1702 = vmatprep.subr.bf16.mxu0 0
        %1703 = vmatpush1.bf16.msra.mxu0 0
        %1704 = vmatprep.subr.bf16.mxu0 0
        %1705 = vmatpush1.bf16.msra.mxu0 0
        %1706 = vmatprep.subr.bf16.mxu0 0
        %1707 = vmatpush1.bf16.msra.mxu0 0
        %1708 = vmatprep.subr.bf16.mxu0 0
        %1709 = vmatpush1.bf16.msra.mxu0 0
        %1710 = vmatprep.subr.bf16.mxu0 0
        %1711 = vmatpush1.bf16.msra.mxu0 0
        %1712 = vmatprep.subr.bf16.mxu0 0
        %1713 = vmatpush1.bf16.msra.mxu0 0
        %1714 = vmatprep.subr.bf16.mxu0 0
        %1715 = vmatpush1.bf16.msra.mxu0 0
        %1716 = vmatprep.subr.bf16.mxu0 0
        %1717 = vmatpush1.bf16.msra.mxu0 0
        %1718 = vmatprep.subr.bf16.mxu0 0
        %1719 = vmatpush1.bf16.msra.mxu0 0
        %1720 = vmatprep.subr.bf16.mxu0 0
        %1721 = vmatpush1.bf16.msra.mxu0 0
        %1722 = vmatprep.subr.bf16.mxu0 0
        %1723 = vmatpush1.bf16.msra.mxu0 0
        %1724 = vmatprep.subr.bf16.mxu0 0
        %1725 = vmatpush1.bf16.msra.mxu0 0
        %1726 = vmatprep.subr.bf16.mxu0 0
        %1727 = vmatpush1.bf16.msra.mxu0 0
        %1728 = vmatprep.mubr.bf16.mxu0 0
        %1729 = vmatmul.mubr.bf16.gmra.mrb[0].mxu0 %v1682
        %v1730 = vpop.f32.mrb[0].mxu0
        %v1731 = vadd.f32 0.0, %v1730
        %v1732 = vpop.f32.mrb[0].mxu0
        %v1733 = vpop.f32.mrb[0].mxu0
        %v1734 = vadd.f32 0.0, %v1733
        %v1735 = vpop.f32.mrb[0].mxu0
        %1736 = vmatprep.mubr.bf16.mxu0 0
        %1737 = vmatmul.mubr.bf16.gmra.mrb[0].mxu0 %v1685
        %v1738 = vpop.f32.mrb[0].mxu0
        %v1739 = vadd.f32 0.0, %v1738
        %v1740 = vpop.f32.mrb[0].mxu0
        %v1741 = vpop.f32.mrb[0].mxu0
        %v1742 = vadd.f32 0.0, %v1741
        %v1743 = vpop.f32.mrb[0].mxu0
        %1744 = vmatprep.mubr.bf16.mxu0 0
        %1745 = vmatmul.mubr.bf16.gmra.mrb[0].mxu0 %v1688
        %v1746 = vpop.f32.mrb[0].mxu0
        %v1747 = vadd.f32 0.0, %v1746
        %v1748 = vpop.f32.mrb[0].mxu0
        %v1749 = vpop.f32.mrb[0].mxu0
        %v1750 = vadd.f32 0.0, %v1749
        %v1751 = vpop.f32.mrb[0].mxu0
        %1752 = vmatprep.mubr.bf16.mxu0 0
        %1753 = vmatmul.mubr.bf16.gmra.mrb[0].mxu0 %v1691
        %v1754 = vpop.f32.mrb[0].mxu0
        %v1755 = vadd.f32 0.0, %v1754
        %v1756 = vpop.f32.mrb[0].mxu0
        %v1757 = vpop.f32.mrb[0].mxu0
        %v1758 = vadd.f32 0.0, %v1757
        %v1759 = vpop.f32.mrb[0].mxu0
        %1760 = vdwg.mxu0
        %v1761 = vadd.f32 %v1528, %v1731
        %v1762 = vadd.f32 %v1529, %v1734
        %v1763 = vadd.f32 %v1530, %v1739
        %v1764 = vadd.f32 %v1531, %v1742
        %v1765 = vadd.f32 %v1532, %v1747
        %v1766 = vadd.f32 %v1533, %v1750
        %v1767 = vadd.f32 %v1534, %v1755
        %v1768 = vadd.f32 %v1535, %v1758
        %v1769 = vld [vmem:[%s1418] sm:$0xf]
        %v1770 = vld [vmem:[%s1418 + $0x4] sm:$0x1]
        %v1771 = vld [vmem:[%s1418 + $0xc] sm:$0xf]
        %v1772 = vld [vmem:[%s1418 + $0x10] sm:$0x1]
        %v1773 = vld [vmem:[%s1418 + $0x18] sm:$0xf]
        %v1774 = vld [vmem:[%s1418 + $0x1c] sm:$0x1]
        %v1775 = vld [vmem:[%s1418 + $0x24] sm:$0xf]
        %v1776 = vld [vmem:[%s1418 + $0x28] sm:$0x1]
        %v1777 = vld [vmem:[%s1418 + $0x30] sm:$0xf]
        %v1778 = vld [vmem:[%s1418 + $0x34] sm:$0x1]
        %v1779 = vld [vmem:[%s1418 + $0x3c] sm:$0xf]
        %v1780 = vld [vmem:[%s1418 + $0x40] sm:$0x1]
        %v1781 = vld [vmem:[%s1418 + $0x48] sm:$0xf]
        %v1782 = vld [vmem:[%s1418 + $0x4c] sm:$0x1]
        %v1783 = vld [vmem:[%s1418 + $0x54] sm:$0xf]
        %v1784 = vld [vmem:[%s1418 + $0x58] sm:$0x1]
        %v1786 = vshrl.u32 %v1769, 16
        %v1788 = vrot.slane %v1786, 4
        %v1789 = vshll.u32 %v1769, 16
        %v1791 = vrot.slane %v1789, 5
        %v1792 = vor.u32 %v1788, %v1791
        %v1793 = vrot.slane %v1792, 4
        %v1795 = vshll.u32 %v1770, 16
        %v1797 = vrot.slane %v1795, 5
        %v1798 = vsel %vm293, %v1793, %v1797
        %v1800 = vshrl.u32 %v1771, 16
        %v1802 = vrot.slane %v1800, 4
        %v1803 = vshll.u32 %v1771, 16
        %v1805 = vrot.slane %v1803, 5
        %v1806 = vor.u32 %v1802, %v1805
        %v1807 = vrot.slane %v1806, 4
        %v1809 = vshll.u32 %v1772, 16
        %v1811 = vrot.slane %v1809, 5
        %v1812 = vsel %vm293, %v1807, %v1811
        %v1814 = vshrl.u32 %v1773, 16
        %v1816 = vrot.slane %v1814, 4
        %v1817 = vshll.u32 %v1773, 16
        %v1819 = vrot.slane %v1817, 5
        %v1820 = vor.u32 %v1816, %v1819
        %v1821 = vrot.slane %v1820, 4
        %v1823 = vshll.u32 %v1774, 16
        %v1825 = vrot.slane %v1823, 5
        %v1826 = vsel %vm293, %v1821, %v1825
        %v1828 = vshrl.u32 %v1775, 16
        %v1830 = vrot.slane %v1828, 4
        %v1831 = vshll.u32 %v1775, 16
        %v1833 = vrot.slane %v1831, 5
        %v1834 = vor.u32 %v1830, %v1833
        %v1835 = vrot.slane %v1834, 4
        %v1837 = vshll.u32 %v1776, 16
        %v1839 = vrot.slane %v1837, 5
        %v1840 = vsel %vm293, %v1835, %v1839
        %v1842 = vshrl.u32 %v1777, 16
        %v1844 = vrot.slane %v1842, 4
        %v1845 = vshll.u32 %v1777, 16
        %v1847 = vrot.slane %v1845, 5
        %v1848 = vor.u32 %v1844, %v1847
        %v1849 = vrot.slane %v1848, 4
        %v1851 = vshll.u32 %v1778, 16
        %v1853 = vrot.slane %v1851, 5
        %v1854 = vsel %vm293, %v1849, %v1853
        %v1856 = vshrl.u32 %v1779, 16
        %v1858 = vrot.slane %v1856, 4
        %v1859 = vshll.u32 %v1779, 16
        %v1861 = vrot.slane %v1859, 5
        %v1862 = vor.u32 %v1858, %v1861
        %v1863 = vrot.slane %v1862, 4
        %v1865 = vshll.u32 %v1780, 16
        %v1867 = vrot.slane %v1865, 5
        %v1868 = vsel %vm293, %v1863, %v1867
        %v1870 = vshrl.u32 %v1781, 16
        %v1872 = vrot.slane %v1870, 4
        %v1873 = vshll.u32 %v1781, 16
        %v1875 = vrot.slane %v1873, 5
        %v1876 = vor.u32 %v1872, %v1875
        %v1877 = vrot.slane %v1876, 4
        %v1879 = vshll.u32 %v1782, 16
        %v1881 = vrot.slane %v1879, 5
        %v1882 = vsel %vm293, %v1877, %v1881
        %v1884 = vshrl.u32 %v1783, 16
        %v1886 = vrot.slane %v1884, 4
        %v1887 = vshll.u32 %v1783, 16
        %v1889 = vrot.slane %v1887, 5
        %v1890 = vor.u32 %v1886, %v1889
        %v1891 = vrot.slane %v1890, 4
        %v1893 = vshll.u32 %v1784, 16
        %v1895 = vrot.slane %v1893, 5
        %v1896 = vsel %vm293, %v1891, %v1895
        %v1897 = vld [vmem:[%s1 + $0x10] sm:$0x3]
        %v1898 = vunpack.c.l.b16 %v1798
        %v1899 = vunpack.c.l.b16 %v1812
        %v1900 = vunpack.c.l.b16 %v1826
        %v1901 = vunpack.c.l.b16 %v1840
        %v1902 = vunpack.c.l.b16 %v1854
        %v1903 = vunpack.c.l.b16 %v1868
        %v1904 = vunpack.c.l.b16 %v1882
        %v1905 = vunpack.c.l.b16 %v1896
        %v1906 = vpack.c.b16 %v1899, %v1898
        %v1907 = vpack.c.b16 %v1901, %v1900
        %v1908 = vpack.c.b16 %v1903, %v1902
        %v1909 = vpack.c.b16 %v1905, %v1904
        %v1911 = vsel %vm423, %v1906, 0
        %v1914 = vsel %vm423, %v1907, 0
        %v1917 = vsel %vm423, %v1908, 0
        %v1920 = vsel %vm423, %v1909, 0
        %v1923 = vsel %vm436, %v1897, 0
        %1925 = vmatprep.subr.bf16.mxu0 0
        %1926 = vmatpush1.bf16.msra.mxu0 %v1923
        %1927 = vmatprep.subr.bf16.mxu0 0
        %1928 = vmatpush1.bf16.msra.mxu0 0
        %1929 = vmatprep.subr.bf16.mxu0 0
        %1930 = vmatpush1.bf16.msra.mxu0 0
        %1931 = vmatprep.subr.bf16.mxu0 0
        %1932 = vmatpush1.bf16.msra.mxu0 0
        %1933 = vmatprep.subr.bf16.mxu0 0
        %1934 = vmatpush1.bf16.msra.mxu0 0
        %1935 = vmatprep.subr.bf16.mxu0 0
        %1936 = vmatpush1.bf16.msra.mxu0 0
        %1937 = vmatprep.subr.bf16.mxu0 0
        %1938 = vmatpush1.bf16.msra.mxu0 0
        %1939 = vmatprep.subr.bf16.mxu0 0
        %1940 = vmatpush1.bf16.msra.mxu0 0
        %1941 = vmatprep.subr.bf16.mxu0 0
        %1942 = vmatpush1.bf16.msra.mxu0 0
        %1943 = vmatprep.subr.bf16.mxu0 0
        %1944 = vmatpush1.bf16.msra.mxu0 0
        %1945 = vmatprep.subr.bf16.mxu0 0
        %1946 = vmatpush1.bf16.msra.mxu0 0
        %1947 = vmatprep.subr.bf16.mxu0 0
        %1948 = vmatpush1.bf16.msra.mxu0 0
        %1949 = vmatprep.subr.bf16.mxu0 0
        %1950 = vmatpush1.bf16.msra.mxu0 0
        %1951 = vmatprep.subr.bf16.mxu0 0
        %1952 = vmatpush1.bf16.msra.mxu0 0
        %1953 = vmatprep.subr.bf16.mxu0 0
        %1954 = vmatpush1.bf16.msra.mxu0 0
        %1955 = vmatprep.subr.bf16.mxu0 0
        %1956 = vmatpush1.bf16.msra.mxu0 0
        %1957 = vmatprep.mubr.bf16.mxu0 0
        %1958 = vmatmul.mubr.bf16.gmra.mrb[0].mxu0 %v1911
        %v1959 = vpop.f32.mrb[0].mxu0
        %v1960 = vadd.f32 0.0, %v1959
        %v1961 = vpop.f32.mrb[0].mxu0
        %v1962 = vpop.f32.mrb[0].mxu0
        %v1963 = vadd.f32 0.0, %v1962
        %v1964 = vpop.f32.mrb[0].mxu0
        %1965 = vmatprep.mubr.bf16.mxu0 0
        %1966 = vmatmul.mubr.bf16.gmra.mrb[0].mxu0 %v1914
        %v1967 = vpop.f32.mrb[0].mxu0
        %v1968 = vadd.f32 0.0, %v1967
        %v1969 = vpop.f32.mrb[0].mxu0
        %v1970 = vpop.f32.mrb[0].mxu0
        %v1971 = vadd.f32 0.0, %v1970
        %v1972 = vpop.f32.mrb[0].mxu0
        %1973 = vmatprep.mubr.bf16.mxu0 0
        %1974 = vmatmul.mubr.bf16.gmra.mrb[0].mxu0 %v1917
        %v1975 = vpop.f32.mrb[0].mxu0
        %v1976 = vadd.f32 0.0, %v1975
        %v1977 = vpop.f32.mrb[0].mxu0
        %v1978 = vpop.f32.mrb[0].mxu0
        %v1979 = vadd.f32 0.0, %v1978
        %v1980 = vpop.f32.mrb[0].mxu0
        %1981 = vmatprep.mubr.bf16.mxu0 0
        %1982 = vmatmul.mubr.bf16.gmra.mrb[0].mxu0 %v1920
        %v1983 = vpop.f32.mrb[0].mxu0
        %v1984 = vadd.f32 0.0, %v1983
        %v1985 = vpop.f32.mrb[0].mxu0
        %v1986 = vpop.f32.mrb[0].mxu0
        %v1987 = vadd.f32 0.0, %v1986
        %v1988 = vpop.f32.mrb[0].mxu0
        %1989 = vdwg.mxu0
        %v1990 = vadd.f32 %v1761, %v1960
        %v1991 = vadd.f32 %v1762, %v1963
        %v1992 = vadd.f32 %v1763, %v1968
        %v1993 = vadd.f32 %v1764, %v1971
        %v1994 = vadd.f32 %v1765, %v1976
        %v1995 = vadd.f32 %v1766, %v1979
        %v1996 = vadd.f32 %v1767, %v1984
        %v1997 = vadd.f32 %v1768, %v1987
        %v1998 = vld [vmem:[%s2] sm:$0x1]
        %v2000 = vlaneseq
        %v2001 = vshrl.u32 %v2000, 7
        %v2002 = vsub.s32 0, %v2001
        %v2003 = vrot.slane %v1998, %v2002
        %v2005 = vadd.f32 %v1990, %v2003
        %v2006 = vadd.f32 %v1991, %v2003
        %v2007 = vadd.f32 %v1992, %v2003
        %v2008 = vadd.f32 %v1993, %v2003
        %v2009 = vadd.f32 %v1994, %v2003
        %v2010 = vadd.f32 %v1995, %v2003
        %v2011 = vadd.f32 %v1996, %v2003
        %v2012 = vadd.f32 %v1997, %v2003
        %v2013 = vmax.f32 %v2005, 0.0
        %v2014 = vmax.f32 %v2006, 0.0
        %v2015 = vmax.f32 %v2007, 0.0
        %v2016 = vmax.f32 %v2008, 0.0
        %v2017 = vmax.f32 %v2009, 0.0
        %v2018 = vmax.f32 %v2010, 0.0
        %v2019 = vmax.f32 %v2011, 0.0
        %v2020 = vmax.f32 %v2012, 0.0
        %2021 = vst [vmem:[#allocation2] sm:$0xf] 0
        %2022 = vst [vmem:[#allocation2 + $0x4] sm:$0x1] 0
        %s2023 = scalar_lea.vmem [#allocation2], 72
        %2024 = vst [vmem:[%s2023] sm:$0xf] 0
        %2025 = vst [vmem:[%s2023 + $0x4] sm:$0x1] 0
        %vm2026 = vcmask 1040384
        %vm2027 = vsmask.f32 256
        %vm2028 = vmand %vm2026, %vm2027
        %v2029 = vld [vmem:[#allocation2] sm:$0x1]
        %v2030 = vsel %vm2028, 0, %v2029
        %2031 = vst [vmem:[#allocation2] sm:$0x1] %v2030
        %v2032 = vld [vmem:[#allocation2 + $0x8] sm:$0x1]
        %v2033 = vsel %vm2028, 0, %v2032
        %2034 = vst [vmem:[#allocation2 + $0x8] sm:$0x1] %v2033
        %v2035 = vld [vmem:[#allocation2 + $0x10] sm:$0x1]
        %v2036 = vsel %vm2028, 0, %v2035
        %2037 = vst [vmem:[#allocation2 + $0x10] sm:$0x1] %v2036
        %v2038 = vld [vmem:[#allocation2 + $0x18] sm:$0x1]
        %v2039 = vsel %vm2028, 0, %v2038
        %2040 = vst [vmem:[#allocation2 + $0x18] sm:$0x1] %v2039
        %v2041 = vld [vmem:[#allocation2 + $0x20] sm:$0x1]
        %v2042 = vsel %vm2028, 0, %v2041
        %2043 = vst [vmem:[#allocation2 + $0x20] sm:$0x1] %v2042
        %v2044 = vld [vmem:[#allocation2 + $0x28] sm:$0x1]
        %v2045 = vsel %vm2028, 0, %v2044
        %2046 = vst [vmem:[#allocation2 + $0x28] sm:$0x1] %v2045
        %v2047 = vld [vmem:[#allocation2 + $0x30] sm:$0x1]
        %v2048 = vsel %vm2028, 0, %v2047
        %2049 = vst [vmem:[#allocation2 + $0x30] sm:$0x1] %v2048
        %v2050 = vld [vmem:[#allocation2 + $0x38] sm:$0x1]
        %v2051 = vsel %vm2028, 0, %v2050
        %2052 = vst [vmem:[#allocation2 + $0x38] sm:$0x1] %v2051
        %v2053 = vld [vmem:[#allocation2 + $0x40] sm:$0x1]
        %v2054 = vsel %vm2028, 0, %v2053
        %2055 = vst [vmem:[#allocation2 + $0x40] sm:$0x1] %v2054
        %v2056 = vld [vmem:[#allocation2 + $0x48] sm:$0x1]
        %v2057 = vsel %vm2028, 0, %v2056
        %2058 = vst [vmem:[#allocation2 + $0x48] sm:$0x1] %v2057
        %vm2059 = vsmask.f32 7938
        %vm2060 = vmand %vm2026, %vm2059
        %v2061 = vld [vmem:[#allocation2 + $0x4] sm:$0x1]
        %v2062 = vsel %vm2060, 0, %v2061
        %2063 = vst [vmem:[#allocation2 + $0x4] sm:$0x1] %v2062
        %v2064 = vld [vmem:[#allocation2 + $0xc] sm:$0x1]
        %v2065 = vsel %vm2060, 0, %v2064
        %2066 = vst [vmem:[#allocation2 + $0xc] sm:$0x1] %v2065
        %v2067 = vld [vmem:[#allocation2 + $0x14] sm:$0x1]
        %v2068 = vsel %vm2060, 0, %v2067
        %2069 = vst [vmem:[#allocation2 + $0x14] sm:$0x1] %v2068
        %v2070 = vld [vmem:[#allocation2 + $0x1c] sm:$0x1]
        %v2071 = vsel %vm2060, 0, %v2070
        %2072 = vst [vmem:[#allocation2 + $0x1c] sm:$0x1] %v2071
        %v2073 = vld [vmem:[#allocation2 + $0x24] sm:$0x1]
        %v2074 = vsel %vm2060, 0, %v2073
        %2075 = vst [vmem:[#allocation2 + $0x24] sm:$0x1] %v2074
        %v2076 = vld [vmem:[#allocation2 + $0x2c] sm:$0x1]
        %v2077 = vsel %vm2060, 0, %v2076
        %2078 = vst [vmem:[#allocation2 + $0x2c] sm:$0x1] %v2077
        %v2079 = vld [vmem:[#allocation2 + $0x34] sm:$0x1]
        %v2080 = vsel %vm2060, 0, %v2079
        %2081 = vst [vmem:[#allocation2 + $0x34] sm:$0x1] %v2080
        %v2082 = vld [vmem:[#allocation2 + $0x3c] sm:$0x1]
        %v2083 = vsel %vm2060, 0, %v2082
        %2084 = vst [vmem:[#allocation2 + $0x3c] sm:$0x1] %v2083
        %v2085 = vld [vmem:[#allocation2 + $0x44] sm:$0x1]
        %v2086 = vsel %vm2060, 0, %v2085
        %2087 = vst [vmem:[#allocation2 + $0x44] sm:$0x1] %v2086
        %v2088 = vld [vmem:[#allocation2 + $0x4c] sm:$0x1]
        %v2089 = vsel %vm2060, 0, %v2088
        %2090 = vst [vmem:[#allocation2 + $0x4c] sm:$0x1] %v2089
        %v2091 = vpack.c.bf16 %v2013, %v2013
        %v2092 = vpack.c.bf16 %v2014, %v2014
        %v2093 = vpack.c.bf16 %v2015, %v2015
        %v2094 = vpack.c.bf16 %v2016, %v2016
        %v2095 = vpack.c.bf16 %v2017, %v2017
        %v2096 = vpack.c.bf16 %v2018, %v2018
        %v2097 = vpack.c.bf16 %v2019, %v2019
        %v2098 = vpack.c.bf16 %v2020, %v2020
        %v2107 = vunpack.c.l.b16 %v2091
        %v2108 = vunpack.c.l.b16 %v2092
        %v2109 = vunpack.c.l.b16 %v2093
        %v2110 = vunpack.c.l.b16 %v2094
        %v2111 = vunpack.c.l.b16 %v2095
        %v2112 = vunpack.c.l.b16 %v2096
        %v2113 = vunpack.c.l.b16 %v2097
        %v2114 = vunpack.c.l.b16 %v2098
        %v2115 = vpack.c.b16 %v2107, %v2107
        %v2116 = vpack.c.b16 %v2108, %v2108
        %v2117 = vpack.c.b16 %v2109, %v2109
        %v2118 = vpack.c.b16 %v2110, %v2110
        %v2119 = vpack.c.b16 %v2111, %v2111
        %v2120 = vpack.c.b16 %v2112, %v2112
        %v2121 = vpack.c.b16 %v2113, %v2113
        %v2122 = vpack.c.b16 %v2114, %v2114
        %v2124 = vshrl.u32 %v2115, 16
        %v2126 = vrot.slane %v2124, 7
        %v2127 = vshll.u32 %v2115, 16
        %v2129 = vor.u32 %v2126, %v2127
        %v2130 = vrot.slane %v2126, 4
        %v2132 = vshrl.u32 %v2116, 16
        %v2134 = vrot.slane %v2132, 7
        %v2135 = vshll.u32 %v2116, 16
        %v2137 = vor.u32 %v2134, %v2135
        %v2138 = vrot.slane %v2134, 4
        %v2140 = vshrl.u32 %v2117, 16
        %v2142 = vrot.slane %v2140, 7
        %v2143 = vshll.u32 %v2117, 16
        %v2145 = vor.u32 %v2142, %v2143
        %v2146 = vrot.slane %v2142, 4
        %v2148 = vshrl.u32 %v2118, 16
        %v2150 = vrot.slane %v2148, 7
        %v2151 = vshll.u32 %v2118, 16
        %v2153 = vor.u32 %v2150, %v2151
        %v2154 = vrot.slane %v2150, 4
        %v2156 = vshrl.u32 %v2119, 16
        %v2158 = vrot.slane %v2156, 7
        %v2159 = vshll.u32 %v2119, 16
        %v2161 = vor.u32 %v2158, %v2159
        %v2162 = vrot.slane %v2158, 4
        %v2164 = vshrl.u32 %v2120, 16
        %v2166 = vrot.slane %v2164, 7
        %v2167 = vshll.u32 %v2120, 16
        %v2169 = vor.u32 %v2166, %v2167
        %v2170 = vrot.slane %v2166, 4
        %v2172 = vshrl.u32 %v2121, 16
        %v2174 = vrot.slane %v2172, 7
        %v2175 = vshll.u32 %v2121, 16
        %v2177 = vor.u32 %v2174, %v2175
        %v2178 = vrot.slane %v2174, 4
        %v2180 = vshrl.u32 %v2122, 16
        %v2182 = vrot.slane %v2180, 7
        %v2183 = vshll.u32 %v2122, 16
        %v2185 = vor.u32 %v2182, %v2183
        %v2186 = vrot.slane %v2182, 4
        %s2203 = scalar_lea.vmem [#allocation2], 8
        %vm2204 = vcmask 1043456
        %vm2205 = vmand %vm2204, %vm2059
        %v2206 = vld [vmem:[%s2203] sm:$0xf]
        %v2207 = vsel %vm2205, %v2129, %v2206
        %2208 = vst [vmem:[%s2203] sm:$0xf] %v2207
        %v2209 = vld [vmem:[%s2203 + $0x4] sm:$0x1]
        %v2210 = vsel %vm2028, %v2130, %v2209
        %2211 = vst [vmem:[%s2203 + $0x4] sm:$0x1] %v2210
        %v2212 = vld [vmem:[%s2203 + $0x8] sm:$0xf]
        %v2213 = vsel %vm2205, %v2137, %v2212
        %2214 = vst [vmem:[%s2203 + $0x8] sm:$0xf] %v2213
        %v2215 = vld [vmem:[%s2203 + $0xc] sm:$0x1]
        %v2216 = vsel %vm2028, %v2138, %v2215
        %2217 = vst [vmem:[%s2203 + $0xc] sm:$0x1] %v2216
        %v2218 = vld [vmem:[%s2203 + $0x10] sm:$0xf]
        %v2219 = vsel %vm2205, %v2145, %v2218
        %2220 = vst [vmem:[%s2203 + $0x10] sm:$0xf] %v2219
        %v2221 = vld [vmem:[%s2203 + $0x14] sm:$0x1]
        %v2222 = vsel %vm2028, %v2146, %v2221
        %2223 = vst [vmem:[%s2203 + $0x14] sm:$0x1] %v2222
        %v2224 = vld [vmem:[%s2203 + $0x18] sm:$0xf]
        %v2225 = vsel %vm2205, %v2153, %v2224
        %2226 = vst [vmem:[%s2203 + $0x18] sm:$0xf] %v2225
        %v2227 = vld [vmem:[%s2203 + $0x1c] sm:$0x1]
        %v2228 = vsel %vm2028, %v2154, %v2227
        %2229 = vst [vmem:[%s2203 + $0x1c] sm:$0x1] %v2228
        %v2230 = vld [vmem:[%s2203 + $0x20] sm:$0xf]
        %v2231 = vsel %vm2205, %v2161, %v2230
        %2232 = vst [vmem:[%s2203 + $0x20] sm:$0xf] %v2231
        %v2233 = vld [vmem:[%s2203 + $0x24] sm:$0x1]
        %v2234 = vsel %vm2028, %v2162, %v2233
        %2235 = vst [vmem:[%s2203 + $0x24] sm:$0x1] %v2234
        %v2236 = vld [vmem:[%s2203 + $0x28] sm:$0xf]
        %v2237 = vsel %vm2205, %v2169, %v2236
        %2238 = vst [vmem:[%s2203 + $0x28] sm:$0xf] %v2237
        %v2239 = vld [vmem:[%s2203 + $0x2c] sm:$0x1]
        %v2240 = vsel %vm2028, %v2170, %v2239
        %2241 = vst [vmem:[%s2203 + $0x2c] sm:$0x1] %v2240
        %v2242 = vld [vmem:[%s2203 + $0x30] sm:$0xf]
        %v2243 = vsel %vm2205, %v2177, %v2242
        %2244 = vst [vmem:[%s2203 + $0x30] sm:$0xf] %v2243
        %v2245 = vld [vmem:[%s2203 + $0x34] sm:$0x1]
        %v2246 = vsel %vm2028, %v2178, %v2245
        %2247 = vst [vmem:[%s2203 + $0x34] sm:$0x1] %v2246
        %v2248 = vld [vmem:[%s2203 + $0x38] sm:$0xf]
        %v2249 = vsel %vm2205, %v2185, %v2248
        %2250 = vst [vmem:[%s2203 + $0x38] sm:$0xf] %v2249
        %v2251 = vld [vmem:[%s2203 + $0x3c] sm:$0x1]
        %v2252 = vsel %vm2028, %v2186, %v2251
        %2253 = vst [vmem:[%s2203 + $0x3c] sm:$0x1] %v2252
        %v2254 = vld [vmem:[#allocation2] sm:$0xf]
        %v2255 = vld [vmem:[#allocation2 + $0x8] sm:$0xf]
        %v2256 = vld [vmem:[#allocation2 + $0x10] sm:$0xf]
        %v2257 = vld [vmem:[#allocation2 + $0x18] sm:$0xf]
        %v2258 = vld [vmem:[#allocation2 + $0x20] sm:$0xf]
        %v2259 = vld [vmem:[#allocation2 + $0x28] sm:$0xf]
        %v2260 = vld [vmem:[#allocation2 + $0x30] sm:$0xf]
        %v2261 = vld [vmem:[#allocation2 + $0x38] sm:$0xf]
        %v2262 = vld [vmem:[#allocation3] sm:$0xf]
        %v2263 = vld [vmem:[#allocation3 + $0x4] sm:$0xf]
        %v2264 = vld [vmem:[#allocation3 + $0x8] sm:$0xf]
        %v2265 = vld [vmem:[#allocation3 + $0xc] sm:$0xf]
        %v2266 = vld [vmem:[#allocation3 + $0x10] sm:$0xf]
        %v2267 = vld [vmem:[#allocation3 + $0x14] sm:$0xf]
        %v2268 = vld [vmem:[#allocation3 + $0x18] sm:$0xf]
        %v2269 = vld [vmem:[#allocation3 + $0x1c] sm:$0xf]
        %v2270 = vld [vmem:[#allocation3 + $0x20] sm:$0xf]
        %v2271 = vld [vmem:[#allocation3 + $0x24] sm:$0xf]
        %v2272 = vld [vmem:[#allocation3 + $0x28] sm:$0xf]
        %v2273 = vld [vmem:[#allocation3 + $0x2c] sm:$0xf]
        %v2274 = vld [vmem:[#allocation3 + $0x30] sm:$0xf]
        %v2275 = vld [vmem:[#allocation3 + $0x34] sm:$0xf]
        %v2276 = vld [vmem:[#allocation3 + $0x38] sm:$0xf]
        %v2277 = vld [vmem:[#allocation3 + $0x3c] sm:$0xf]
        %v2278 = vld [vmem:[#allocation2 + $0x4] sm:$0x1]
        %v2279 = vld [vmem:[#allocation2 + $0xc] sm:$0x1]
        %v2280 = vld [vmem:[#allocation2 + $0x14] sm:$0x1]
        %v2281 = vld [vmem:[#allocation2 + $0x1c] sm:$0x1]
        %v2282 = vld [vmem:[#allocation2 + $0x24] sm:$0x1]
        %v2283 = vld [vmem:[#allocation2 + $0x2c] sm:$0x1]
        %v2284 = vld [vmem:[#allocation2 + $0x34] sm:$0x1]
        %v2285 = vld [vmem:[#allocation2 + $0x3c] sm:$0x1]
        %v2287 = vshrl.u32 %v2254, 16
        %v2289 = vrot.slane %v2287, 4
        %v2290 = vshll.u32 %v2254, 16
        %v2292 = vrot.slane %v2290, 5
        %v2293 = vor.u32 %v2289, %v2292
        %v2294 = vrot.slane %v2293, 4
        %v2296 = vshll.u32 %v2278, 16
        %v2298 = vrot.slane %v2296, 5
        %v2299 = vsel %vm293, %v2294, %v2298
        %v2301 = vshrl.u32 %v2255, 16
        %v2303 = vrot.slane %v2301, 4
        %v2304 = vshll.u32 %v2255, 16
        %v2306 = vrot.slane %v2304, 5
        %v2307 = vor.u32 %v2303, %v2306
        %v2308 = vrot.slane %v2307, 4
        %v2310 = vshll.u32 %v2279, 16
        %v2312 = vrot.slane %v2310, 5
        %v2313 = vsel %vm293, %v2308, %v2312
        %v2315 = vshrl.u32 %v2256, 16
        %v2317 = vrot.slane %v2315, 4
        %v2318 = vshll.u32 %v2256, 16
        %v2320 = vrot.slane %v2318, 5
        %v2321 = vor.u32 %v2317, %v2320
        %v2322 = vrot.slane %v2321, 4
        %v2324 = vshll.u32 %v2280, 16
        %v2326 = vrot.slane %v2324, 5
        %v2327 = vsel %vm293, %v2322, %v2326
        %v2329 = vshrl.u32 %v2257, 16
        %v2331 = vrot.slane %v2329, 4
        %v2332 = vshll.u32 %v2257, 16
        %v2334 = vrot.slane %v2332, 5
        %v2335 = vor.u32 %v2331, %v2334
        %v2336 = vrot.slane %v2335, 4
        %v2338 = vshll.u32 %v2281, 16
        %v2340 = vrot.slane %v2338, 5
        %v2341 = vsel %vm293, %v2336, %v2340
        %v2343 = vshrl.u32 %v2258, 16
        %v2345 = vrot.slane %v2343, 4
        %v2346 = vshll.u32 %v2258, 16
        %v2348 = vrot.slane %v2346, 5
        %v2349 = vor.u32 %v2345, %v2348
        %v2350 = vrot.slane %v2349, 4
        %v2352 = vshll.u32 %v2282, 16
        %v2354 = vrot.slane %v2352, 5
        %v2355 = vsel %vm293, %v2350, %v2354
        %v2357 = vshrl.u32 %v2259, 16
        %v2359 = vrot.slane %v2357, 4
        %v2360 = vshll.u32 %v2259, 16
        %v2362 = vrot.slane %v2360, 5
        %v2363 = vor.u32 %v2359, %v2362
        %v2364 = vrot.slane %v2363, 4
        %v2366 = vshll.u32 %v2283, 16
        %v2368 = vrot.slane %v2366, 5
        %v2369 = vsel %vm293, %v2364, %v2368
        %v2371 = vshrl.u32 %v2260, 16
        %v2373 = vrot.slane %v2371, 4
        %v2374 = vshll.u32 %v2260, 16
        %v2376 = vrot.slane %v2374, 5
        %v2377 = vor.u32 %v2373, %v2376
        %v2378 = vrot.slane %v2377, 4
        %v2380 = vshll.u32 %v2284, 16
        %v2382 = vrot.slane %v2380, 5
        %v2383 = vsel %vm293, %v2378, %v2382
        %v2385 = vshrl.u32 %v2261, 16
        %v2387 = vrot.slane %v2385, 4
        %v2388 = vshll.u32 %v2261, 16
        %v2390 = vrot.slane %v2388, 5
        %v2391 = vor.u32 %v2387, %v2390
        %v2392 = vrot.slane %v2391, 4
        %v2394 = vshll.u32 %v2285, 16
        %v2396 = vrot.slane %v2394, 5
        %v2397 = vsel %vm293, %v2392, %v2396
        %v2398 = vld [vmem:[#allocation3 + $0x40] sm:$0xf]
        %v2399 = vld [vmem:[#allocation3 + $0x44] sm:$0xf]
        %v2400 = vld [vmem:[#allocation3 + $0x48] sm:$0xf]
        %v2401 = vld [vmem:[#allocation3 + $0x4c] sm:$0xf]
        %v2402 = vld [vmem:[#allocation3 + $0x50] sm:$0xf]
        %v2403 = vld [vmem:[#allocation3 + $0x54] sm:$0xf]
        %v2404 = vld [vmem:[#allocation3 + $0x58] sm:$0xf]
        %v2405 = vld [vmem:[#allocation3 + $0x5c] sm:$0xf]
        %v2406 = vld [vmem:[#allocation3 + $0x60] sm:$0xf]
        %v2407 = vld [vmem:[#allocation3 + $0x64] sm:$0xf]
        %v2408 = vld [vmem:[#allocation3 + $0x68] sm:$0xf]
        %v2409 = vld [vmem:[#allocation3 + $0x6c] sm:$0xf]
        %v2410 = vld [vmem:[#allocation3 + $0x70] sm:$0xf]
        %v2411 = vld [vmem:[#allocation3 + $0x74] sm:$0xf]
        %v2412 = vld [vmem:[#allocation3 + $0x78] sm:$0xf]
        %v2413 = vld [vmem:[#allocation3 + $0x7c] sm:$0xf]
        %v2414 = vunpack.c.l.b16 %v2299
        %v2415 = vunpack.c.l.b16 %v2313
        %v2416 = vunpack.c.l.b16 %v2327
        %v2417 = vunpack.c.l.b16 %v2341
        %v2418 = vunpack.c.l.b16 %v2355
        %v2419 = vunpack.c.l.b16 %v2369
        %v2420 = vunpack.c.l.b16 %v2383
        %v2421 = vunpack.c.l.b16 %v2397
        %v2422 = vpack.c.b16 %v2415, %v2414
        %v2423 = vpack.c.b16 %v2417, %v2416
        %v2424 = vpack.c.b16 %v2419, %v2418
        %v2425 = vpack.c.b16 %v2421, %v2420
        %v2446 = vunpack.c.l.b16 %v2398
        %v2447 = vunpack.c.l.b16 %v2399
        %v2448 = vunpack.c.l.b16 %v2400
        %v2449 = vunpack.c.l.b16 %v2401
        %v2450 = vunpack.c.l.b16 %v2402
        %v2451 = vunpack.c.l.b16 %v2403
        %v2452 = vunpack.c.l.b16 %v2404
        %v2453 = vunpack.c.l.b16 %v2405
        %v2454 = vunpack.c.l.b16 %v2406
        %v2455 = vunpack.c.l.b16 %v2407
        %v2456 = vunpack.c.l.b16 %v2408
        %v2457 = vunpack.c.l.b16 %v2409
        %v2458 = vunpack.c.l.b16 %v2410
        %v2459 = vunpack.c.l.b16 %v2411
        %v2460 = vunpack.c.l.b16 %v2412
        %v2461 = vunpack.c.l.b16 %v2413
        %v2462 = vpack.c.b16 %v2447, %v2446
        %v2463 = vpack.c.b16 %v2449, %v2448
        %v2464 = vpack.c.b16 %v2451, %v2450
        %v2465 = vpack.c.b16 %v2453, %v2452
        %v2466 = vpack.c.b16 %v2455, %v2454
        %v2467 = vpack.c.b16 %v2457, %v2456
        %v2468 = vpack.c.b16 %v2459, %v2458
        %v2469 = vpack.c.b16 %v2461, %v2460
        %2478 = vmatprep.subr.bf16.mxu0 0
        %2479 = vmatpush1.bf16.msra.mxu0 %v2462
        %2480 = vmatprep.subr.bf16.mxu0 0
        %2481 = vmatpush1.bf16.msra.mxu0 %v2463
        %2482 = vmatprep.subr.bf16.mxu0 0
        %2483 = vmatpush1.bf16.msra.mxu0 %v2464
        %2484 = vmatprep.subr.bf16.mxu0 0
        %2485 = vmatpush1.bf16.msra.mxu0 %v2465
        %2486 = vmatprep.subr.bf16.mxu0 0
        %2487 = vmatpush1.bf16.msra.mxu0 %v2466
        %2488 = vmatprep.subr.bf16.mxu0 0
        %2489 = vmatpush1.bf16.msra.mxu0 %v2467
        %2490 = vmatprep.subr.bf16.mxu0 0
        %2491 = vmatpush1.bf16.msra.mxu0 %v2468
        %2492 = vmatprep.subr.bf16.mxu0 0
        %2493 = vmatpush1.bf16.msra.mxu0 %v2469
        %2494 = vmatprep.subr.bf16.mxu0 0
        %2495 = vmatpush1.bf16.msra.mxu0 0
        %2496 = vmatprep.subr.bf16.mxu0 0
        %2497 = vmatpush1.bf16.msra.mxu0 0
        %2498 = vmatprep.subr.bf16.mxu0 0
        %2499 = vmatpush1.bf16.msra.mxu0 0
        %2500 = vmatprep.subr.bf16.mxu0 0
        %2501 = vmatpush1.bf16.msra.mxu0 0
        %2502 = vmatprep.subr.bf16.mxu0 0
        %2503 = vmatpush1.bf16.msra.mxu0 0
        %2504 = vmatprep.subr.bf16.mxu0 0
        %2505 = vmatpush1.bf16.msra.mxu0 0
        %2506 = vmatprep.subr.bf16.mxu0 0
        %2507 = vmatpush1.bf16.msra.mxu0 0
        %2508 = vmatprep.subr.bf16.mxu0 0
        %2509 = vmatpush1.bf16.msra.mxu0 0
        %2510 = vmatprep.mubr.bf16.mxu0 0
        %2511 = vmatmul.mubr.bf16.gmra.mrb[0].mxu0 %v2422
        %v2512 = vpop.f32.mrb[0].mxu0
        %v2513 = vadd.f32 0.0, %v2512
        %v2514 = vpop.f32.mrb[0].mxu0
        %v2515 = vpop.f32.mrb[0].mxu0
        %v2516 = vadd.f32 0.0, %v2515
        %v2517 = vpop.f32.mrb[0].mxu0
        %2518 = vmatprep.mubr.bf16.mxu0 0
        %2519 = vmatmul.mubr.bf16.gmra.mrb[0].mxu0 %v2423
        %v2520 = vpop.f32.mrb[0].mxu0
        %v2521 = vadd.f32 0.0, %v2520
        %v2522 = vpop.f32.mrb[0].mxu0
        %v2523 = vpop.f32.mrb[0].mxu0
        %v2524 = vadd.f32 0.0, %v2523
        %v2525 = vpop.f32.mrb[0].mxu0
        %2526 = vmatprep.mubr.bf16.mxu0 0
        %2527 = vmatmul.mubr.bf16.gmra.mrb[0].mxu0 %v2424
        %v2528 = vpop.f32.mrb[0].mxu0
        %v2529 = vadd.f32 0.0, %v2528
        %v2530 = vpop.f32.mrb[0].mxu0
        %v2531 = vpop.f32.mrb[0].mxu0
        %v2532 = vadd.f32 0.0, %v2531
        %v2533 = vpop.f32.mrb[0].mxu0
        %2534 = vmatprep.mubr.bf16.mxu0 0
        %2535 = vmatmul.mubr.bf16.gmra.mrb[0].mxu0 %v2425
        %v2536 = vpop.f32.mrb[0].mxu0
        %v2537 = vadd.f32 0.0, %v2536
        %v2538 = vpop.f32.mrb[0].mxu0
        %v2539 = vpop.f32.mrb[0].mxu0
        %v2540 = vadd.f32 0.0, %v2539
        %v2541 = vpop.f32.mrb[0].mxu0
        %2542 = vdwg.mxu0
        %v2551 = vunpack.c.l.b16 %v2254
        %v2552 = vunpack.c.l.b16 %v2255
        %v2553 = vunpack.c.l.b16 %v2256
        %v2554 = vunpack.c.l.b16 %v2257
        %v2555 = vunpack.c.l.b16 %v2258
        %v2556 = vunpack.c.l.b16 %v2259
        %v2557 = vunpack.c.l.b16 %v2260
        %v2558 = vunpack.c.l.b16 %v2261
        %v2559 = vpack.c.b16 %v2552, %v2551
        %v2560 = vpack.c.b16 %v2554, %v2553
        %v2561 = vpack.c.b16 %v2556, %v2555
        %v2562 = vpack.c.b16 %v2558, %v2557
        %v2583 = vunpack.c.l.b16 %v2262
        %v2584 = vunpack.c.l.b16 %v2263
        %v2585 = vunpack.c.l.b16 %v2264
        %v2586 = vunpack.c.l.b16 %v2265
        %v2587 = vunpack.c.l.b16 %v2266
        %v2588 = vunpack.c.l.b16 %v2267
        %v2589 = vunpack.c.l.b16 %v2268
        %v2590 = vunpack.c.l.b16 %v2269
        %v2591 = vunpack.c.l.b16 %v2270
        %v2592 = vunpack.c.l.b16 %v2271
        %v2593 = vunpack.c.l.b16 %v2272
        %v2594 = vunpack.c.l.b16 %v2273
        %v2595 = vunpack.c.l.b16 %v2274
        %v2596 = vunpack.c.l.b16 %v2275
        %v2597 = vunpack.c.l.b16 %v2276
        %v2598 = vunpack.c.l.b16 %v2277
        %v2599 = vpack.c.b16 %v2584, %v2583
        %v2600 = vpack.c.b16 %v2586, %v2585
        %v2601 = vpack.c.b16 %v2588, %v2587
        %v2602 = vpack.c.b16 %v2590, %v2589
        %v2603 = vpack.c.b16 %v2592, %v2591
        %v2604 = vpack.c.b16 %v2594, %v2593
        %v2605 = vpack.c.b16 %v2596, %v2595
        %v2606 = vpack.c.b16 %v2598, %v2597
        %2615 = vmatprep.subr.bf16.mxu0 0
        %2616 = vmatpush1.bf16.msra.mxu0 %v2599
        %2617 = vmatprep.subr.bf16.mxu0 0
        %2618 = vmatpush1.bf16.msra.mxu0 %v2600
        %2619 = vmatprep.subr.bf16.mxu0 0
        %2620 = vmatpush1.bf16.msra.mxu0 %v2601
        %2621 = vmatprep.subr.bf16.mxu0 0
        %2622 = vmatpush1.bf16.msra.mxu0 %v2602
        %2623 = vmatprep.subr.bf16.mxu0 0
        %2624 = vmatpush1.bf16.msra.mxu0 %v2603
        %2625 = vmatprep.subr.bf16.mxu0 0
        %2626 = vmatpush1.bf16.msra.mxu0 %v2604
        %2627 = vmatprep.subr.bf16.mxu0 0
        %2628 = vmatpush1.bf16.msra.mxu0 %v2605
        %2629 = vmatprep.subr.bf16.mxu0 0
        %2630 = vmatpush1.bf16.msra.mxu0 %v2606
        %2631 = vmatprep.subr.bf16.mxu0 0
        %2632 = vmatpush1.bf16.msra.mxu0 0
        %2633 = vmatprep.subr.bf16.mxu0 0
        %2634 = vmatpush1.bf16.msra.mxu0 0
        %2635 = vmatprep.subr.bf16.mxu0 0
        %2636 = vmatpush1.bf16.msra.mxu0 0
        %2637 = vmatprep.subr.bf16.mxu0 0
        %2638 = vmatpush1.bf16.msra.mxu0 0
        %2639 = vmatprep.subr.bf16.mxu0 0
        %2640 = vmatpush1.bf16.msra.mxu0 0
        %2641 = vmatprep.subr.bf16.mxu0 0
        %2642 = vmatpush1.bf16.msra.mxu0 0
        %2643 = vmatprep.subr.bf16.mxu0 0
        %2644 = vmatpush1.bf16.msra.mxu0 0
        %2645 = vmatprep.subr.bf16.mxu0 0
        %2646 = vmatpush1.bf16.msra.mxu0 0
        %2647 = vmatprep.mubr.bf16.mxu0 0
        %2648 = vmatmul.mubr.bf16.gmra.mrb[0].mxu0 %v2559
        %v2649 = vpop.f32.mrb[0].mxu0
        %v2650 = vadd.f32 %v2513, %v2649
        %v2651 = vpop.f32.mrb[0].mxu0
        %v2652 = vpop.f32.mrb[0].mxu0
        %v2653 = vadd.f32 %v2516, %v2652
        %v2654 = vpop.f32.mrb[0].mxu0
        %2655 = vmatprep.mubr.bf16.mxu0 0
        %2656 = vmatmul.mubr.bf16.gmra.mrb[0].mxu0 %v2560
        %v2657 = vpop.f32.mrb[0].mxu0
        %v2658 = vadd.f32 %v2521, %v2657
        %v2659 = vpop.f32.mrb[0].mxu0
        %v2660 = vpop.f32.mrb[0].mxu0
        %v2661 = vadd.f32 %v2524, %v2660
        %v2662 = vpop.f32.mrb[0].mxu0
        %2663 = vmatprep.mubr.bf16.mxu0 0
        %2664 = vmatmul.mubr.bf16.gmra.mrb[0].mxu0 %v2561
        %v2665 = vpop.f32.mrb[0].mxu0
        %v2666 = vadd.f32 %v2529, %v2665
        %v2667 = vpop.f32.mrb[0].mxu0
        %v2668 = vpop.f32.mrb[0].mxu0
        %v2669 = vadd.f32 %v2532, %v2668
        %v2670 = vpop.f32.mrb[0].mxu0
        %2671 = vmatprep.mubr.bf16.mxu0 0
        %2672 = vmatmul.mubr.bf16.gmra.mrb[0].mxu0 %v2562
        %v2673 = vpop.f32.mrb[0].mxu0
        %v2674 = vadd.f32 %v2537, %v2673
        %v2675 = vpop.f32.mrb[0].mxu0
        %v2676 = vpop.f32.mrb[0].mxu0
        %v2677 = vadd.f32 %v2540, %v2676
        %v2678 = vpop.f32.mrb[0].mxu0
        %2679 = vdwg.mxu0
        %v2680 = vld [vmem:[#allocation2] sm:$0xe]
        %v2681 = vld [vmem:[#allocation2 + $0x8] sm:$0xe]
        %v2682 = vld [vmem:[#allocation2 + $0x10] sm:$0xe]
        %v2683 = vld [vmem:[#allocation2 + $0x18] sm:$0xe]
        %v2684 = vld [vmem:[#allocation2 + $0x20] sm:$0xe]
        %v2685 = vld [vmem:[#allocation2 + $0x28] sm:$0xe]
        %v2686 = vld [vmem:[#allocation2 + $0x30] sm:$0xe]
        %v2687 = vld [vmem:[#allocation2 + $0x38] sm:$0xe]
        %vm2704 = vcmask 1042432
        %vm2705 = vcmask 1046532
        %vm2706 = vmor %vm2704, %vm2705
        %v2707 = vrot.slane %v2680, 5
        %v2708 = vrot.slane %v2707, 4
        %v2709 = vrot.slane %v2278, 5
        %v2710 = vsel %vm2706, %v2708, %v2709
        %v2711 = vrot.slane %v2681, 5
        %v2712 = vrot.slane %v2711, 4
        %v2713 = vrot.slane %v2279, 5
        %v2714 = vsel %vm2706, %v2712, %v2713
        %v2715 = vrot.slane %v2682, 5
        %v2716 = vrot.slane %v2715, 4
        %v2717 = vrot.slane %v2280, 5
        %v2718 = vsel %vm2706, %v2716, %v2717
        %v2719 = vrot.slane %v2683, 5
        %v2720 = vrot.slane %v2719, 4
        %v2721 = vrot.slane %v2281, 5
        %v2722 = vsel %vm2706, %v2720, %v2721
        %v2723 = vrot.slane %v2684, 5
        %v2724 = vrot.slane %v2723, 4
        %v2725 = vrot.slane %v2282, 5
        %v2726 = vsel %vm2706, %v2724, %v2725
        %v2727 = vrot.slane %v2685, 5
        %v2728 = vrot.slane %v2727, 4
        %v2729 = vrot.slane %v2283, 5
        %v2730 = vsel %vm2706, %v2728, %v2729
        %v2731 = vrot.slane %v2686, 5
        %v2732 = vrot.slane %v2731, 4
        %v2733 = vrot.slane %v2284, 5
        %v2734 = vsel %vm2706, %v2732, %v2733
        %v2735 = vrot.slane %v2687, 5
        %v2736 = vrot.slane %v2735, 4
        %v2737 = vrot.slane %v2285, 5
        %v2738 = vsel %vm2706, %v2736, %v2737
        %v2739 = vld [vmem:[#allocation3 + $0x80] sm:$0xf]
        %v2740 = vld [vmem:[#allocation3 + $0x84] sm:$0xf]
        %v2741 = vld [vmem:[#allocation3 + $0x88] sm:$0xf]
        %v2742 = vld [vmem:[#allocation3 + $0x8c] sm:$0xf]
        %v2743 = vld [vmem:[#allocation3 + $0x90] sm:$0xf]
        %v2744 = vld [vmem:[#allocation3 + $0x94] sm:$0xf]
        %v2745 = vld [vmem:[#allocation3 + $0x98] sm:$0xf]
        %v2746 = vld [vmem:[#allocation3 + $0x9c] sm:$0xf]
        %v2747 = vld [vmem:[#allocation3 + $0xa0] sm:$0xf]
        %v2748 = vld [vmem:[#allocation3 + $0xa4] sm:$0xf]
        %v2749 = vld [vmem:[#allocation3 + $0xa8] sm:$0xf]
        %v2750 = vld [vmem:[#allocation3 + $0xac] sm:$0xf]
        %v2751 = vld [vmem:[#allocation3 + $0xb0] sm:$0xf]
        %v2752 = vld [vmem:[#allocation3 + $0xb4] sm:$0xf]
        %v2753 = vld [vmem:[#allocation3 + $0xb8] sm:$0xf]
        %v2754 = vld [vmem:[#allocation3 + $0xbc] sm:$0xf]
        %v2755 = vunpack.c.l.b16 %v2710
        %v2756 = vunpack.c.l.b16 %v2714
        %v2757 = vunpack.c.l.b16 %v2718
        %v2758 = vunpack.c.l.b16 %v2722
        %v2759 = vunpack.c.l.b16 %v2726
        %v2760 = vunpack.c.l.b16 %v2730
        %v2761 = vunpack.c.l.b16 %v2734
        %v2762 = vunpack.c.l.b16 %v2738
        %v2763 = vpack.c.b16 %v2756, %v2755
        %v2764 = vpack.c.b16 %v2758, %v2757
        %v2765 = vpack.c.b16 %v2760, %v2759
        %v2766 = vpack.c.b16 %v2762, %v2761
        %v2787 = vunpack.c.l.b16 %v2739
        %v2788 = vunpack.c.l.b16 %v2740
        %v2789 = vunpack.c.l.b16 %v2741
        %v2790 = vunpack.c.l.b16 %v2742
        %v2791 = vunpack.c.l.b16 %v2743
        %v2792 = vunpack.c.l.b16 %v2744
        %v2793 = vunpack.c.l.b16 %v2745
        %v2794 = vunpack.c.l.b16 %v2746
        %v2795 = vunpack.c.l.b16 %v2747
        %v2796 = vunpack.c.l.b16 %v2748
        %v2797 = vunpack.c.l.b16 %v2749
        %v2798 = vunpack.c.l.b16 %v2750
        %v2799 = vunpack.c.l.b16 %v2751
        %v2800 = vunpack.c.l.b16 %v2752
        %v2801 = vunpack.c.l.b16 %v2753
        %v2802 = vunpack.c.l.b16 %v2754
        %v2803 = vpack.c.b16 %v2788, %v2787
        %v2804 = vpack.c.b16 %v2790, %v2789
        %v2805 = vpack.c.b16 %v2792, %v2791
        %v2806 = vpack.c.b16 %v2794, %v2793
        %v2807 = vpack.c.b16 %v2796, %v2795
        %v2808 = vpack.c.b16 %v2798, %v2797
        %v2809 = vpack.c.b16 %v2800, %v2799
        %v2810 = vpack.c.b16 %v2802, %v2801
        %2819 = vmatprep.subr.bf16.mxu0 0
        %2820 = vmatpush1.bf16.msra.mxu0 %v2803
        %2821 = vmatprep.subr.bf16.mxu0 0
        %2822 = vmatpush1.bf16.msra.mxu0 %v2804
        %2823 = vmatprep.subr.bf16.mxu0 0
        %2824 = vmatpush1.bf16.msra.mxu0 %v2805
        %2825 = vmatprep.subr.bf16.mxu0 0
        %2826 = vmatpush1.bf16.msra.mxu0 %v2806
        %2827 = vmatprep.subr.bf16.mxu0 0
        %2828 = vmatpush1.bf16.msra.mxu0 %v2807
        %2829 = vmatprep.subr.bf16.mxu0 0
        %2830 = vmatpush1.bf16.msra.mxu0 %v2808
        %2831 = vmatprep.subr.bf16.mxu0 0
        %2832 = vmatpush1.bf16.msra.mxu0 %v2809
        %2833 = vmatprep.subr.bf16.mxu0 0
        %2834 = vmatpush1.bf16.msra.mxu0 %v2810
        %2835 = vmatprep.subr.bf16.mxu0 0
        %2836 = vmatpush1.bf16.msra.mxu0 0
        %2837 = vmatprep.subr.bf16.mxu0 0
        %2838 = vmatpush1.bf16.msra.mxu0 0
        %2839 = vmatprep.subr.bf16.mxu0 0
        %2840 = vmatpush1.bf16.msra.mxu0 0
        %2841 = vmatprep.subr.bf16.mxu0 0
        %2842 = vmatpush1.bf16.msra.mxu0 0
        %2843 = vmatprep.subr.bf16.mxu0 0
        %2844 = vmatpush1.bf16.msra.mxu0 0
        %2845 = vmatprep.subr.bf16.mxu0 0
        %2846 = vmatpush1.bf16.msra.mxu0 0
        %2847 = vmatprep.subr.bf16.mxu0 0
        %2848 = vmatpush1.bf16.msra.mxu0 0
        %2849 = vmatprep.subr.bf16.mxu0 0
        %2850 = vmatpush1.bf16.msra.mxu0 0
        %2851 = vmatprep.mubr.bf16.mxu0 0
        %2852 = vmatmul.mubr.bf16.gmra.mrb[0].mxu0 %v2763
        %v2853 = vpop.f32.mrb[0].mxu0
        %v2854 = vadd.f32 0.0, %v2853
        %v2855 = vpop.f32.mrb[0].mxu0
        %v2856 = vpop.f32.mrb[0].mxu0
        %v2857 = vadd.f32 0.0, %v2856
        %v2858 = vpop.f32.mrb[0].mxu0
        %2859 = vmatprep.mubr.bf16.mxu0 0
        %2860 = vmatmul.mubr.bf16.gmra.mrb[0].mxu0 %v2764
        %v2861 = vpop.f32.mrb[0].mxu0
        %v2862 = vadd.f32 0.0, %v2861
        %v2863 = vpop.f32.mrb[0].mxu0
        %v2864 = vpop.f32.mrb[0].mxu0
        %v2865 = vadd.f32 0.0, %v2864
        %v2866 = vpop.f32.mrb[0].mxu0
        %2867 = vmatprep.mubr.bf16.mxu0 0
        %2868 = vmatmul.mubr.bf16.gmra.mrb[0].mxu0 %v2765
        %v2869 = vpop.f32.mrb[0].mxu0
        %v2870 = vadd.f32 0.0, %v2869
        %v2871 = vpop.f32.mrb[0].mxu0
        %v2872 = vpop.f32.mrb[0].mxu0
        %v2873 = vadd.f32 0.0, %v2872
        %v2874 = vpop.f32.mrb[0].mxu0
        %2875 = vmatprep.mubr.bf16.mxu0 0
        %2876 = vmatmul.mubr.bf16.gmra.mrb[0].mxu0 %v2766
        %v2877 = vpop.f32.mrb[0].mxu0
        %v2878 = vadd.f32 0.0, %v2877
        %v2879 = vpop.f32.mrb[0].mxu0
        %v2880 = vpop.f32.mrb[0].mxu0
        %v2881 = vadd.f32 0.0, %v2880
        %v2882 = vpop.f32.mrb[0].mxu0
        %2883 = vdwg.mxu0
        %v2884 = vadd.f32 %v2650, %v2854
        %v2885 = vadd.f32 %v2653, %v2857
        %v2886 = vadd.f32 %v2658, %v2862
        %v2887 = vadd.f32 %v2661, %v2865
        %v2888 = vadd.f32 %v2666, %v2870
        %v2889 = vadd.f32 %v2669, %v2873
        %v2890 = vadd.f32 %v2674, %v2878
        %v2891 = vadd.f32 %v2677, %v2881
        %v2892 = vld [vmem:[%s2203] sm:$0xf]
        %v2893 = vld [vmem:[%s2203 + $0x8] sm:$0xf]
        %v2894 = vld [vmem:[%s2203 + $0x10] sm:$0xf]
        %v2895 = vld [vmem:[%s2203 + $0x18] sm:$0xf]
        %v2896 = vld [vmem:[%s2203 + $0x20] sm:$0xf]
        %v2897 = vld [vmem:[%s2203 + $0x28] sm:$0xf]
        %v2898 = vld [vmem:[%s2203 + $0x30] sm:$0xf]
        %v2899 = vld [vmem:[%s2203 + $0x38] sm:$0xf]
        %v2900 = vld [vmem:[#allocation3 + $0xc0] sm:$0xf]
        %v2901 = vld [vmem:[#allocation3 + $0xc4] sm:$0xf]
        %v2902 = vld [vmem:[#allocation3 + $0xc8] sm:$0xf]
        %v2903 = vld [vmem:[#allocation3 + $0xcc] sm:$0xf]
        %v2904 = vld [vmem:[#allocation3 + $0xd0] sm:$0xf]
        %v2905 = vld [vmem:[#allocation3 + $0xd4] sm:$0xf]
        %v2906 = vld [vmem:[#allocation3 + $0xd8] sm:$0xf]
        %v2907 = vld [vmem:[#allocation3 + $0xdc] sm:$0xf]
        %v2908 = vld [vmem:[#allocation3 + $0xe0] sm:$0xf]
        %v2909 = vld [vmem:[#allocation3 + $0xe4] sm:$0xf]
        %v2910 = vld [vmem:[#allocation3 + $0xe8] sm:$0xf]
        %v2911 = vld [vmem:[#allocation3 + $0xec] sm:$0xf]
        %v2912 = vld [vmem:[#allocation3 + $0xf0] sm:$0xf]
        %v2913 = vld [vmem:[#allocation3 + $0xf4] sm:$0xf]
        %v2914 = vld [vmem:[#allocation3 + $0xf8] sm:$0xf]
        %v2915 = vld [vmem:[#allocation3 + $0xfc] sm:$0xf]
        %v2924 = vunpack.c.l.b16 %v2892
        %v2925 = vunpack.c.l.b16 %v2893
        %v2926 = vunpack.c.l.b16 %v2894
        %v2927 = vunpack.c.l.b16 %v2895
        %v2928 = vunpack.c.l.b16 %v2896
        %v2929 = vunpack.c.l.b16 %v2897
        %v2930 = vunpack.c.l.b16 %v2898
        %v2931 = vunpack.c.l.b16 %v2899
        %v2932 = vpack.c.b16 %v2925, %v2924
        %v2933 = vpack.c.b16 %v2927, %v2926
        %v2934 = vpack.c.b16 %v2929, %v2928
        %v2935 = vpack.c.b16 %v2931, %v2930
        %v2956 = vunpack.c.l.b16 %v2900
        %v2957 = vunpack.c.l.b16 %v2901
        %v2958 = vunpack.c.l.b16 %v2902
        %v2959 = vunpack.c.l.b16 %v2903
        %v2960 = vunpack.c.l.b16 %v2904
        %v2961 = vunpack.c.l.b16 %v2905
        %v2962 = vunpack.c.l.b16 %v2906
        %v2963 = vunpack.c.l.b16 %v2907
        %v2964 = vunpack.c.l.b16 %v2908
        %v2965 = vunpack.c.l.b16 %v2909
        %v2966 = vunpack.c.l.b16 %v2910
        %v2967 = vunpack.c.l.b16 %v2911
        %v2968 = vunpack.c.l.b16 %v2912
        %v2969 = vunpack.c.l.b16 %v2913
        %v2970 = vunpack.c.l.b16 %v2914
        %v2971 = vunpack.c.l.b16 %v2915
        %v2972 = vpack.c.b16 %v2957, %v2956
        %v2973 = vpack.c.b16 %v2959, %v2958
        %v2974 = vpack.c.b16 %v2961, %v2960
        %v2975 = vpack.c.b16 %v2963, %v2962
        %v2976 = vpack.c.b16 %v2965, %v2964
        %v2977 = vpack.c.b16 %v2967, %v2966
        %v2978 = vpack.c.b16 %v2969, %v2968
        %v2979 = vpack.c.b16 %v2971, %v2970
        %2988 = vmatprep.subr.bf16.mxu0 0
        %2989 = vmatpush1.bf16.msra.mxu0 %v2972
        %2990 = vmatprep.subr.bf16.mxu0 0
        %2991 = vmatpush1.bf16.msra.mxu0 %v2973
        %2992 = vmatprep.subr.bf16.mxu0 0
        %2993 = vmatpush1.bf16.msra.mxu0 %v2974
        %2994 = vmatprep.subr.bf16.mxu0 0
        %2995 = vmatpush1.bf16.msra.mxu0 %v2975
        %2996 = vmatprep.subr.bf16.mxu0 0
        %2997 = vmatpush1.bf16.msra.mxu0 %v2976
        %2998 = vmatprep.subr.bf16.mxu0 0
        %2999 = vmatpush1.bf16.msra.mxu0 %v2977
        %3000 = vmatprep.subr.bf16.mxu0 0
        %3001 = vmatpush1.bf16.msra.mxu0 %v2978
        %3002 = vmatprep.subr.bf16.mxu0 0
        %3003 = vmatpush1.bf16.msra.mxu0 %v2979
        %3004 = vmatprep.subr.bf16.mxu0 0
        %3005 = vmatpush1.bf16.msra.mxu0 0
        %3006 = vmatprep.subr.bf16.mxu0 0
        %3007 = vmatpush1.bf16.msra.mxu0 0
        %3008 = vmatprep.subr.bf16.mxu0 0
        %3009 = vmatpush1.bf16.msra.mxu0 0
        %3010 = vmatprep.subr.bf16.mxu0 0
        %3011 = vmatpush1.bf16.msra.mxu0 0
        %3012 = vmatprep.subr.bf16.mxu0 0
        %3013 = vmatpush1.bf16.msra.mxu0 0
        %3014 = vmatprep.subr.bf16.mxu0 0
        %3015 = vmatpush1.bf16.msra.mxu0 0
        %3016 = vmatprep.subr.bf16.mxu0 0
        %3017 = vmatpush1.bf16.msra.mxu0 0
        %3018 = vmatprep.subr.bf16.mxu0 0
        %3019 = vmatpush1.bf16.msra.mxu0 0
        %3020 = vmatprep.mubr.bf16.mxu0 0
        %3021 = vmatmul.mubr.bf16.gmra.mrb[0].mxu0 %v2932
        %v3022 = vpop.f32.mrb[0].mxu0
        %v3023 = vadd.f32 0.0, %v3022
        %v3024 = vpop.f32.mrb[0].mxu0
        %v3025 = vpop.f32.mrb[0].mxu0
        %v3026 = vadd.f32 0.0, %v3025
        %v3027 = vpop.f32.mrb[0].mxu0
        %3028 = vmatprep.mubr.bf16.mxu0 0
        %3029 = vmatmul.mubr.bf16.gmra.mrb[0].mxu0 %v2933
        %v3030 = vpop.f32.mrb[0].mxu0
        %v3031 = vadd.f32 0.0, %v3030
        %v3032 = vpop.f32.mrb[0].mxu0
        %v3033 = vpop.f32.mrb[0].mxu0
        %v3034 = vadd.f32 0.0, %v3033
        %v3035 = vpop.f32.mrb[0].mxu0
        %3036 = vmatprep.mubr.bf16.mxu0 0
        %3037 = vmatmul.mubr.bf16.gmra.mrb[0].mxu0 %v2934
        %v3038 = vpop.f32.mrb[0].mxu0
        %v3039 = vadd.f32 0.0, %v3038
        %v3040 = vpop.f32.mrb[0].mxu0
        %v3041 = vpop.f32.mrb[0].mxu0
        %v3042 = vadd.f32 0.0, %v3041
        %v3043 = vpop.f32.mrb[0].mxu0
        %3044 = vmatprep.mubr.bf16.mxu0 0
        %3045 = vmatmul.mubr.bf16.gmra.mrb[0].mxu0 %v2935
        %v3046 = vpop.f32.mrb[0].mxu0
        %v3047 = vadd.f32 0.0, %v3046
        %v3048 = vpop.f32.mrb[0].mxu0
        %v3049 = vpop.f32.mrb[0].mxu0
        %v3050 = vadd.f32 0.0, %v3049
        %v3051 = vpop.f32.mrb[0].mxu0
        %3052 = vdwg.mxu0
        %v3053 = vadd.f32 %v2884, %v3023
        %v3054 = vadd.f32 %v2885, %v3026
        %v3055 = vadd.f32 %v2886, %v3031
        %v3056 = vadd.f32 %v2887, %v3034
        %v3057 = vadd.f32 %v2888, %v3039
        %v3058 = vadd.f32 %v2889, %v3042
        %v3059 = vadd.f32 %v2890, %v3047
        %v3060 = vadd.f32 %v2891, %v3050
        %v3061 = vld [vmem:[%s2203] sm:$0xf]
        %v3062 = vld [vmem:[%s2203 + $0x4] sm:$0x1]
        %v3063 = vld [vmem:[%s2203 + $0x8] sm:$0xf]
        %v3064 = vld [vmem:[%s2203 + $0xc] sm:$0x1]
        %v3065 = vld [vmem:[%s2203 + $0x10] sm:$0xf]
        %v3066 = vld [vmem:[%s2203 + $0x14] sm:$0x1]
        %v3067 = vld [vmem:[%s2203 + $0x18] sm:$0xf]
        %v3068 = vld [vmem:[%s2203 + $0x1c] sm:$0x1]
        %v3069 = vld [vmem:[%s2203 + $0x20] sm:$0xf]
        %v3070 = vld [vmem:[%s2203 + $0x24] sm:$0x1]
        %v3071 = vld [vmem:[%s2203 + $0x28] sm:$0xf]
        %v3072 = vld [vmem:[%s2203 + $0x2c] sm:$0x1]
        %v3073 = vld [vmem:[%s2203 + $0x30] sm:$0xf]
        %v3074 = vld [vmem:[%s2203 + $0x34] sm:$0x1]
        %v3075 = vld [vmem:[%s2203 + $0x38] sm:$0xf]
        %v3076 = vld [vmem:[%s2203 + $0x3c] sm:$0x1]
        %v3078 = vshrl.u32 %v3061, 16
        %v3080 = vrot.slane %v3078, 4
        %v3081 = vshll.u32 %v3061, 16
        %v3083 = vrot.slane %v3081, 5
        %v3084 = vor.u32 %v3080, %v3083
        %v3085 = vrot.slane %v3084, 4
        %v3087 = vshll.u32 %v3062, 16
        %v3089 = vrot.slane %v3087, 5
        %v3090 = vsel %vm293, %v3085, %v3089
        %v3092 = vshrl.u32 %v3063, 16
        %v3094 = vrot.slane %v3092, 4
        %v3095 = vshll.u32 %v3063, 16
        %v3097 = vrot.slane %v3095, 5
        %v3098 = vor.u32 %v3094, %v3097
        %v3099 = vrot.slane %v3098, 4
        %v3101 = vshll.u32 %v3064, 16
        %v3103 = vrot.slane %v3101, 5
        %v3104 = vsel %vm293, %v3099, %v3103
        %v3106 = vshrl.u32 %v3065, 16
        %v3108 = vrot.slane %v3106, 4
        %v3109 = vshll.u32 %v3065, 16
        %v3111 = vrot.slane %v3109, 5
        %v3112 = vor.u32 %v3108, %v3111
        %v3113 = vrot.slane %v3112, 4
        %v3115 = vshll.u32 %v3066, 16
        %v3117 = vrot.slane %v3115, 5
        %v3118 = vsel %vm293, %v3113, %v3117
        %v3120 = vshrl.u32 %v3067, 16
        %v3122 = vrot.slane %v3120, 4
        %v3123 = vshll.u32 %v3067, 16
        %v3125 = vrot.slane %v3123, 5
        %v3126 = vor.u32 %v3122, %v3125
        %v3127 = vrot.slane %v3126, 4
        %v3129 = vshll.u32 %v3068, 16
        %v3131 = vrot.slane %v3129, 5
        %v3132 = vsel %vm293, %v3127, %v3131
        %v3134 = vshrl.u32 %v3069, 16
        %v3136 = vrot.slane %v3134, 4
        %v3137 = vshll.u32 %v3069, 16
        %v3139 = vrot.slane %v3137, 5
        %v3140 = vor.u32 %v3136, %v3139
        %v3141 = vrot.slane %v3140, 4
        %v3143 = vshll.u32 %v3070, 16
        %v3145 = vrot.slane %v3143, 5
        %v3146 = vsel %vm293, %v3141, %v3145
        %v3148 = vshrl.u32 %v3071, 16
        %v3150 = vrot.slane %v3148, 4
        %v3151 = vshll.u32 %v3071, 16
        %v3153 = vrot.slane %v3151, 5
        %v3154 = vor.u32 %v3150, %v3153
        %v3155 = vrot.slane %v3154, 4
        %v3157 = vshll.u32 %v3072, 16
        %v3159 = vrot.slane %v3157, 5
        %v3160 = vsel %vm293, %v3155, %v3159
        %v3162 = vshrl.u32 %v3073, 16
        %v3164 = vrot.slane %v3162, 4
        %v3165 = vshll.u32 %v3073, 16
        %v3167 = vrot.slane %v3165, 5
        %v3168 = vor.u32 %v3164, %v3167
        %v3169 = vrot.slane %v3168, 4
        %v3171 = vshll.u32 %v3074, 16
        %v3173 = vrot.slane %v3171, 5
        %v3174 = vsel %vm293, %v3169, %v3173
        %v3176 = vshrl.u32 %v3075, 16
        %v3178 = vrot.slane %v3176, 4
        %v3179 = vshll.u32 %v3075, 16
        %v3181 = vrot.slane %v3179, 5
        %v3182 = vor.u32 %v3178, %v3181
        %v3183 = vrot.slane %v3182, 4
        %v3185 = vshll.u32 %v3076, 16
        %v3187 = vrot.slane %v3185, 5
        %v3188 = vsel %vm293, %v3183, %v3187
        %v3189 = vld [vmem:[#allocation3 + $0x100] sm:$0xf]
        %v3190 = vld [vmem:[#allocation3 + $0x104] sm:$0xf]
        %v3191 = vld [vmem:[#allocation3 + $0x108] sm:$0xf]
        %v3192 = vld [vmem:[#allocation3 + $0x10c] sm:$0xf]
        %v3193 = vld [vmem:[#allocation3 + $0x110] sm:$0xf]
        %v3194 = vld [vmem:[#allocation3 + $0x114] sm:$0xf]
        %v3195 = vld [vmem:[#allocation3 + $0x118] sm:$0xf]
        %v3196 = vld [vmem:[#allocation3 + $0x11c] sm:$0xf]
        %v3197 = vld [vmem:[#allocation3 + $0x120] sm:$0xf]
        %v3198 = vld [vmem:[#allocation3 + $0x124] sm:$0xf]
        %v3199 = vld [vmem:[#allocation3 + $0x128] sm:$0xf]
        %v3200 = vld [vmem:[#allocation3 + $0x12c] sm:$0xf]
        %v3201 = vld [vmem:[#allocation3 + $0x130] sm:$0xf]
        %v3202 = vld [vmem:[#allocation3 + $0x134] sm:$0xf]
        %v3203 = vld [vmem:[#allocation3 + $0x138] sm:$0xf]
        %v3204 = vld [vmem:[#allocation3 + $0x13c] sm:$0xf]
        %v3205 = vunpack.c.l.b16 %v3090
        %v3206 = vunpack.c.l.b16 %v3104
        %v3207 = vunpack.c.l.b16 %v3118
        %v3208 = vunpack.c.l.b16 %v3132
        %v3209 = vunpack.c.l.b16 %v3146
        %v3210 = vunpack.c.l.b16 %v3160
        %v3211 = vunpack.c.l.b16 %v3174
        %v3212 = vunpack.c.l.b16 %v3188
        %v3213 = vpack.c.b16 %v3206, %v3205
        %v3214 = vpack.c.b16 %v3208, %v3207
        %v3215 = vpack.c.b16 %v3210, %v3209
        %v3216 = vpack.c.b16 %v3212, %v3211
        %v3237 = vunpack.c.l.b16 %v3189
        %v3238 = vunpack.c.l.b16 %v3190
        %v3239 = vunpack.c.l.b16 %v3191
        %v3240 = vunpack.c.l.b16 %v3192
        %v3241 = vunpack.c.l.b16 %v3193
        %v3242 = vunpack.c.l.b16 %v3194
        %v3243 = vunpack.c.l.b16 %v3195
        %v3244 = vunpack.c.l.b16 %v3196
        %v3245 = vunpack.c.l.b16 %v3197
        %v3246 = vunpack.c.l.b16 %v3198
        %v3247 = vunpack.c.l.b16 %v3199
        %v3248 = vunpack.c.l.b16 %v3200
        %v3249 = vunpack.c.l.b16 %v3201
        %v3250 = vunpack.c.l.b16 %v3202
        %v3251 = vunpack.c.l.b16 %v3203
        %v3252 = vunpack.c.l.b16 %v3204
        %v3253 = vpack.c.b16 %v3238, %v3237
        %v3254 = vpack.c.b16 %v3240, %v3239
        %v3255 = vpack.c.b16 %v3242, %v3241
        %v3256 = vpack.c.b16 %v3244, %v3243
        %v3257 = vpack.c.b16 %v3246, %v3245
        %v3258 = vpack.c.b16 %v3248, %v3247
        %v3259 = vpack.c.b16 %v3250, %v3249
        %v3260 = vpack.c.b16 %v3252, %v3251
        %3269 = vmatprep.subr.bf16.mxu0 0
        %3270 = vmatpush1.bf16.msra.mxu0 %v3253
        %3271 = vmatprep.subr.bf16.mxu0 0
        %3272 = vmatpush1.bf16.msra.mxu0 %v3254
        %3273 = vmatprep.subr.bf16.mxu0 0
        %3274 = vmatpush1.bf16.msra.mxu0 %v3255
        %3275 = vmatprep.subr.bf16.mxu0 0
        %3276 = vmatpush1.bf16.msra.mxu0 %v3256
        %3277 = vmatprep.subr.bf16.mxu0 0
        %3278 = vmatpush1.bf16.msra.mxu0 %v3257
        %3279 = vmatprep.subr.bf16.mxu0 0
        %3280 = vmatpush1.bf16.msra.mxu0 %v3258
        %3281 = vmatprep.subr.bf16.mxu0 0
        %3282 = vmatpush1.bf16.msra.mxu0 %v3259
        %3283 = vmatprep.subr.bf16.mxu0 0
        %3284 = vmatpush1.bf16.msra.mxu0 %v3260
        %3285 = vmatprep.subr.bf16.mxu0 0
        %3286 = vmatpush1.bf16.msra.mxu0 0
        %3287 = vmatprep.subr.bf16.mxu0 0
        %3288 = vmatpush1.bf16.msra.mxu0 0
        %3289 = vmatprep.subr.bf16.mxu0 0
        %3290 = vmatpush1.bf16.msra.mxu0 0
        %3291 = vmatprep.subr.bf16.mxu0 0
        %3292 = vmatpush1.bf16.msra.mxu0 0
        %3293 = vmatprep.subr.bf16.mxu0 0
        %3294 = vmatpush1.bf16.msra.mxu0 0
        %3295 = vmatprep.subr.bf16.mxu0 0
        %3296 = vmatpush1.bf16.msra.mxu0 0
        %3297 = vmatprep.subr.bf16.mxu0 0
        %3298 = vmatpush1.bf16.msra.mxu0 0
        %3299 = vmatprep.subr.bf16.mxu0 0
        %3300 = vmatpush1.bf16.msra.mxu0 0
        %3301 = vmatprep.mubr.bf16.mxu0 0
        %3302 = vmatmul.mubr.bf16.gmra.mrb[0].mxu0 %v3213
        %v3303 = vpop.f32.mrb[0].mxu0
        %v3304 = vadd.f32 0.0, %v3303
        %v3305 = vpop.f32.mrb[0].mxu0
        %v3306 = vpop.f32.mrb[0].mxu0
        %v3307 = vadd.f32 0.0, %v3306
        %v3308 = vpop.f32.mrb[0].mxu0
        %3309 = vmatprep.mubr.bf16.mxu0 0
        %3310 = vmatmul.mubr.bf16.gmra.mrb[0].mxu0 %v3214
        %v3311 = vpop.f32.mrb[0].mxu0
        %v3312 = vadd.f32 0.0, %v3311
        %v3313 = vpop.f32.mrb[0].mxu0
        %v3314 = vpop.f32.mrb[0].mxu0
        %v3315 = vadd.f32 0.0, %v3314
        %v3316 = vpop.f32.mrb[0].mxu0
        %3317 = vmatprep.mubr.bf16.mxu0 0
        %3318 = vmatmul.mubr.bf16.gmra.mrb[0].mxu0 %v3215
        %v3319 = vpop.f32.mrb[0].mxu0
        %v3320 = vadd.f32 0.0, %v3319
        %v3321 = vpop.f32.mrb[0].mxu0
        %v3322 = vpop.f32.mrb[0].mxu0
        %v3323 = vadd.f32 0.0, %v3322
        %v3324 = vpop.f32.mrb[0].mxu0
        %3325 = vmatprep.mubr.bf16.mxu0 0
        %3326 = vmatmul.mubr.bf16.gmra.mrb[0].mxu0 %v3216
        %v3327 = vpop.f32.mrb[0].mxu0
        %v3328 = vadd.f32 0.0, %v3327
        %v3329 = vpop.f32.mrb[0].mxu0
        %v3330 = vpop.f32.mrb[0].mxu0
        %v3331 = vadd.f32 0.0, %v3330
        %v3332 = vpop.f32.mrb[0].mxu0
        %3333 = vdwg.mxu0
        %v3334 = vadd.f32 %v3053, %v3304
        %v3335 = vadd.f32 %v3054, %v3307
        %v3336 = vadd.f32 %v3055, %v3312
        %v3337 = vadd.f32 %v3056, %v3315
        %v3338 = vadd.f32 %v3057, %v3320
        %v3339 = vadd.f32 %v3058, %v3323
        %v3340 = vadd.f32 %v3059, %v3328
        %v3341 = vadd.f32 %v3060, %v3331
        %v3342 = vld [vmem:[%s2203] sm:$0xe]
        %v3343 = vld [vmem:[%s2203 + $0x8] sm:$0xe]
        %v3344 = vld [vmem:[%s2203 + $0x10] sm:$0xe]
        %v3345 = vld [vmem:[%s2203 + $0x18] sm:$0xe]
        %v3346 = vld [vmem:[%s2203 + $0x20] sm:$0xe]
        %v3347 = vld [vmem:[%s2203 + $0x28] sm:$0xe]
        %v3348 = vld [vmem:[%s2203 + $0x30] sm:$0xe]
        %v3349 = vld [vmem:[%s2203 + $0x38] sm:$0xe]
        %v3366 = vrot.slane %v3342, 5
        %v3367 = vrot.slane %v3366, 4
        %v3368 = vrot.slane %v3062, 5
        %v3369 = vsel %vm2706, %v3367, %v3368
        %v3370 = vrot.slane %v3343, 5
        %v3371 = vrot.slane %v3370, 4
        %v3372 = vrot.slane %v3064, 5
        %v3373 = vsel %vm2706, %v3371, %v3372
        %v3374 = vrot.slane %v3344, 5
        %v3375 = vrot.slane %v3374, 4
        %v3376 = vrot.slane %v3066, 5
        %v3377 = vsel %vm2706, %v3375, %v3376
        %v3378 = vrot.slane %v3345, 5
        %v3379 = vrot.slane %v3378, 4
        %v3380 = vrot.slane %v3068, 5
        %v3381 = vsel %vm2706, %v3379, %v3380
        %v3382 = vrot.slane %v3346, 5
        %v3383 = vrot.slane %v3382, 4
        %v3384 = vrot.slane %v3070, 5
        %v3385 = vsel %vm2706, %v3383, %v3384
        %v3386 = vrot.slane %v3347, 5
        %v3387 = vrot.slane %v3386, 4
        %v3388 = vrot.slane %v3072, 5
        %v3389 = vsel %vm2706, %v3387, %v3388
        %v3390 = vrot.slane %v3348, 5
        %v3391 = vrot.slane %v3390, 4
        %v3392 = vrot.slane %v3074, 5
        %v3393 = vsel %vm2706, %v3391, %v3392
        %v3394 = vrot.slane %v3349, 5
        %v3395 = vrot.slane %v3394, 4
        %v3396 = vrot.slane %v3076, 5
        %v3397 = vsel %vm2706, %v3395, %v3396
        %v3398 = vld [vmem:[#allocation3 + $0x140] sm:$0xf]
        %v3399 = vld [vmem:[#allocation3 + $0x144] sm:$0xf]
        %v3400 = vld [vmem:[#allocation3 + $0x148] sm:$0xf]
        %v3401 = vld [vmem:[#allocation3 + $0x14c] sm:$0xf]
        %v3402 = vld [vmem:[#allocation3 + $0x150] sm:$0xf]
        %v3403 = vld [vmem:[#allocation3 + $0x154] sm:$0xf]
        %v3404 = vld [vmem:[#allocation3 + $0x158] sm:$0xf]
        %v3405 = vld [vmem:[#allocation3 + $0x15c] sm:$0xf]
        %v3406 = vld [vmem:[#allocation3 + $0x160] sm:$0xf]
        %v3407 = vld [vmem:[#allocation3 + $0x164] sm:$0xf]
        %v3408 = vld [vmem:[#allocation3 + $0x168] sm:$0xf]
        %v3409 = vld [vmem:[#allocation3 + $0x16c] sm:$0xf]
        %v3410 = vld [vmem:[#allocation3 + $0x170] sm:$0xf]
        %v3411 = vld [vmem:[#allocation3 + $0x174] sm:$0xf]
        %v3412 = vld [vmem:[#allocation3 + $0x178] sm:$0xf]
        %v3413 = vld [vmem:[#allocation3 + $0x17c] sm:$0xf]
        %v3414 = vunpack.c.l.b16 %v3369
        %v3415 = vunpack.c.l.b16 %v3373
        %v3416 = vunpack.c.l.b16 %v3377
        %v3417 = vunpack.c.l.b16 %v3381
        %v3418 = vunpack.c.l.b16 %v3385
        %v3419 = vunpack.c.l.b16 %v3389
        %v3420 = vunpack.c.l.b16 %v3393
        %v3421 = vunpack.c.l.b16 %v3397
        %v3422 = vpack.c.b16 %v3415, %v3414
        %v3423 = vpack.c.b16 %v3417, %v3416
        %v3424 = vpack.c.b16 %v3419, %v3418
        %v3425 = vpack.c.b16 %v3421, %v3420
        %v3446 = vunpack.c.l.b16 %v3398
        %v3447 = vunpack.c.l.b16 %v3399
        %v3448 = vunpack.c.l.b16 %v3400
        %v3449 = vunpack.c.l.b16 %v3401
        %v3450 = vunpack.c.l.b16 %v3402
        %v3451 = vunpack.c.l.b16 %v3403
        %v3452 = vunpack.c.l.b16 %v3404
        %v3453 = vunpack.c.l.b16 %v3405
        %v3454 = vunpack.c.l.b16 %v3406
        %v3455 = vunpack.c.l.b16 %v3407
        %v3456 = vunpack.c.l.b16 %v3408
        %v3457 = vunpack.c.l.b16 %v3409
        %v3458 = vunpack.c.l.b16 %v3410
        %v3459 = vunpack.c.l.b16 %v3411
        %v3460 = vunpack.c.l.b16 %v3412
        %v3461 = vunpack.c.l.b16 %v3413
        %v3462 = vpack.c.b16 %v3447, %v3446
        %v3463 = vpack.c.b16 %v3449, %v3448
        %v3464 = vpack.c.b16 %v3451, %v3450
        %v3465 = vpack.c.b16 %v3453, %v3452
        %v3466 = vpack.c.b16 %v3455, %v3454
        %v3467 = vpack.c.b16 %v3457, %v3456
        %v3468 = vpack.c.b16 %v3459, %v3458
        %v3469 = vpack.c.b16 %v3461, %v3460
        %3478 = vmatprep.subr.bf16.mxu0 0
        %3479 = vmatpush1.bf16.msra.mxu0 %v3462
        %3480 = vmatprep.subr.bf16.mxu0 0
        %3481 = vmatpush1.bf16.msra.mxu0 %v3463
        %3482 = vmatprep.subr.bf16.mxu0 0
        %3483 = vmatpush1.bf16.msra.mxu0 %v3464
        %3484 = vmatprep.subr.bf16.mxu0 0
        %3485 = vmatpush1.bf16.msra.mxu0 %v3465
        %3486 = vmatprep.subr.bf16.mxu0 0
        %3487 = vmatpush1.bf16.msra.mxu0 %v3466
        %3488 = vmatprep.subr.bf16.mxu0 0
        %3489 = vmatpush1.bf16.msra.mxu0 %v3467
        %3490 = vmatprep.subr.bf16.mxu0 0
        %3491 = vmatpush1.bf16.msra.mxu0 %v3468
        %3492 = vmatprep.subr.bf16.mxu0 0
        %3493 = vmatpush1.bf16.msra.mxu0 %v3469
        %3494 = vmatprep.subr.bf16.mxu0 0
        %3495 = vmatpush1.bf16.msra.mxu0 0
        %3496 = vmatprep.subr.bf16.mxu0 0
        %3497 = vmatpush1.bf16.msra.mxu0 0
        %3498 = vmatprep.subr.bf16.mxu0 0
        %3499 = vmatpush1.bf16.msra.mxu0 0
        %3500 = vmatprep.subr.bf16.mxu0 0
        %3501 = vmatpush1.bf16.msra.mxu0 0
        %3502 = vmatprep.subr.bf16.mxu0 0
        %3503 = vmatpush1.bf16.msra.mxu0 0
        %3504 = vmatprep.subr.bf16.mxu0 0
        %3505 = vmatpush1.bf16.msra.mxu0 0
        %3506 = vmatprep.subr.bf16.mxu0 0
        %3507 = vmatpush1.bf16.msra.mxu0 0
        %3508 = vmatprep.subr.bf16.mxu0 0
        %3509 = vmatpush1.bf16.msra.mxu0 0
        %3510 = vmatprep.mubr.bf16.mxu0 0
        %3511 = vmatmul.mubr.bf16.gmra.mrb[0].mxu0 %v3422
        %v3512 = vpop.f32.mrb[0].mxu0
        %v3513 = vadd.f32 0.0, %v3512
        %v3514 = vpop.f32.mrb[0].mxu0
        %v3515 = vpop.f32.mrb[0].mxu0
        %v3516 = vadd.f32 0.0, %v3515
        %v3517 = vpop.f32.mrb[0].mxu0
        %3518 = vmatprep.mubr.bf16.mxu0 0
        %3519 = vmatmul.mubr.bf16.gmra.mrb[0].mxu0 %v3423
        %v3520 = vpop.f32.mrb[0].mxu0
        %v3521 = vadd.f32 0.0, %v3520
        %v3522 = vpop.f32.mrb[0].mxu0
        %v3523 = vpop.f32.mrb[0].mxu0
        %v3524 = vadd.f32 0.0, %v3523
        %v3525 = vpop.f32.mrb[0].mxu0
        %3526 = vmatprep.mubr.bf16.mxu0 0
        %3527 = vmatmul.mubr.bf16.gmra.mrb[0].mxu0 %v3424
        %v3528 = vpop.f32.mrb[0].mxu0
        %v3529 = vadd.f32 0.0, %v3528
        %v3530 = vpop.f32.mrb[0].mxu0
        %v3531 = vpop.f32.mrb[0].mxu0
        %v3532 = vadd.f32 0.0, %v3531
        %v3533 = vpop.f32.mrb[0].mxu0
        %3534 = vmatprep.mubr.bf16.mxu0 0
        %3535 = vmatmul.mubr.bf16.gmra.mrb[0].mxu0 %v3425
        %v3536 = vpop.f32.mrb[0].mxu0
        %v3537 = vadd.f32 0.0, %v3536
        %v3538 = vpop.f32.mrb[0].mxu0
        %v3539 = vpop.f32.mrb[0].mxu0
        %v3540 = vadd.f32 0.0, %v3539
        %v3541 = vpop.f32.mrb[0].mxu0
        %3542 = vdwg.mxu0
        %v3543 = vadd.f32 %v3334, %v3513
        %v3544 = vadd.f32 %v3335, %v3516
        %v3545 = vadd.f32 %v3336, %v3521
        %v3546 = vadd.f32 %v3337, %v3524
        %v3547 = vadd.f32 %v3338, %v3529
        %v3548 = vadd.f32 %v3339, %v3532
        %v3549 = vadd.f32 %v3340, %v3537
        %v3550 = vadd.f32 %v3341, %v3540
        %s3551 = scalar_lea.vmem [#allocation2], 16
        %v3552 = vld [vmem:[%s3551] sm:$0xf]
        %v3553 = vld [vmem:[%s3551 + $0x8] sm:$0xf]
        %v3554 = vld [vmem:[%s3551 + $0x10] sm:$0xf]
        %v3555 = vld [vmem:[%s3551 + $0x18] sm:$0xf]
        %v3556 = vld [vmem:[%s3551 + $0x20] sm:$0xf]
        %v3557 = vld [vmem:[%s3551 + $0x28] sm:$0xf]
        %v3558 = vld [vmem:[%s3551 + $0x30] sm:$0xf]
        %v3559 = vld [vmem:[%s3551 + $0x38] sm:$0xf]
        %v3560 = vld [vmem:[#allocation3 + $0x180] sm:$0xf]
        %v3561 = vld [vmem:[#allocation3 + $0x184] sm:$0xf]
        %v3562 = vld [vmem:[#allocation3 + $0x188] sm:$0xf]
        %v3563 = vld [vmem:[#allocation3 + $0x18c] sm:$0xf]
        %v3564 = vld [vmem:[#allocation3 + $0x190] sm:$0xf]
        %v3565 = vld [vmem:[#allocation3 + $0x194] sm:$0xf]
        %v3566 = vld [vmem:[#allocation3 + $0x198] sm:$0xf]
        %v3567 = vld [vmem:[#allocation3 + $0x19c] sm:$0xf]
        %v3568 = vld [vmem:[#allocation3 + $0x1a0] sm:$0xf]
        %v3569 = vld [vmem:[#allocation3 + $0x1a4] sm:$0xf]
        %v3570 = vld [vmem:[#allocation3 + $0x1a8] sm:$0xf]
        %v3571 = vld [vmem:[#allocation3 + $0x1ac] sm:$0xf]
        %v3572 = vld [vmem:[#allocation3 + $0x1b0] sm:$0xf]
        %v3573 = vld [vmem:[#allocation3 + $0x1b4] sm:$0xf]
        %v3574 = vld [vmem:[#allocation3 + $0x1b8] sm:$0xf]
        %v3575 = vld [vmem:[#allocation3 + $0x1bc] sm:$0xf]
        %v3584 = vunpack.c.l.b16 %v3552
        %v3585 = vunpack.c.l.b16 %v3553
        %v3586 = vunpack.c.l.b16 %v3554
        %v3587 = vunpack.c.l.b16 %v3555
        %v3588 = vunpack.c.l.b16 %v3556
        %v3589 = vunpack.c.l.b16 %v3557
        %v3590 = vunpack.c.l.b16 %v3558
        %v3591 = vunpack.c.l.b16 %v3559
        %v3592 = vpack.c.b16 %v3585, %v3584
        %v3593 = vpack.c.b16 %v3587, %v3586
        %v3594 = vpack.c.b16 %v3589, %v3588
        %v3595 = vpack.c.b16 %v3591, %v3590
        %v3616 = vunpack.c.l.b16 %v3560
        %v3617 = vunpack.c.l.b16 %v3561
        %v3618 = vunpack.c.l.b16 %v3562
        %v3619 = vunpack.c.l.b16 %v3563
        %v3620 = vunpack.c.l.b16 %v3564
        %v3621 = vunpack.c.l.b16 %v3565
        %v3622 = vunpack.c.l.b16 %v3566
        %v3623 = vunpack.c.l.b16 %v3567
        %v3624 = vunpack.c.l.b16 %v3568
        %v3625 = vunpack.c.l.b16 %v3569
        %v3626 = vunpack.c.l.b16 %v3570
        %v3627 = vunpack.c.l.b16 %v3571
        %v3628 = vunpack.c.l.b16 %v3572
        %v3629 = vunpack.c.l.b16 %v3573
        %v3630 = vunpack.c.l.b16 %v3574
        %v3631 = vunpack.c.l.b16 %v3575
        %v3632 = vpack.c.b16 %v3617, %v3616
        %v3633 = vpack.c.b16 %v3619, %v3618
        %v3634 = vpack.c.b16 %v3621, %v3620
        %v3635 = vpack.c.b16 %v3623, %v3622
        %v3636 = vpack.c.b16 %v3625, %v3624
        %v3637 = vpack.c.b16 %v3627, %v3626
        %v3638 = vpack.c.b16 %v3629, %v3628
        %v3639 = vpack.c.b16 %v3631, %v3630
        %3648 = vmatprep.subr.bf16.mxu0 0
        %3649 = vmatpush1.bf16.msra.mxu0 %v3632
        %3650 = vmatprep.subr.bf16.mxu0 0
        %3651 = vmatpush1.bf16.msra.mxu0 %v3633
        %3652 = vmatprep.subr.bf16.mxu0 0
        %3653 = vmatpush1.bf16.msra.mxu0 %v3634
        %3654 = vmatprep.subr.bf16.mxu0 0
        %3655 = vmatpush1.bf16.msra.mxu0 %v3635
        %3656 = vmatprep.subr.bf16.mxu0 0
        %3657 = vmatpush1.bf16.msra.mxu0 %v3636
        %3658 = vmatprep.subr.bf16.mxu0 0
        %3659 = vmatpush1.bf16.msra.mxu0 %v3637
        %3660 = vmatprep.subr.bf16.mxu0 0
        %3661 = vmatpush1.bf16.msra.mxu0 %v3638
        %3662 = vmatprep.subr.bf16.mxu0 0
        %3663 = vmatpush1.bf16.msra.mxu0 %v3639
        %3664 = vmatprep.subr.bf16.mxu0 0
        %3665 = vmatpush1.bf16.msra.mxu0 0
        %3666 = vmatprep.subr.bf16.mxu0 0
        %3667 = vmatpush1.bf16.msra.mxu0 0
        %3668 = vmatprep.subr.bf16.mxu0 0
        %3669 = vmatpush1.bf16.msra.mxu0 0
        %3670 = vmatprep.subr.bf16.mxu0 0
        %3671 = vmatpush1.bf16.msra.mxu0 0
        %3672 = vmatprep.subr.bf16.mxu0 0
        %3673 = vmatpush1.bf16.msra.mxu0 0
        %3674 = vmatprep.subr.bf16.mxu0 0
        %3675 = vmatpush1.bf16.msra.mxu0 0
        %3676 = vmatprep.subr.bf16.mxu0 0
        %3677 = vmatpush1.bf16.msra.mxu0 0
        %3678 = vmatprep.subr.bf16.mxu0 0
        %3679 = vmatpush1.bf16.msra.mxu0 0
        %3680 = vmatprep.mubr.bf16.mxu0 0
        %3681 = vmatmul.mubr.bf16.gmra.mrb[0].mxu0 %v3592
        %v3682 = vpop.f32.mrb[0].mxu0
        %v3683 = vadd.f32 0.0, %v3682
        %v3684 = vpop.f32.mrb[0].mxu0
        %v3685 = vpop.f32.mrb[0].mxu0
        %v3686 = vadd.f32 0.0, %v3685
        %v3687 = vpop.f32.mrb[0].mxu0
        %3688 = vmatprep.mubr.bf16.mxu0 0
        %3689 = vmatmul.mubr.bf16.gmra.mrb[0].mxu0 %v3593
        %v3690 = vpop.f32.mrb[0].mxu0
        %v3691 = vadd.f32 0.0, %v3690
        %v3692 = vpop.f32.mrb[0].mxu0
        %v3693 = vpop.f32.mrb[0].mxu0
        %v3694 = vadd.f32 0.0, %v3693
        %v3695 = vpop.f32.mrb[0].mxu0
        %3696 = vmatprep.mubr.bf16.mxu0 0
        %3697 = vmatmul.mubr.bf16.gmra.mrb[0].mxu0 %v3594
        %v3698 = vpop.f32.mrb[0].mxu0
        %v3699 = vadd.f32 0.0, %v3698
        %v3700 = vpop.f32.mrb[0].mxu0
        %v3701 = vpop.f32.mrb[0].mxu0
        %v3702 = vadd.f32 0.0, %v3701
        %v3703 = vpop.f32.mrb[0].mxu0
        %3704 = vmatprep.mubr.bf16.mxu0 0
        %3705 = vmatmul.mubr.bf16.gmra.mrb[0].mxu0 %v3595
        %v3706 = vpop.f32.mrb[0].mxu0
        %v3707 = vadd.f32 0.0, %v3706
        %v3708 = vpop.f32.mrb[0].mxu0
        %v3709 = vpop.f32.mrb[0].mxu0
        %v3710 = vadd.f32 0.0, %v3709
        %v3711 = vpop.f32.mrb[0].mxu0
        %3712 = vdwg.mxu0
        %v3713 = vadd.f32 %v3543, %v3683
        %v3714 = vadd.f32 %v3544, %v3686
        %v3715 = vadd.f32 %v3545, %v3691
        %v3716 = vadd.f32 %v3546, %v3694
        %v3717 = vadd.f32 %v3547, %v3699
        %v3718 = vadd.f32 %v3548, %v3702
        %v3719 = vadd.f32 %v3549, %v3707
        %v3720 = vadd.f32 %v3550, %v3710
        %v3721 = vld [vmem:[%s3551] sm:$0xf]
        %v3722 = vld [vmem:[%s3551 + $0x4] sm:$0x1]
        %v3723 = vld [vmem:[%s3551 + $0x8] sm:$0xf]
        %v3724 = vld [vmem:[%s3551 + $0xc] sm:$0x1]
        %v3725 = vld [vmem:[%s3551 + $0x10] sm:$0xf]
        %v3726 = vld [vmem:[%s3551 + $0x14] sm:$0x1]
        %v3727 = vld [vmem:[%s3551 + $0x18] sm:$0xf]
        %v3728 = vld [vmem:[%s3551 + $0x1c] sm:$0x1]
        %v3729 = vld [vmem:[%s3551 + $0x20] sm:$0xf]
        %v3730 = vld [vmem:[%s3551 + $0x24] sm:$0x1]
        %v3731 = vld [vmem:[%s3551 + $0x28] sm:$0xf]
        %v3732 = vld [vmem:[%s3551 + $0x2c] sm:$0x1]
        %v3733 = vld [vmem:[%s3551 + $0x30] sm:$0xf]
        %v3734 = vld [vmem:[%s3551 + $0x34] sm:$0x1]
        %v3735 = vld [vmem:[%s3551 + $0x38] sm:$0xf]
        %v3736 = vld [vmem:[%s3551 + $0x3c] sm:$0x1]
        %v3738 = vshrl.u32 %v3721, 16
        %v3740 = vrot.slane %v3738, 4
        %v3741 = vshll.u32 %v3721, 16
        %v3743 = vrot.slane %v3741, 5
        %v3744 = vor.u32 %v3740, %v3743
        %v3745 = vrot.slane %v3744, 4
        %v3747 = vshll.u32 %v3722, 16
        %v3749 = vrot.slane %v3747, 5
        %v3750 = vsel %vm293, %v3745, %v3749
        %v3752 = vshrl.u32 %v3723, 16
        %v3754 = vrot.slane %v3752, 4
        %v3755 = vshll.u32 %v3723, 16
        %v3757 = vrot.slane %v3755, 5
        %v3758 = vor.u32 %v3754, %v3757
        %v3759 = vrot.slane %v3758, 4
        %v3761 = vshll.u32 %v3724, 16
        %v3763 = vrot.slane %v3761, 5
        %v3764 = vsel %vm293, %v3759, %v3763
        %v3766 = vshrl.u32 %v3725, 16
        %v3768 = vrot.slane %v3766, 4
        %v3769 = vshll.u32 %v3725, 16
        %v3771 = vrot.slane %v3769, 5
        %v3772 = vor.u32 %v3768, %v3771
        %v3773 = vrot.slane %v3772, 4
        %v3775 = vshll.u32 %v3726, 16
        %v3777 = vrot.slane %v3775, 5
        %v3778 = vsel %vm293, %v3773, %v3777
        %v3780 = vshrl.u32 %v3727, 16
        %v3782 = vrot.slane %v3780, 4
        %v3783 = vshll.u32 %v3727, 16
        %v3785 = vrot.slane %v3783, 5
        %v3786 = vor.u32 %v3782, %v3785
        %v3787 = vrot.slane %v3786, 4
        %v3789 = vshll.u32 %v3728, 16
        %v3791 = vrot.slane %v3789, 5
        %v3792 = vsel %vm293, %v3787, %v3791
        %v3794 = vshrl.u32 %v3729, 16
        %v3796 = vrot.slane %v3794, 4
        %v3797 = vshll.u32 %v3729, 16
        %v3799 = vrot.slane %v3797, 5
        %v3800 = vor.u32 %v3796, %v3799
        %v3801 = vrot.slane %v3800, 4
        %v3803 = vshll.u32 %v3730, 16
        %v3805 = vrot.slane %v3803, 5
        %v3806 = vsel %vm293, %v3801, %v3805
        %v3808 = vshrl.u32 %v3731, 16
        %v3810 = vrot.slane %v3808, 4
        %v3811 = vshll.u32 %v3731, 16
        %v3813 = vrot.slane %v3811, 5
        %v3814 = vor.u32 %v3810, %v3813
        %v3815 = vrot.slane %v3814, 4
        %v3817 = vshll.u32 %v3732, 16
        %v3819 = vrot.slane %v3817, 5
        %v3820 = vsel %vm293, %v3815, %v3819
        %v3822 = vshrl.u32 %v3733, 16
        %v3824 = vrot.slane %v3822, 4
        %v3825 = vshll.u32 %v3733, 16
        %v3827 = vrot.slane %v3825, 5
        %v3828 = vor.u32 %v3824, %v3827
        %v3829 = vrot.slane %v3828, 4
        %v3831 = vshll.u32 %v3734, 16
        %v3833 = vrot.slane %v3831, 5
        %v3834 = vsel %vm293, %v3829, %v3833
        %v3836 = vshrl.u32 %v3735, 16
        %v3838 = vrot.slane %v3836, 4
        %v3839 = vshll.u32 %v3735, 16
        %v3841 = vrot.slane %v3839, 5
        %v3842 = vor.u32 %v3838, %v3841
        %v3843 = vrot.slane %v3842, 4
        %v3845 = vshll.u32 %v3736, 16
        %v3847 = vrot.slane %v3845, 5
        %v3848 = vsel %vm293, %v3843, %v3847
        %v3849 = vld [vmem:[#allocation3 + $0x1c0] sm:$0xf]
        %v3850 = vld [vmem:[#allocation3 + $0x1c4] sm:$0xf]
        %v3851 = vld [vmem:[#allocation3 + $0x1c8] sm:$0xf]
        %v3852 = vld [vmem:[#allocation3 + $0x1cc] sm:$0xf]
        %v3853 = vld [vmem:[#allocation3 + $0x1d0] sm:$0xf]
        %v3854 = vld [vmem:[#allocation3 + $0x1d4] sm:$0xf]
        %v3855 = vld [vmem:[#allocation3 + $0x1d8] sm:$0xf]
        %v3856 = vld [vmem:[#allocation3 + $0x1dc] sm:$0xf]
        %v3857 = vld [vmem:[#allocation3 + $0x1e0] sm:$0xf]
        %v3858 = vld [vmem:[#allocation3 + $0x1e4] sm:$0xf]
        %v3859 = vld [vmem:[#allocation3 + $0x1e8] sm:$0xf]
        %v3860 = vld [vmem:[#allocation3 + $0x1ec] sm:$0xf]
        %v3861 = vld [vmem:[#allocation3 + $0x1f0] sm:$0xf]
        %v3862 = vld [vmem:[#allocation3 + $0x1f4] sm:$0xf]
        %v3863 = vld [vmem:[#allocation3 + $0x1f8] sm:$0xf]
        %v3864 = vld [vmem:[#allocation3 + $0x1fc] sm:$0xf]
        %v3865 = vunpack.c.l.b16 %v3750
        %v3866 = vunpack.c.l.b16 %v3764
        %v3867 = vunpack.c.l.b16 %v3778
        %v3868 = vunpack.c.l.b16 %v3792
        %v3869 = vunpack.c.l.b16 %v3806
        %v3870 = vunpack.c.l.b16 %v3820
        %v3871 = vunpack.c.l.b16 %v3834
        %v3872 = vunpack.c.l.b16 %v3848
        %v3873 = vpack.c.b16 %v3866, %v3865
        %v3874 = vpack.c.b16 %v3868, %v3867
        %v3875 = vpack.c.b16 %v3870, %v3869
        %v3876 = vpack.c.b16 %v3872, %v3871
        %v3897 = vunpack.c.l.b16 %v3849
        %v3898 = vunpack.c.l.b16 %v3850
        %v3899 = vunpack.c.l.b16 %v3851
        %v3900 = vunpack.c.l.b16 %v3852
        %v3901 = vunpack.c.l.b16 %v3853
        %v3902 = vunpack.c.l.b16 %v3854
        %v3903 = vunpack.c.l.b16 %v3855
        %v3904 = vunpack.c.l.b16 %v3856
        %v3905 = vunpack.c.l.b16 %v3857
        %v3906 = vunpack.c.l.b16 %v3858
        %v3907 = vunpack.c.l.b16 %v3859
        %v3908 = vunpack.c.l.b16 %v3860
        %v3909 = vunpack.c.l.b16 %v3861
        %v3910 = vunpack.c.l.b16 %v3862
        %v3911 = vunpack.c.l.b16 %v3863
        %v3912 = vunpack.c.l.b16 %v3864
        %v3913 = vpack.c.b16 %v3898, %v3897
        %v3914 = vpack.c.b16 %v3900, %v3899
        %v3915 = vpack.c.b16 %v3902, %v3901
        %v3916 = vpack.c.b16 %v3904, %v3903
        %v3917 = vpack.c.b16 %v3906, %v3905
        %v3918 = vpack.c.b16 %v3908, %v3907
        %v3919 = vpack.c.b16 %v3910, %v3909
        %v3920 = vpack.c.b16 %v3912, %v3911
        %3929 = vmatprep.subr.bf16.mxu0 0
        %3930 = vmatpush1.bf16.msra.mxu0 %v3913
        %3931 = vmatprep.subr.bf16.mxu0 0
        %3932 = vmatpush1.bf16.msra.mxu0 %v3914
        %3933 = vmatprep.subr.bf16.mxu0 0
        %3934 = vmatpush1.bf16.msra.mxu0 %v3915
        %3935 = vmatprep.subr.bf16.mxu0 0
        %3936 = vmatpush1.bf16.msra.mxu0 %v3916
        %3937 = vmatprep.subr.bf16.mxu0 0
        %3938 = vmatpush1.bf16.msra.mxu0 %v3917
        %3939 = vmatprep.subr.bf16.mxu0 0
        %3940 = vmatpush1.bf16.msra.mxu0 %v3918
        %3941 = vmatprep.subr.bf16.mxu0 0
        %3942 = vmatpush1.bf16.msra.mxu0 %v3919
        %3943 = vmatprep.subr.bf16.mxu0 0
        %3944 = vmatpush1.bf16.msra.mxu0 %v3920
        %3945 = vmatprep.subr.bf16.mxu0 0
        %3946 = vmatpush1.bf16.msra.mxu0 0
        %3947 = vmatprep.subr.bf16.mxu0 0
        %3948 = vmatpush1.bf16.msra.mxu0 0
        %3949 = vmatprep.subr.bf16.mxu0 0
        %3950 = vmatpush1.bf16.msra.mxu0 0
        %3951 = vmatprep.subr.bf16.mxu0 0
        %3952 = vmatpush1.bf16.msra.mxu0 0
        %3953 = vmatprep.subr.bf16.mxu0 0
        %3954 = vmatpush1.bf16.msra.mxu0 0
        %3955 = vmatprep.subr.bf16.mxu0 0
        %3956 = vmatpush1.bf16.msra.mxu0 0
        %3957 = vmatprep.subr.bf16.mxu0 0
        %3958 = vmatpush1.bf16.msra.mxu0 0
        %3959 = vmatprep.subr.bf16.mxu0 0
        %3960 = vmatpush1.bf16.msra.mxu0 0
        %3961 = vmatprep.mubr.bf16.mxu0 0
        %3962 = vmatmul.mubr.bf16.gmra.mrb[0].mxu0 %v3873
        %v3963 = vpop.f32.mrb[0].mxu0
        %v3964 = vadd.f32 0.0, %v3963
        %v3965 = vpop.f32.mrb[0].mxu0
        %v3966 = vpop.f32.mrb[0].mxu0
        %v3967 = vadd.f32 0.0, %v3966
        %v3968 = vpop.f32.mrb[0].mxu0
        %3969 = vmatprep.mubr.bf16.mxu0 0
        %3970 = vmatmul.mubr.bf16.gmra.mrb[0].mxu0 %v3874
        %v3971 = vpop.f32.mrb[0].mxu0
        %v3972 = vadd.f32 0.0, %v3971
        %v3973 = vpop.f32.mrb[0].mxu0
        %v3974 = vpop.f32.mrb[0].mxu0
        %v3975 = vadd.f32 0.0, %v3974
        %v3976 = vpop.f32.mrb[0].mxu0
        %3977 = vmatprep.mubr.bf16.mxu0 0
        %3978 = vmatmul.mubr.bf16.gmra.mrb[0].mxu0 %v3875
        %v3979 = vpop.f32.mrb[0].mxu0
        %v3980 = vadd.f32 0.0, %v3979
        %v3981 = vpop.f32.mrb[0].mxu0
        %v3982 = vpop.f32.mrb[0].mxu0
        %v3983 = vadd.f32 0.0, %v3982
        %v3984 = vpop.f32.mrb[0].mxu0
        %3985 = vmatprep.mubr.bf16.mxu0 0
        %3986 = vmatmul.mubr.bf16.gmra.mrb[0].mxu0 %v3876
        %v3987 = vpop.f32.mrb[0].mxu0
        %v3988 = vadd.f32 0.0, %v3987
        %v3989 = vpop.f32.mrb[0].mxu0
        %v3990 = vpop.f32.mrb[0].mxu0
        %v3991 = vadd.f32 0.0, %v3990
        %v3992 = vpop.f32.mrb[0].mxu0
        %3993 = vdwg.mxu0
        %v3994 = vadd.f32 %v3713, %v3964
        %v3995 = vadd.f32 %v3714, %v3967
        %v3996 = vadd.f32 %v3715, %v3972
        %v3997 = vadd.f32 %v3716, %v3975
        %v3998 = vadd.f32 %v3717, %v3980
        %v3999 = vadd.f32 %v3718, %v3983
        %v4000 = vadd.f32 %v3719, %v3988
        %v4001 = vadd.f32 %v3720, %v3991
        %v4002 = vld [vmem:[%s3551] sm:$0xe]
        %v4003 = vld [vmem:[%s3551 + $0x8] sm:$0xe]
        %v4004 = vld [vmem:[%s3551 + $0x10] sm:$0xe]
        %v4005 = vld [vmem:[%s3551 + $0x18] sm:$0xe]
        %v4006 = vld [vmem:[%s3551 + $0x20] sm:$0xe]
        %v4007 = vld [vmem:[%s3551 + $0x28] sm:$0xe]
        %v4008 = vld [vmem:[%s3551 + $0x30] sm:$0xe]
        %v4009 = vld [vmem:[%s3551 + $0x38] sm:$0xe]
        %v4026 = vrot.slane %v4002, 5
        %v4027 = vrot.slane %v4026, 4
        %v4028 = vrot.slane %v3722, 5
        %v4029 = vsel %vm2706, %v4027, %v4028
        %v4030 = vrot.slane %v4003, 5
        %v4031 = vrot.slane %v4030, 4
        %v4032 = vrot.slane %v3724, 5
        %v4033 = vsel %vm2706, %v4031, %v4032
        %v4034 = vrot.slane %v4004, 5
        %v4035 = vrot.slane %v4034, 4
        %v4036 = vrot.slane %v3726, 5
        %v4037 = vsel %vm2706, %v4035, %v4036
        %v4038 = vrot.slane %v4005, 5
        %v4039 = vrot.slane %v4038, 4
        %v4040 = vrot.slane %v3728, 5
        %v4041 = vsel %vm2706, %v4039, %v4040
        %v4042 = vrot.slane %v4006, 5
        %v4043 = vrot.slane %v4042, 4
        %v4044 = vrot.slane %v3730, 5
        %v4045 = vsel %vm2706, %v4043, %v4044
        %v4046 = vrot.slane %v4007, 5
        %v4047 = vrot.slane %v4046, 4
        %v4048 = vrot.slane %v3732, 5
        %v4049 = vsel %vm2706, %v4047, %v4048
        %v4050 = vrot.slane %v4008, 5
        %v4051 = vrot.slane %v4050, 4
        %v4052 = vrot.slane %v3734, 5
        %v4053 = vsel %vm2706, %v4051, %v4052
        %v4054 = vrot.slane %v4009, 5
        %v4055 = vrot.slane %v4054, 4
        %v4056 = vrot.slane %v3736, 5
        %v4057 = vsel %vm2706, %v4055, %v4056
        %v4058 = vld [vmem:[#allocation3 + $0x200] sm:$0xf]
        %v4059 = vld [vmem:[#allocation3 + $0x204] sm:$0xf]
        %v4060 = vld [vmem:[#allocation3 + $0x208] sm:$0xf]
        %v4061 = vld [vmem:[#allocation3 + $0x20c] sm:$0xf]
        %v4062 = vld [vmem:[#allocation3 + $0x210] sm:$0xf]
        %v4063 = vld [vmem:[#allocation3 + $0x214] sm:$0xf]
        %v4064 = vld [vmem:[#allocation3 + $0x218] sm:$0xf]
        %v4065 = vld [vmem:[#allocation3 + $0x21c] sm:$0xf]
        %v4066 = vld [vmem:[#allocation3 + $0x220] sm:$0xf]
        %v4067 = vld [vmem:[#allocation3 + $0x224] sm:$0xf]
        %v4068 = vld [vmem:[#allocation3 + $0x228] sm:$0xf]
        %v4069 = vld [vmem:[#allocation3 + $0x22c] sm:$0xf]
        %v4070 = vld [vmem:[#allocation3 + $0x230] sm:$0xf]
        %v4071 = vld [vmem:[#allocation3 + $0x234] sm:$0xf]
        %v4072 = vld [vmem:[#allocation3 + $0x238] sm:$0xf]
        %v4073 = vld [vmem:[#allocation3 + $0x23c] sm:$0xf]
        %v4074 = vunpack.c.l.b16 %v4029
        %v4075 = vunpack.c.l.b16 %v4033
        %v4076 = vunpack.c.l.b16 %v4037
        %v4077 = vunpack.c.l.b16 %v4041
        %v4078 = vunpack.c.l.b16 %v4045
        %v4079 = vunpack.c.l.b16 %v4049
        %v4080 = vunpack.c.l.b16 %v4053
        %v4081 = vunpack.c.l.b16 %v4057
        %v4082 = vpack.c.b16 %v4075, %v4074
        %v4083 = vpack.c.b16 %v4077, %v4076
        %v4084 = vpack.c.b16 %v4079, %v4078
        %v4085 = vpack.c.b16 %v4081, %v4080
        %v4106 = vunpack.c.l.b16 %v4058
        %v4107 = vunpack.c.l.b16 %v4059
        %v4108 = vunpack.c.l.b16 %v4060
        %v4109 = vunpack.c.l.b16 %v4061
        %v4110 = vunpack.c.l.b16 %v4062
        %v4111 = vunpack.c.l.b16 %v4063
        %v4112 = vunpack.c.l.b16 %v4064
        %v4113 = vunpack.c.l.b16 %v4065
        %v4114 = vunpack.c.l.b16 %v4066
        %v4115 = vunpack.c.l.b16 %v4067
        %v4116 = vunpack.c.l.b16 %v4068
        %v4117 = vunpack.c.l.b16 %v4069
        %v4118 = vunpack.c.l.b16 %v4070
        %v4119 = vunpack.c.l.b16 %v4071
        %v4120 = vunpack.c.l.b16 %v4072
        %v4121 = vunpack.c.l.b16 %v4073
        %v4122 = vpack.c.b16 %v4107, %v4106
        %v4123 = vpack.c.b16 %v4109, %v4108
        %v4124 = vpack.c.b16 %v4111, %v4110
        %v4125 = vpack.c.b16 %v4113, %v4112
        %v4126 = vpack.c.b16 %v4115, %v4114
        %v4127 = vpack.c.b16 %v4117, %v4116
        %v4128 = vpack.c.b16 %v4119, %v4118
        %v4129 = vpack.c.b16 %v4121, %v4120
        %4138 = vmatprep.subr.bf16.mxu0 0
        %4139 = vmatpush1.bf16.msra.mxu0 %v4122
        %4140 = vmatprep.subr.bf16.mxu0 0
        %4141 = vmatpush1.bf16.msra.mxu0 %v4123
        %4142 = vmatprep.subr.bf16.mxu0 0
        %4143 = vmatpush1.bf16.msra.mxu0 %v4124
        %4144 = vmatprep.subr.bf16.mxu0 0
        %4145 = vmatpush1.bf16.msra.mxu0 %v4125
        %4146 = vmatprep.subr.bf16.mxu0 0
        %4147 = vmatpush1.bf16.msra.mxu0 %v4126
        %4148 = vmatprep.subr.bf16.mxu0 0
        %4149 = vmatpush1.bf16.msra.mxu0 %v4127
        %4150 = vmatprep.subr.bf16.mxu0 0
        %4151 = vmatpush1.bf16.msra.mxu0 %v4128
        %4152 = vmatprep.subr.bf16.mxu0 0
        %4153 = vmatpush1.bf16.msra.mxu0 %v4129
        %4154 = vmatprep.subr.bf16.mxu0 0
        %4155 = vmatpush1.bf16.msra.mxu0 0
        %4156 = vmatprep.subr.bf16.mxu0 0
        %4157 = vmatpush1.bf16.msra.mxu0 0
        %4158 = vmatprep.subr.bf16.mxu0 0
        %4159 = vmatpush1.bf16.msra.mxu0 0
        %4160 = vmatprep.subr.bf16.mxu0 0
        %4161 = vmatpush1.bf16.msra.mxu0 0
        %4162 = vmatprep.subr.bf16.mxu0 0
        %4163 = vmatpush1.bf16.msra.mxu0 0
        %4164 = vmatprep.subr.bf16.mxu0 0
        %4165 = vmatpush1.bf16.msra.mxu0 0
        %4166 = vmatprep.subr.bf16.mxu0 0
        %4167 = vmatpush1.bf16.msra.mxu0 0
        %4168 = vmatprep.subr.bf16.mxu0 0
        %4169 = vmatpush1.bf16.msra.mxu0 0
        %4170 = vmatprep.mubr.bf16.mxu0 0
        %4171 = vmatmul.mubr.bf16.gmra.mrb[0].mxu0 %v4082
        %v4172 = vpop.f32.mrb[0].mxu0
        %v4173 = vadd.f32 0.0, %v4172
        %v4174 = vpop.f32.mrb[0].mxu0
        %v4175 = vpop.f32.mrb[0].mxu0
        %v4176 = vadd.f32 0.0, %v4175
        %v4177 = vpop.f32.mrb[0].mxu0
        %4178 = vmatprep.mubr.bf16.mxu0 0
        %4179 = vmatmul.mubr.bf16.gmra.mrb[0].mxu0 %v4083
        %v4180 = vpop.f32.mrb[0].mxu0
        %v4181 = vadd.f32 0.0, %v4180
        %v4182 = vpop.f32.mrb[0].mxu0
        %v4183 = vpop.f32.mrb[0].mxu0
        %v4184 = vadd.f32 0.0, %v4183
        %v4185 = vpop.f32.mrb[0].mxu0
        %4186 = vmatprep.mubr.bf16.mxu0 0
        %4187 = vmatmul.mubr.bf16.gmra.mrb[0].mxu0 %v4084
        %v4188 = vpop.f32.mrb[0].mxu0
        %v4189 = vadd.f32 0.0, %v4188
        %v4190 = vpop.f32.mrb[0].mxu0
        %v4191 = vpop.f32.mrb[0].mxu0
        %v4192 = vadd.f32 0.0, %v4191
        %v4193 = vpop.f32.mrb[0].mxu0
        %4194 = vmatprep.mubr.bf16.mxu0 0
        %4195 = vmatmul.mubr.bf16.gmra.mrb[0].mxu0 %v4085
        %v4196 = vpop.f32.mrb[0].mxu0
        %v4197 = vadd.f32 0.0, %v4196
        %v4198 = vpop.f32.mrb[0].mxu0
        %v4199 = vpop.f32.mrb[0].mxu0
        %v4200 = vadd.f32 0.0, %v4199
        %v4201 = vpop.f32.mrb[0].mxu0
        %4202 = vdwg.mxu0
        %v4203 = vadd.f32 %v3994, %v4173
        %v4204 = vadd.f32 %v3995, %v4176
        %v4205 = vadd.f32 %v3996, %v4181
        %v4206 = vadd.f32 %v3997, %v4184
        %v4207 = vadd.f32 %v3998, %v4189
        %v4208 = vadd.f32 %v3999, %v4192
        %v4209 = vadd.f32 %v4000, %v4197
        %v4210 = vadd.f32 %v4001, %v4200
        %v4211 = vld [vmem:[%s834 + $0x4] sm:$0xf]
        %v4212 = vld [vmem:[%s834 + $0x8] sm:$0x1]
        %v4213 = vld [vmem:[%s834 + $0x10] sm:$0xf]
        %v4214 = vld [vmem:[%s834 + $0x14] sm:$0x1]
        %v4215 = vld [vmem:[%s834 + $0x1c] sm:$0xf]
        %v4216 = vld [vmem:[%s834 + $0x20] sm:$0x1]
        %v4217 = vld [vmem:[%s834 + $0x28] sm:$0xf]
        %v4218 = vld [vmem:[%s834 + $0x2c] sm:$0x1]
        %v4219 = vld [vmem:[%s834 + $0x34] sm:$0xf]
        %v4220 = vld [vmem:[%s834 + $0x38] sm:$0x1]
        %v4221 = vld [vmem:[%s834 + $0x40] sm:$0xf]
        %v4222 = vld [vmem:[%s834 + $0x44] sm:$0x1]
        %v4223 = vld [vmem:[%s834 + $0x4c] sm:$0xf]
        %v4224 = vld [vmem:[%s834 + $0x50] sm:$0x1]
        %v4225 = vld [vmem:[%s834 + $0x58] sm:$0xf]
        %v4226 = vld [vmem:[%s834 + $0x5c] sm:$0x1]
        %v4228 = vshrl.u32 %v4211, 16
        %v4230 = vrot.slane %v4228, 4
        %v4231 = vshll.u32 %v4211, 16
        %v4233 = vrot.slane %v4231, 5
        %v4234 = vor.u32 %v4230, %v4233
        %v4235 = vrot.slane %v4234, 4
        %v4237 = vshll.u32 %v4212, 16
        %v4239 = vrot.slane %v4237, 5
        %v4240 = vsel %vm293, %v4235, %v4239
        %v4242 = vshrl.u32 %v4213, 16
        %v4244 = vrot.slane %v4242, 4
        %v4245 = vshll.u32 %v4213, 16
        %v4247 = vrot.slane %v4245, 5
        %v4248 = vor.u32 %v4244, %v4247
        %v4249 = vrot.slane %v4248, 4
        %v4251 = vshll.u32 %v4214, 16
        %v4253 = vrot.slane %v4251, 5
        %v4254 = vsel %vm293, %v4249, %v4253
        %v4256 = vshrl.u32 %v4215, 16
        %v4258 = vrot.slane %v4256, 4
        %v4259 = vshll.u32 %v4215, 16
        %v4261 = vrot.slane %v4259, 5
        %v4262 = vor.u32 %v4258, %v4261
        %v4263 = vrot.slane %v4262, 4
        %v4265 = vshll.u32 %v4216, 16
        %v4267 = vrot.slane %v4265, 5
        %v4268 = vsel %vm293, %v4263, %v4267
        %v4270 = vshrl.u32 %v4217, 16
        %v4272 = vrot.slane %v4270, 4
        %v4273 = vshll.u32 %v4217, 16
        %v4275 = vrot.slane %v4273, 5
        %v4276 = vor.u32 %v4272, %v4275
        %v4277 = vrot.slane %v4276, 4
        %v4279 = vshll.u32 %v4218, 16
        %v4281 = vrot.slane %v4279, 5
        %v4282 = vsel %vm293, %v4277, %v4281
        %v4284 = vshrl.u32 %v4219, 16
        %v4286 = vrot.slane %v4284, 4
        %v4287 = vshll.u32 %v4219, 16
        %v4289 = vrot.slane %v4287, 5
        %v4290 = vor.u32 %v4286, %v4289
        %v4291 = vrot.slane %v4290, 4
        %v4293 = vshll.u32 %v4220, 16
        %v4295 = vrot.slane %v4293, 5
        %v4296 = vsel %vm293, %v4291, %v4295
        %v4298 = vshrl.u32 %v4221, 16
        %v4300 = vrot.slane %v4298, 4
        %v4301 = vshll.u32 %v4221, 16
        %v4303 = vrot.slane %v4301, 5
        %v4304 = vor.u32 %v4300, %v4303
        %v4305 = vrot.slane %v4304, 4
        %v4307 = vshll.u32 %v4222, 16
        %v4309 = vrot.slane %v4307, 5
        %v4310 = vsel %vm293, %v4305, %v4309
        %v4312 = vshrl.u32 %v4223, 16
        %v4314 = vrot.slane %v4312, 4
        %v4315 = vshll.u32 %v4223, 16
        %v4317 = vrot.slane %v4315, 5
        %v4318 = vor.u32 %v4314, %v4317
        %v4319 = vrot.slane %v4318, 4
        %v4321 = vshll.u32 %v4224, 16
        %v4323 = vrot.slane %v4321, 5
        %v4324 = vsel %vm293, %v4319, %v4323
        %v4326 = vshrl.u32 %v4225, 16
        %v4328 = vrot.slane %v4326, 4
        %v4329 = vshll.u32 %v4225, 16
        %v4331 = vrot.slane %v4329, 5
        %v4332 = vor.u32 %v4328, %v4331
        %v4333 = vrot.slane %v4332, 4
        %v4335 = vshll.u32 %v4226, 16
        %v4337 = vrot.slane %v4335, 5
        %v4338 = vsel %vm293, %v4333, %v4337
        %v4339 = vld [vmem:[%s5] sm:$0x3]
        %v4340 = vunpack.c.l.b16 %v4240
        %v4341 = vunpack.c.l.b16 %v4254
        %v4342 = vunpack.c.l.b16 %v4268
        %v4343 = vunpack.c.l.b16 %v4282
        %v4344 = vunpack.c.l.b16 %v4296
        %v4345 = vunpack.c.l.b16 %v4310
        %v4346 = vunpack.c.l.b16 %v4324
        %v4347 = vunpack.c.l.b16 %v4338
        %v4348 = vpack.c.b16 %v4341, %v4340
        %v4349 = vpack.c.b16 %v4343, %v4342
        %v4350 = vpack.c.b16 %v4345, %v4344
        %v4351 = vpack.c.b16 %v4347, %v4346
        %v4353 = vsel %vm423, %v4348, 0
        %v4356 = vsel %vm423, %v4349, 0
        %v4359 = vsel %vm423, %v4350, 0
        %v4362 = vsel %vm423, %v4351, 0
        %v4365 = vsel %vm436, %v4339, 0
        %4367 = vmatprep.subr.bf16.mxu0 0
        %4368 = vmatpush1.bf16.msra.mxu0 %v4365
        %4369 = vmatprep.subr.bf16.mxu0 0
        %4370 = vmatpush1.bf16.msra.mxu0 0
        %4371 = vmatprep.subr.bf16.mxu0 0
        %4372 = vmatpush1.bf16.msra.mxu0 0
        %4373 = vmatprep.subr.bf16.mxu0 0
        %4374 = vmatpush1.bf16.msra.mxu0 0
        %4375 = vmatprep.subr.bf16.mxu0 0
        %4376 = vmatpush1.bf16.msra.mxu0 0
        %4377 = vmatprep.subr.bf16.mxu0 0
        %4378 = vmatpush1.bf16.msra.mxu0 0
        %4379 = vmatprep.subr.bf16.mxu0 0
        %4380 = vmatpush1.bf16.msra.mxu0 0
        %4381 = vmatprep.subr.bf16.mxu0 0
        %4382 = vmatpush1.bf16.msra.mxu0 0
        %4383 = vmatprep.subr.bf16.mxu0 0
        %4384 = vmatpush1.bf16.msra.mxu0 0
        %4385 = vmatprep.subr.bf16.mxu0 0
        %4386 = vmatpush1.bf16.msra.mxu0 0
        %4387 = vmatprep.subr.bf16.mxu0 0
        %4388 = vmatpush1.bf16.msra.mxu0 0
        %4389 = vmatprep.subr.bf16.mxu0 0
        %4390 = vmatpush1.bf16.msra.mxu0 0
        %4391 = vmatprep.subr.bf16.mxu0 0
        %4392 = vmatpush1.bf16.msra.mxu0 0
        %4393 = vmatprep.subr.bf16.mxu0 0
        %4394 = vmatpush1.bf16.msra.mxu0 0
        %4395 = vmatprep.subr.bf16.mxu0 0
        %4396 = vmatpush1.bf16.msra.mxu0 0
        %4397 = vmatprep.subr.bf16.mxu0 0
        %4398 = vmatpush1.bf16.msra.mxu0 0
        %4399 = vmatprep.mubr.bf16.mxu0 0
        %4400 = vmatmul.mubr.bf16.gmra.mrb[0].mxu0 %v4353
        %v4401 = vpop.f32.mrb[0].mxu0
        %v4402 = vadd.f32 0.0, %v4401
        %v4403 = vpop.f32.mrb[0].mxu0
        %v4404 = vpop.f32.mrb[0].mxu0
        %v4405 = vadd.f32 0.0, %v4404
        %v4406 = vpop.f32.mrb[0].mxu0
        %4407 = vmatprep.mubr.bf16.mxu0 0
        %4408 = vmatmul.mubr.bf16.gmra.mrb[0].mxu0 %v4356
        %v4409 = vpop.f32.mrb[0].mxu0
        %v4410 = vadd.f32 0.0, %v4409
        %v4411 = vpop.f32.mrb[0].mxu0
        %v4412 = vpop.f32.mrb[0].mxu0
        %v4413 = vadd.f32 0.0, %v4412
        %v4414 = vpop.f32.mrb[0].mxu0
        %4415 = vmatprep.mubr.bf16.mxu0 0
        %4416 = vmatmul.mubr.bf16.gmra.mrb[0].mxu0 %v4359
        %v4417 = vpop.f32.mrb[0].mxu0
        %v4418 = vadd.f32 0.0, %v4417
        %v4419 = vpop.f32.mrb[0].mxu0
        %v4420 = vpop.f32.mrb[0].mxu0
        %v4421 = vadd.f32 0.0, %v4420
        %v4422 = vpop.f32.mrb[0].mxu0
        %4423 = vmatprep.mubr.bf16.mxu0 0
        %4424 = vmatmul.mubr.bf16.gmra.mrb[0].mxu0 %v4362
        %v4425 = vpop.f32.mrb[0].mxu0
        %v4426 = vadd.f32 0.0, %v4425
        %v4427 = vpop.f32.mrb[0].mxu0
        %v4428 = vpop.f32.mrb[0].mxu0
        %v4429 = vadd.f32 0.0, %v4428
        %v4430 = vpop.f32.mrb[0].mxu0
        %4431 = vdwg.mxu0
        %v4432 = vadd.f32 %v4203, %v4402
        %v4433 = vadd.f32 %v4204, %v4405
        %v4434 = vadd.f32 %v4205, %v4410
        %v4435 = vadd.f32 %v4206, %v4413
        %v4436 = vadd.f32 %v4207, %v4418
        %v4437 = vadd.f32 %v4208, %v4421
        %v4438 = vadd.f32 %v4209, %v4426
        %v4439 = vadd.f32 %v4210, %v4429
        %v4440 = vld [vmem:[%s4] sm:$0x1]
        %v4442 = vlaneseq
        %v4443 = vshrl.u32 %v4442, 7
        %v4444 = vsub.s32 0, %v4443
        %v4445 = vrot.slane %v4440, %v4444
        %v4447 = vadd.f32 %v4432, %v4445
        %v4448 = vadd.f32 %v4433, %v4445
        %v4449 = vadd.f32 %v4434, %v4445
        %v4450 = vadd.f32 %v4435, %v4445
        %v4451 = vadd.f32 %v4436, %v4445
        %v4452 = vadd.f32 %v4437, %v4445
        %v4453 = vadd.f32 %v4438, %v4445
        %v4454 = vadd.f32 %v4439, %v4445
        %v4455 = vmax.f32 %v4447, 0.0
        %v4456 = vmax.f32 %v4448, 0.0
        %v4457 = vmax.f32 %v4449, 0.0
        %v4458 = vmax.f32 %v4450, 0.0
        %v4459 = vmax.f32 %v4451, 0.0
        %v4460 = vmax.f32 %v4452, 0.0
        %v4461 = vmax.f32 %v4453, 0.0
        %v4462 = vmax.f32 %v4454, 0.0
        %4463 = vst [vmem:[%s259] sm:$0xff] %v4455
        %4464 = vst [vmem:[%s259 + $0x8] sm:$0xff] %v4456
        %4465 = vst [vmem:[%s259 + $0x10] sm:$0xff] %v4457
        %4466 = vst [vmem:[%s259 + $0x18] sm:$0xff] %v4458
        %4467 = vst [vmem:[%s259 + $0x20] sm:$0xff] %v4459
        %4468 = vst [vmem:[%s259 + $0x28] sm:$0xff] %v4460
        %4469 = vst [vmem:[%s259 + $0x30] sm:$0xff] %v4461
        %4470 = vst [vmem:[%s259 + $0x38] sm:$0xff] %v4462
        %s4471 = sand.u32 %s160, 1
        %s4472 = scalar_lea.sflag [#allocation5], %s4471
        %s4473 = sand.u32 %s160, 1
        %s4474 = smul.addr %s4473, 64
        %s4475 = scalar_lea.vmem [#allocation6], %s4474
        // Predicated region
        $region49: #{tpu_custom_call.1} parent=43 // pred_check
          %p4476 = pneg %p170
        $region50: #{tpu_custom_call.1} parent=43 // pred_check_branch
          %4478 = sbr.rel (%p4476) target = $region52
        $region51: #{tpu_custom_call.1} parent=43 // pred_region
          %s4480 = ssub.s32 1024, 1024
          %4481 = vsyncadd %s4472, %s4480
          %s4482 = smul.addr %s21, 8
          %s4483 = smul.addr %s4482, 128
          %s4484 = scalar_lea.hbm %s6, %s4483
          %s4485 = sshll.u32 %s4475, 4
          %s4486 = int_to_ptr.vmem [resolvable:$true] %s4485
          %4491 = dma.vmem_to_hbm [thread:$0]  %s4486, 1024, %s4484, %s4472, 128, 128, 8
        $region52: #{tpu_custom_call.1} parent=43 // pred_fallthru
          _
      $region44: #{tpu_custom_call.1} parent=5 // pred_fallthru
        _
      %p4492 = scmp.le.s32.totalorder 2, %s16
      // Predicated region
      $region53: #{tpu_custom_call.1} parent=5 // pred_check
        %p4493 = pneg %p4492
      $region54: #{tpu_custom_call.1} parent=5 // pred_check_branch
        %4495 = sbr.rel (%p4493) target = $region56
      $region55: #{tpu_custom_call.1} parent=5 // pred_region
        %s4496 = ssub.s32 %s16, 2
        // Predicated region
        $region57: #{tpu_custom_call.1} parent=55 // pred_check
          %p4497 = pneg %p176
        $region58: #{tpu_custom_call.1} parent=55 // pred_check_branch
          %4499 = sbr.rel (%p4497) target = $region60
        $region59: #{tpu_custom_call.1} parent=55 // pred_region
          %s4500 = sand.u32 %s161, 1
          %s4501 = scalar_lea.sflag [#allocation5], %s4500
          %s4502 = sand.u32 %s161, 1
          %s4503 = smul.addr %s4502, 64
          %s4504 = scalar_lea.vmem [#allocation6], %s4503
          %4505 = dma.done %s4501, 1024
        $region60: #{tpu_custom_call.1} parent=55 // pred_fallthru
          _
      $region56: #{tpu_custom_call.1} parent=5 // pred_fallthru
        _
    $region6: #{tpu_custom_call.1} parent=1 // loop_footer
      %s20 = sadd.s32 1, %s16
    $region7: #{tpu_custom_call.1} parent=1 // loop_footer_branch
      %15 = sbr.rel target = $region3
    $region8: #{tpu_custom_call.1} parent=1 // loop_exit
      _
    %4506 = vsyncpa [#allocation4], 1
    %s4507 = scalar_lea.sflag [#allocation4], 1
    %4508 = vsyncpa %s4507, 1
    %4509 = vsyncpa [#allocation5], 1
    %s4510 = scalar_lea.sflag [#allocation5], 1
    %4511 = vsyncpa %s4510, 1

</llo_original>
